<compile_context>
chip_gen: v6e
topology: v6e:2x2x1
jax: 0.10.0
libtpu: 0.0.40
codegen_flags: <defaults>
</compile_context>

<pallas_src>
import functools

import jax
import jax.numpy as jnp
from jax.experimental import pallas as pl
from jax.experimental.pallas import tpu as pltpu


# ---------------------------------------------------------------------------
# FISTA momentum coefficients depend only on T (data independent) -> Python.
# ---------------------------------------------------------------------------
def _fista_momentum(T):
    coeffs = []
    s_old = 1.0
    for _ in range(T):
        s_new = (1.0 + (1.0 + 4.0 * s_old * s_old) ** 0.5) / 2.0
        coeffs.append((s_old - 1.0) / s_new)
        s_old = s_new
    return coeffs


def _round_up(v, m):
    return (v + m - 1) // m * m


def _physical_vmem_bytes():
    try:
        return int(pltpu.get_tpu_info().vmem_capacity_bytes)
    except Exception:
        return 64 << 20  # conservative (v7x per-TC VMEM); safe on v5e/v6e too


# ---------------------------------------------------------------------------
# Pallas kernel: full unrolled FISTA + decoder for one batch block.
# ---------------------------------------------------------------------------
def _crsae_kernel(y_ref, d_ref, dt_ref, yhat_ref, x_ref, *, T, L, lam, mom,
                  mm_dtype):
    y = y_ref[...]                        # (Bb, Np)   f32
    D = d_ref[...]                        # (CMp, Np)  mm_dtype (cast in wrapper)
    DT = dt_ref[...]                      # (Np, CMp)  mm_dtype

    def mm(a, b):                         # MXU matmul, f32 accumulation
        return jnp.dot(a.astype(mm_dtype), b,
                       preferred_element_type=jnp.float32)

    thr = lam / L
    inv_L = 1.0 / L

    # ---- t = 0 (peeled): x_tmp == 0  ->  res == y, no Hx matmul ------------
    grad = mm(y, DT)                                       # (Bb, CMp)
    x_new = jnp.maximum(grad * inv_L - thr, 0.0)
    Hx_new = mm(x_new, D)                                  # (Bb, Np)

    # mom[0] == 0 exactly -> alias (no VPU pass).
    x_old, Hx_old = x_new, Hx_new
    x_tmp, Hx_tmp = x_new, Hx_new

    # ---- t = 1 .. T-1 (Hx carried by linearity) ----------------------------
    # TODO(synk): if block_b is pushed further with large CM_pad and the
    # compiler starts spilling, move x_old/Hx_old into explicit pltpu.VMEM
    # scratch instead of carrying them as unrolled SSA values.
    for t in range(1, T):                 # T small & static -> unrolled
        res = y - Hx_tmp
        grad = mm(res, DT)                                 # (Bb, CMp)
        x_new = jnp.maximum(x_tmp + grad * inv_L - thr, 0.0)
        Hx_new = mm(x_new, D)                              # (Bb, Np)
        if t < T - 1:                     # final momentum update is dead code
            m = mom[t]
            x_tmp = x_new + m * (x_new - x_old)
            Hx_tmp = Hx_new + m * (Hx_new - Hx_old)
            x_old, Hx_old = x_new, Hx_new

    x_ref[...] = x_new
    yhat_ref[...] = Hx_new                # decoder output == last Hx_new


# ---------------------------------------------------------------------------
# Toeplitz dictionary construction (parameter setup, plain JAX).
# ---------------------------------------------------------------------------
def build_dictionary(H, N):
    """H: (C,1,K) -> Toeplitz D: (C*M, N), D[c*M+m, n] = H[c,0,n-m]."""
    C, _, K = H.shape
    M = N - K + 1
    Hk = H[:, 0, :].astype(jnp.float32)               # (C, K)
    m = jnp.arange(M)[:, None]
    n = jnp.arange(N)[None, :]
    diff = n - m                                       # (M, N)
    valid = (diff >= 0) & (diff < K)
    gathered = Hk[:, jnp.clip(diff, 0, K - 1)]         # (C, M, N)
    D = jnp.where(valid[None], gathered, 0.0)
    return D.reshape(C * M, N)


def crsae1d_forward(y, H, *, T, L, lam, block_b=None, matmul_dtype=None):
    """y: (B,1,N) NCW, H: (C,1,K).  Returns (y_hat (B,1,N), x (B,C,M)).

    matmul_dtype: MXU operand dtype.  Default bf16 (MXU-native on all TPU
    generations, ~2-4x over f32 operands); accumulation and all FISTA
    elementwise math stay f32.  Pass jnp.float32 for reference-exact results.
    """
    B, Cin, N = y.shape
    assert Cin == 1, "CRsAE1D expects a single input channel"
    assert lam >= 0.0, "padding inertness requires lam >= 0"
    assert L > 0.0, "L must be positive"
    C, _, K = H.shape
    M = N - K + 1
    CM = C * M

    if matmul_dtype is None:
        matmul_dtype = jnp.bfloat16
    matmul_dtype = jnp.dtype(matmul_dtype)
    mm_bytes = matmul_dtype.itemsize

    # --- batch block: big enough for MXU throughput (128/256-wide arrays) ---
    if block_b is None:
        block_b = 128 if mm_bytes == 4 else 256
    min_sub = 8 if mm_bytes == 4 else 16   # bf16 packed sublane tile is (16,128)
    block_b = _round_up(max(block_b, min_sub), min_sub)

    # --- padding to TPU-friendly shapes (zero padding is inert) -------------
    N_pad = _round_up(N, 128)
    CM_pad = _round_up(CM, 128)
    B_pad = _round_up(B, block_b)
    nb = B_pad // block_b                  # >= 2 when B > block_b (v7x 2 TCs)

    D = build_dictionary(H, N)                                  # (CM, N) f32
    D = jnp.pad(D, ((0, CM_pad - CM), (0, N_pad - N)))          # (CMp, Np)
    D = D.astype(matmul_dtype)             # cast once in HBM, not per grid step
    DT = jnp.asarray(D.T)                                       # (Np, CMp)

    y2 = jnp.pad(y[:, 0, :].astype(jnp.float32),
                 ((0, B_pad - B), (0, N_pad - N)))              # (Bp, Np)

    mom = _fista_momentum(T)
    kernel = functools.partial(_crsae_kernel, T=T, L=float(L), lam=float(lam),
                               mom=mom, mm_dtype=matmul_dtype)

    flops = 4 * T * B_pad * CM_pad * N_pad                       # 2*T matmuls
    bytes_accessed = (4 * B_pad * (2 * N_pad + CM_pad)           # y, yhat, x
                      + 2 * mm_bytes * CM_pad * N_pad)           # D, DT

    def run(single_buffer_dict):
        # --- VMEM budget (generation-aware cap) ------------------------------
        dict_bufs = 1 if single_buffer_dict else 2
        dict_bytes = dict_bufs * 2 * CM_pad * N_pad * mm_bytes
        io_bytes = 2 * block_b * (2 * N_pad + 2 * CM_pad) * 4    # double-buffered
        state_bytes = (block_b * (4 * CM_pad + 4 * N_pad) * 4
                       + block_b * (CM_pad + N_pad) * mm_bytes)  # FISTA state
        needed = dict_bytes + io_bytes + state_bytes + (8 << 20)
        cap = _physical_vmem_bytes() - (8 << 20)
        vmem_limit = int(min(max(needed, 32 << 20), cap))

        dict_kw = dict(pipeline_mode=pl.Buffered(1)) if single_buffer_dict else {}
        return pl.pallas_call(
            kernel,
            grid=(nb,),
            in_specs=[
                pl.BlockSpec((block_b, N_pad), lambda i: (i, 0)),          # y
                pl.BlockSpec((CM_pad, N_pad), lambda i: (0, 0), **dict_kw),  # D
                pl.BlockSpec((N_pad, CM_pad), lambda i: (0, 0), **dict_kw),  # D^T
            ],
            out_specs=(
                pl.BlockSpec((block_b, N_pad), lambda i: (i, 0)),          # y_hat
                pl.BlockSpec((block_b, CM_pad), lambda i: (i, 0)),         # x
            ),
            out_shape=(jax.ShapeDtypeStruct((B_pad, N_pad), jnp.float32),
                       jax.ShapeDtypeStruct((B_pad, CM_pad), jnp.float32)),
            compiler_params=pltpu.CompilerParams(
                dimension_semantics=("parallel",),
                vmem_limit_bytes=vmem_limit),
            cost_estimate=pl.CostEstimate(flops=flops, transcendentals=0,
                                          bytes_accessed=bytes_accessed),
        )(y2, D, DT)

    try:
        yhat2, xflat = run(single_buffer_dict=True)
    except Exception:
        # Fallback for jax versions without pl.Buffered(1) single-buffering:
        # resident dictionaries get default double-buffering instead.
        yhat2, xflat = run(single_buffer_dict=False)

    y_hat = yhat2[:B, :N].reshape(B, 1, N)
    x = xflat[:B, :CM].reshape(B, C, M)
    return y_hat, x


# ---------------------------------------------------------------------------
# Pure-JAX reference (explicit shifted-slice convs) for correctness check.
# ---------------------------------------------------------------------------
def _conv1d_ref(y2, Hk):          # y2 (B,N), Hk (C,K) -> (B,C,M)
    B, N = y2.shape
    C, K = Hk.shape
    M = N - K + 1
    out = jnp.zeros((B, C, M), jnp.float32)
    for k in range(K):
        out = out + Hk[None, :, k, None] * y2[:, None, k:k + M]
    return out


def _convT1d_ref(x, Hk):          # x (B,C,M), Hk (C,K) -> (B,N)
    B, C, M = x.shape
    K = Hk.shape[1]
    N = M + K - 1
    out = jnp.zeros((B, N), jnp.float32)
    for k in range(K):
        out = out.at[:, k:k + M].add(jnp.einsum('bcm,c->bm', x, Hk[:, k]))
    return out


def crsae1d_reference(y, H, *, T, L, lam):
    B, _, N = y.shape
    C, _, K = H.shape
    Hk = H[:, 0, :]
    y2 = y[:, 0, :]
    M = N - K + 1
    x_old = jnp.zeros((B, C, M), jnp.float32)
    x_tmp = jnp.zeros((B, C, M), jnp.float32)
    x_new = x_old
    s_old = 1.0
    for _ in range(T):
        res = y2 - _convT1d_ref(x_tmp, Hk)
        x_new = jnp.maximum(x_tmp + _conv1d_ref(res, Hk) / L - lam / L, 0.0)
        s_new = (1.0 + (1.0 + 4.0 * s_old * s_old) ** 0.5) / 2.0
        x_tmp = x_new + (s_old - 1.0) / s_new * (x_new - x_old)
        x_old = x_new
        s_old = s_new
    y_hat = _convT1d_ref(x_new, Hk)
    return y_hat[:, None, :], x_new


if __name__ == "__main__":
    # hyp = {'T': 5, 'L': 10.0, 'C': 4, 'K': 8, 'lam': 0.1}
    T, L, C, K, lam = 5, 10.0, 4, 8, 0.1
    B, N = 2, 64                                  # y: (B, 1, N)

    key = jax.random.PRNGKey(0)
    kH, ky = jax.random.split(key)
    # H = normalize(randn(C, 1, K), p=2, dim=-1)
    H = jax.random.normal(kH, (C, 1, K), dtype=jnp.float32)
    H = H / jnp.linalg.norm(H, axis=-1, keepdims=True)
    y = jax.random.normal(ky, (B, 1, N), dtype=jnp.float32)

    y_hat_ref, x_ref = crsae1d_reference(y, H, T=T, L=L, lam=lam)

    # --- exact path (f32 MXU operands): tight check vs pure-JAX reference ---
    y_hat, x = crsae1d_forward(y, H, T=T, L=L, lam=lam,
                               matmul_dtype=jnp.float32)
    jax.block_until_ready((y_hat, x))
    assert y_hat.shape == (B, 1, N)
    assert x.shape == (B, C, N - K + 1)
    assert jnp.allclose(y_hat, y_hat_ref, atol=1e-3, rtol=1e-3)
    assert jnp.allclose(x, x_ref, atol=1e-3, rtol=1e-3)

    # --- default fast path (bf16 MXU operands, f32 accumulation): loose check
    y_hat_bf, x_bf = crsae1d_forward(y, H, T=T, L=L, lam=lam)
    jax.block_until_ready((y_hat_bf, x_bf))
    assert y_hat_bf.shape == (B, 1, N)
    assert x_bf.shape == (B, C, N - K + 1)
    assert jnp.allclose(y_hat_bf, y_hat_ref, atol=1e-1)
    assert jnp.allclose(x_bf, x_ref, atol=1e-1)

    print("KERNEL_OK")
</pallas_src>

<mosaic_0001>
module attributes {stable_mosaic.version = 11 : i64} {
  func.func @_crsae_kernel(%arg0: i32, %arg1: memref<128x128xf32, #tpu.memory_space<vmem>>, %arg2: memref<256x128xf32, #tpu.memory_space<vmem>>, %arg3: memref<128x256xf32, #tpu.memory_space<vmem>>, %arg4: memref<128x128xf32, #tpu.memory_space<vmem>>, %arg5: memref<128x256xf32, #tpu.memory_space<vmem>>) attributes {dimension_semantics = [#tpu.dimension_semantics<parallel>], iteration_bounds = array<i64: 1>, scalar_prefetch = 0 : i64, scratch_operands = 0 : i64, tpu.core_type = #tpu.core_type<tc>, window_params = [{transform_indices = @transform_0, window_bounds = array<i64: 128, 128>}, {pipeline_mode = #tpu.pipeline_mode<synchronous>, transform_indices = @transform_1, window_bounds = array<i64: 256, 128>}, {pipeline_mode = #tpu.pipeline_mode<synchronous>, transform_indices = @transform_2, window_bounds = array<i64: 128, 256>}, {transform_indices = @transform_3, window_bounds = array<i64: 128, 128>}, {transform_indices = @transform_4, window_bounds = array<i64: 128, 256>}]} {
    %c0 = arith.constant 0 : index
    %c0_0 = arith.constant 0 : index
    %0 = vector.load %arg1[%c0, %c0_0] : memref<128x128xf32, #tpu.memory_space<vmem>>, vector<128x128xf32>
    %c0_1 = arith.constant 0 : index
    %c0_2 = arith.constant 0 : index
    %1 = vector.load %arg2[%c0_1, %c0_2] : memref<256x128xf32, #tpu.memory_space<vmem>>, vector<256x128xf32>
    %c0_3 = arith.constant 0 : index
    %c0_4 = arith.constant 0 : index
    %2 = vector.load %arg3[%c0_3, %c0_4] : memref<128x256xf32, #tpu.memory_space<vmem>>, vector<128x256xf32>
    %cst = arith.constant dense<0.000000e+00> : vector<128x256xf32>
    %3 = tpu.matmul %0, %2, %cst {dimension_numbers = #tpu.dot_dimension_numbers<[1], [0], [0], [1], [0, 0, 1, 1], [], []>} : vector<128x128xf32>, vector<128x256xf32>, vector<128x256xf32> -> vector<128x256xf32>
    %cst_5 = arith.constant 1.000000e-01 : f32
    %4 = vector.broadcast %cst_5 : f32 to vector<128x256xf32>
    %5 = arith.mulf %3, %4 : vector<128x256xf32>
    %cst_6 = arith.constant 0.00999999977 : f32
    %6 = vector.broadcast %cst_6 : f32 to vector<128x256xf32>
    %7 = arith.subf %5, %6 : vector<128x256xf32>
    %cst_7 = arith.constant 0.000000e+00 : f32
    %8 = vector.broadcast %cst_7 : f32 to vector<128x256xf32>
    %9 = arith.maximumf %7, %8 : vector<128x256xf32>
    %cst_8 = arith.constant dense<0.000000e+00> : vector<128x128xf32>
    %10 = tpu.matmul %9, %1, %cst_8 {dimension_numbers = #tpu.dot_dimension_numbers<[1], [0], [0], [1], [0, 0, 1, 1], [], []>} : vector<128x256xf32>, vector<256x128xf32>, vector<128x128xf32> -> vector<128x128xf32>
    %11 = arith.subf %0, %10 : vector<128x128xf32>
    %cst_9 = arith.constant dense<0.000000e+00> : vector<128x256xf32>
    %12 = tpu.matmul %11, %2, %cst_9 {dimension_numbers = #tpu.dot_dimension_numbers<[1], [0], [0], [1], [0, 0, 1, 1], [], []>} : vector<128x128xf32>, vector<128x256xf32>, vector<128x256xf32> -> vector<128x256xf32>
    %cst_10 = arith.constant 1.000000e-01 : f32
    %13 = vector.broadcast %cst_10 : f32 to vector<128x256xf32>
    %14 = arith.mulf %12, %13 : vector<128x256xf32>
    %15 = arith.addf %9, %14 : vector<128x256xf32>
    %cst_11 = arith.constant 0.00999999977 : f32
    %16 = vector.broadcast %cst_11 : f32 to vector<128x256xf32>
    %17 = arith.subf %15, %16 : vector<128x256xf32>
    %cst_12 = arith.constant 0.000000e+00 : f32
    %18 = vector.broadcast %cst_12 : f32 to vector<128x256xf32>
    %19 = arith.maximumf %17, %18 : vector<128x256xf32>
    %cst_13 = arith.constant dense<0.000000e+00> : vector<128x128xf32>
    %20 = tpu.matmul %19, %1, %cst_13 {dimension_numbers = #tpu.dot_dimension_numbers<[1], [0], [0], [1], [0, 0, 1, 1], [], []>} : vector<128x256xf32>, vector<256x128xf32>, vector<128x128xf32> -> vector<128x128xf32>
    %21 = arith.subf %19, %9 : vector<128x256xf32>
    %cst_14 = arith.constant 0.28175351 : f32
    %22 = vector.broadcast %cst_14 : f32 to vector<128x256xf32>
    %23 = arith.mulf %22, %21 : vector<128x256xf32>
    %24 = arith.addf %19, %23 : vector<128x256xf32>
    %25 = arith.subf %20, %10 : vector<128x128xf32>
    %cst_15 = arith.constant 0.28175351 : f32
    %26 = vector.broadcast %cst_15 : f32 to vector<128x128xf32>
    %27 = arith.mulf %26, %25 : vector<128x128xf32>
    %28 = arith.addf %20, %27 : vector<128x128xf32>
    %29 = arith.subf %0, %28 : vector<128x128xf32>
    %cst_16 = arith.constant dense<0.000000e+00> : vector<128x256xf32>
    %30 = tpu.matmul %29, %2, %cst_16 {dimension_numbers = #tpu.dot_dimension_numbers<[1], [0], [0], [1], [0, 0, 1, 1], [], []>} : vector<128x128xf32>, vector<128x256xf32>, vector<128x256xf32> -> vector<128x256xf32>
    %cst_17 = arith.constant 1.000000e-01 : f32
    %31 = vector.broadcast %cst_17 : f32 to vector<128x256xf32>
    %32 = arith.mulf %30, %31 : vector<128x256xf32>
    %33 = arith.addf %24, %32 : vector<128x256xf32>
    %cst_18 = arith.constant 0.00999999977 : f32
    %34 = vector.broadcast %cst_18 : f32 to vector<128x256xf32>
    %35 = arith.subf %33, %34 : vector<128x256xf32>
    %cst_19 = arith.constant 0.000000e+00 : f32
    %36 = vector.broadcast %cst_19 : f32 to vector<128x256xf32>
    %37 = arith.maximumf %35, %36 : vector<128x256xf32>
    %cst_20 = arith.constant dense<0.000000e+00> : vector<128x128xf32>
    %38 = tpu.matmul %37, %1, %cst_20 {dimension_numbers = #tpu.dot_dimension_numbers<[1], [0], [0], [1], [0, 0, 1, 1], [], []>} : vector<128x256xf32>, vector<256x128xf32>, vector<128x128xf32> -> vector<128x128xf32>
    %39 = arith.subf %37, %19 : vector<128x256xf32>
    %cst_21 = arith.constant 0.434042782 : f32
    %40 = vector.broadcast %cst_21 : f32 to vector<128x256xf32>
    %41 = arith.mulf %40, %39 : vector<128x256xf32>
    %42 = arith.addf %37, %41 : vector<128x256xf32>
    %43 = arith.subf %38, %20 : vector<128x128xf32>
    %cst_22 = arith.constant 0.434042782 : f32
    %44 = vector.broadcast %cst_22 : f32 to vector<128x128xf32>
    %45 = arith.mulf %44, %43 : vector<128x128xf32>
    %46 = arith.addf %38, %45 : vector<128x128xf32>
    %47 = arith.subf %0, %46 : vector<128x128xf32>
    %cst_23 = arith.constant dense<0.000000e+00> : vector<128x256xf32>
    %48 = tpu.matmul %47, %2, %cst_23 {dimension_numbers = #tpu.dot_dimension_numbers<[1], [0], [0], [1], [0, 0, 1, 1], [], []>} : vector<128x128xf32>, vector<128x256xf32>, vector<128x256xf32> -> vector<128x256xf32>
    %cst_24 = arith.constant 1.000000e-01 : f32
    %49 = vector.broadcast %cst_24 : f32 to vector<128x256xf32>
    %50 = arith.mulf %48, %49 : vector<128x256xf32>
    %51 = arith.addf %42, %50 : vector<128x256xf32>
    %cst_25 = arith.constant 0.00999999977 : f32
    %52 = vector.broadcast %cst_25 : f32 to vector<128x256xf32>
    %53 = arith.subf %51, %52 : vector<128x256xf32>
    %cst_26 = arith.constant 0.000000e+00 : f32
    %54 = vector.broadcast %cst_26 : f32 to vector<128x256xf32>
    %55 = arith.maximumf %53, %54 : vector<128x256xf32>
    %cst_27 = arith.constant dense<0.000000e+00> : vector<128x128xf32>
    %56 = tpu.matmul %55, %1, %cst_27 {dimension_numbers = #tpu.dot_dimension_numbers<[1], [0], [0], [1], [0, 0, 1, 1], [], []>} : vector<128x256xf32>, vector<256x128xf32>, vector<128x128xf32> -> vector<128x128xf32>
    %57 = arith.subf %55, %37 : vector<128x256xf32>
    %cst_28 = arith.constant 0.531063795 : f32
    %58 = vector.broadcast %cst_28 : f32 to vector<128x256xf32>
    %59 = arith.mulf %58, %57 : vector<128x256xf32>
    %60 = arith.addf %55, %59 : vector<128x256xf32>
    %61 = arith.subf %56, %38 : vector<128x128xf32>
    %cst_29 = arith.constant 0.531063795 : f32
    %62 = vector.broadcast %cst_29 : f32 to vector<128x128xf32>
    %63 = arith.mulf %62, %61 : vector<128x128xf32>
    %64 = arith.addf %56, %63 : vector<128x128xf32>
    %65 = arith.subf %0, %64 : vector<128x128xf32>
    %cst_30 = arith.constant dense<0.000000e+00> : vector<128x256xf32>
    %66 = tpu.matmul %65, %2, %cst_30 {dimension_numbers = #tpu.dot_dimension_numbers<[1], [0], [0], [1], [0, 0, 1, 1], [], []>} : vector<128x128xf32>, vector<128x256xf32>, vector<128x256xf32> -> vector<128x256xf32>
    %cst_31 = arith.constant 1.000000e-01 : f32
    %67 = vector.broadcast %cst_31 : f32 to vector<128x256xf32>
    %68 = arith.mulf %66, %67 : vector<128x256xf32>
    %69 = arith.addf %60, %68 : vector<128x256xf32>
    %cst_32 = arith.constant 0.00999999977 : f32
    %70 = vector.broadcast %cst_32 : f32 to vector<128x256xf32>
    %71 = arith.subf %69, %70 : vector<128x256xf32>
    %cst_33 = arith.constant 0.000000e+00 : f32
    %72 = vector.broadcast %cst_33 : f32 to vector<128x256xf32>
    %73 = arith.maximumf %71, %72 : vector<128x256xf32>
    %cst_34 = arith.constant dense<0.000000e+00> : vector<128x128xf32>
    %74 = tpu.matmul %73, %1, %cst_34 {dimension_numbers = #tpu.dot_dimension_numbers<[1], [0], [0], [1], [0, 0, 1, 1], [], []>} : vector<128x256xf32>, vector<256x128xf32>, vector<128x128xf32> -> vector<128x128xf32>
    %c0_35 = arith.constant 0 : index
    %c0_36 = arith.constant 0 : index
    %75 = vector.load %arg5[%c0_35, %c0_36] : memref<128x256xf32, #tpu.memory_space<vmem>>, vector<128x256xf32>
    tpu.vector_store %arg5[%c0_35, %c0_36], %73 {strides = array<i32>} : memref<128x256xf32, #tpu.memory_space<vmem>>, vector<128x256xf32>,
    %c0_37 = arith.constant 0 : index
    %c0_38 = arith.constant 0 : index
    %76 = vector.load %arg4[%c0_37, %c0_38] : memref<128x128xf32, #tpu.memory_space<vmem>>, vector<128x128xf32>
    tpu.vector_store %arg4[%c0_37, %c0_38], %74 {strides = array<i32>} : memref<128x128xf32, #tpu.memory_space<vmem>>, vector<128x128xf32>,
    return
  }
  func.func @transform_0(%arg0: i32) -> (i32, i32) {
    %c0_i32 = arith.constant 0 : i32
    %c0_i32_0 = arith.constant 0 : i32
    return %arg0, %c0_i32 : i32, i32
  }
  func.func @transform_1(%arg0: i32) -> (i32, i32) {
    %c0_i32 = arith.constant 0 : i32
    %c0_i32_0 = arith.constant 0 : i32
    %c0_i32_1 = arith.constant 0 : i32
    return %c0_i32, %c0_i32_0 : i32, i32
  }
  func.func @transform_2(%arg0: i32) -> (i32, i32) {
    %c0_i32 = arith.constant 0 : i32
    %c0_i32_0 = arith.constant 0 : i32
    %c0_i32_1 = arith.constant 0 : i32
    return %c0_i32, %c0_i32_0 : i32, i32
  }
  func.func @transform_3(%arg0: i32) -> (i32, i32) {
    %c0_i32 = arith.constant 0 : i32
    %c0_i32_0 = arith.constant 0 : i32
    return %arg0, %c0_i32 : i32, i32
  }
  func.func @transform_4(%arg0: i32) -> (i32, i32) {
    %c0_i32 = arith.constant 0 : i32
    %c0_i32_0 = arith.constant 0 : i32
    return %arg0, %c0_i32 : i32, i32
  }
}

module attributes {stable_mosaic.version = 11 : i64} {
  func.func @_crsae_kernel(%arg0: i32, %arg1: memref<128x128xf32, #tpu.memory_space<vmem>>, %arg2: memref<256x128xf32, #tpu.memory_space<vmem>>, %arg3: memref<128x256xf32, #tpu.memory_space<vmem>>, %arg4: memref<128x128xf32, #tpu.memory_space<vmem>>, %arg5: memref<128x256xf32, #tpu.memory_space<vmem>>) attributes {dimension_semantics = [#tpu.dimension_semantics<parallel>], iteration_bounds = array<i64: 1>, scalar_prefetch = 0 : i64, scratch_operands = 0 : i64, tpu.core_type = #tpu.core_type<tc>, window_params = [{transform_indices = @transform_0, window_bounds = array<i64: 128, 128>}, {pipeline_mode = #tpu.pipeline_mode<synchronous>, transform_indices = @transform_1, window_bounds = array<i64: 256, 128>}, {pipeline_mode = #tpu.pipeline_mode<synchronous>, transform_indices = @transform_2, window_bounds = array<i64: 128, 256>}, {transform_indices = @transform_3, window_bounds = array<i64: 128, 128>}, {transform_indices = @transform_4, window_bounds = array<i64: 128, 256>}]} {
    %c0 = arith.constant 0 : index
    %c0_0 = arith.constant 0 : index
    %0 = vector.load %arg1[%c0, %c0_0] : memref<128x128xf32, #tpu.memory_space<vmem>>, vector<128x128xf32>
    %c0_1 = arith.constant 0 : index
    %c0_2 = arith.constant 0 : index
    %1 = vector.load %arg2[%c0_1, %c0_2] : memref<256x128xf32, #tpu.memory_space<vmem>>, vector<256x128xf32>
    %c0_3 = arith.constant 0 : index
    %c0_4 = arith.constant 0 : index
    %2 = vector.load %arg3[%c0_3, %c0_4] : memref<128x256xf32, #tpu.memory_space<vmem>>, vector<128x256xf32>
    %cst = arith.constant dense<0.000000e+00> : vector<128x256xf32>
    %3 = tpu.matmul %0, %2, %cst {dimension_numbers = #tpu.dot_dimension_numbers<[1], [0], [0], [1], [0, 0, 1, 1], [], []>} : vector<128x128xf32>, vector<128x256xf32>, vector<128x256xf32> -> vector<128x256xf32>
    %cst_5 = arith.constant 1.000000e-01 : f32
    %4 = vector.broadcast %cst_5 : f32 to vector<128x256xf32>
    %5 = arith.mulf %3, %4 : vector<128x256xf32>
    %cst_6 = arith.constant 0.00999999977 : f32
    %6 = vector.broadcast %cst_6 : f32 to vector<128x256xf32>
    %7 = arith.subf %5, %6 : vector<128x256xf32>
    %cst_7 = arith.constant 0.000000e+00 : f32
    %8 = vector.broadcast %cst_7 : f32 to vector<128x256xf32>
    %9 = arith.maximumf %7, %8 : vector<128x256xf32>
    %cst_8 = arith.constant dense<0.000000e+00> : vector<128x128xf32>
    %10 = tpu.matmul %9, %1, %cst_8 {dimension_numbers = #tpu.dot_dimension_numbers<[1], [0], [0], [1], [0, 0, 1, 1], [], []>} : vector<128x256xf32>, vector<256x128xf32>, vector<128x128xf32> -> vector<128x128xf32>
    %11 = arith.subf %0, %10 : vector<128x128xf32>
    %cst_9 = arith.constant dense<0.000000e+00> : vector<128x256xf32>
    %12 = tpu.matmul %11, %2, %cst_9 {dimension_numbers = #tpu.dot_dimension_numbers<[1], [0], [0], [1], [0, 0, 1, 1], [], []>} : vector<128x128xf32>, vector<128x256xf32>, vector<128x256xf32> -> vector<128x256xf32>
    %cst_10 = arith.constant 1.000000e-01 : f32
    %13 = vector.broadcast %cst_10 : f32 to vector<128x256xf32>
    %14 = arith.mulf %12, %13 : vector<128x256xf32>
    %15 = arith.addf %9, %14 : vector<128x256xf32>
    %cst_11 = arith.constant 0.00999999977 : f32
    %16 = vector.broadcast %cst_11 : f32 to vector<128x256xf32>
    %17 = arith.subf %15, %16 : vector<128x256xf32>
    %cst_12 = arith.constant 0.000000e+00 : f32
    %18 = vector.broadcast %cst_12 : f32 to vector<128x256xf32>
    %19 = arith.maximumf %17, %18 : vector<128x256xf32>
    %cst_13 = arith.constant dense<0.000000e+00> : vector<128x128xf32>
    %20 = tpu.matmul %19, %1, %cst_13 {dimension_numbers = #tpu.dot_dimension_numbers<[1], [0], [0], [1], [0, 0, 1, 1], [], []>} : vector<128x256xf32>, vector<256x128xf32>, vector<128x128xf32> -> vector<128x128xf32>
    %21 = arith.subf %19, %9 : vector<128x256xf32>
    %cst_14 = arith.constant 0.28175351 : f32
    %22 = vector.broadcast %cst_14 : f32 to vector<128x256xf32>
    %23 = arith.mulf %22, %21 : vector<128x256xf32>
    %24 = arith.addf %19, %23 : vector<128x256xf32>
    %25 = arith.subf %20, %10 : vector<128x128xf32>
    %cst_15 = arith.constant 0.28175351 : f32
    %26 = vector.broadcast %cst_15 : f32 to vector<128x128xf32>
    %27 = arith.mulf %26, %25 : vector<128x128xf32>
    %28 = arith.addf %20, %27 : vector<128x128xf32>
    %29 = arith.subf %0, %28 : vector<128x128xf32>
    %cst_16 = arith.constant dense<0.000000e+00> : vector<128x256xf32>
    %30 = tpu.matmul %29, %2, %cst_16 {dimension_numbers = #tpu.dot_dimension_numbers<[1], [0], [0], [1], [0, 0, 1, 1], [], []>} : vector<128x128xf32>, vector<128x256xf32>, vector<128x256xf32> -> vector<128x256xf32>
    %cst_17 = arith.constant 1.000000e-01 : f32
    %31 = vector.broadcast %cst_17 : f32 to vector<128x256xf32>
    %32 = arith.mulf %30, %31 : vector<128x256xf32>
    %33 = arith.addf %24, %32 : vector<128x256xf32>
    %cst_18 = arith.constant 0.00999999977 : f32
    %34 = vector.broadcast %cst_18 : f32 to vector<128x256xf32>
    %35 = arith.subf %33, %34 : vector<128x256xf32>
    %cst_19 = arith.constant 0.000000e+00 : f32
    %36 = vector.broadcast %cst_19 : f32 to vector<128x256xf32>
    %37 = arith.maximumf %35, %36 : vector<128x256xf32>
    %cst_20 = arith.constant dense<0.000000e+00> : vector<128x128xf32>
    %38 = tpu.matmul %37, %1, %cst_20 {dimension_numbers = #tpu.dot_dimension_numbers<[1], [0], [0], [1], [0, 0, 1, 1], [], []>} : vector<128x256xf32>, vector<256x128xf32>, vector<128x128xf32> -> vector<128x128xf32>
    %39 = arith.subf %37, %19 : vector<128x256xf32>
    %cst_21 = arith.constant 0.434042782 : f32
    %40 = vector.broadcast %cst_21 : f32 to vector<128x256xf32>
    %41 = arith.mulf %40, %39 : vector<128x256xf32>
    %42 = arith.addf %37, %41 : vector<128x256xf32>
    %43 = arith.subf %38, %20 : vector<128x128xf32>
    %cst_22 = arith.constant 0.434042782 : f32
    %44 = vector.broadcast %cst_22 : f32 to vector<128x128xf32>
    %45 = arith.mulf %44, %43 : vector<128x128xf32>
    %46 = arith.addf %38, %45 : vector<128x128xf32>
    %47 = arith.subf %0, %46 : vector<128x128xf32>
    %cst_23 = arith.constant dense<0.000000e+00> : vector<128x256xf32>
    %48 = tpu.matmul %47, %2, %cst_23 {dimension_numbers = #tpu.dot_dimension_numbers<[1], [0], [0], [1], [0, 0, 1, 1], [], []>} : vector<128x128xf32>, vector<128x256xf32>, vector<128x256xf32> -> vector<128x256xf32>
    %cst_24 = arith.constant 1.000000e-01 : f32
    %49 = vector.broadcast %cst_24 : f32 to vector<128x256xf32>
    %50 = arith.mulf %48, %49 : vector<128x256xf32>
    %51 = arith.addf %42, %50 : vector<128x256xf32>
    %cst_25 = arith.constant 0.00999999977 : f32
    %52 = vector.broadcast %cst_25 : f32 to vector<128x256xf32>
    %53 = arith.subf %51, %52 : vector<128x256xf32>
    %cst_26 = arith.constant 0.000000e+00 : f32
    %54 = vector.broadcast %cst_26 : f32 to vector<128x256xf32>
    %55 = arith.maximumf %53, %54 : vector<128x256xf32>
    %cst_27 = arith.constant dense<0.000000e+00> : vector<128x128xf32>
    %56 = tpu.matmul %55, %1, %cst_27 {dimension_numbers = #tpu.dot_dimension_numbers<[1], [0], [0], [1], [0, 0, 1, 1], [], []>} : vector<128x256xf32>, vector<256x128xf32>, vector<128x128xf32> -> vector<128x128xf32>
    %57 = arith.subf %55, %37 : vector<128x256xf32>
    %cst_28 = arith.constant 0.531063795 : f32
    %58 = vector.broadcast %cst_28 : f32 to vector<128x256xf32>
    %59 = arith.mulf %58, %57 : vector<128x256xf32>
    %60 = arith.addf %55, %59 : vector<128x256xf32>
    %61 = arith.subf %56, %38 : vector<128x128xf32>
    %cst_29 = arith.constant 0.531063795 : f32
    %62 = vector.broadcast %cst_29 : f32 to vector<128x128xf32>
    %63 = arith.mulf %62, %61 : vector<128x128xf32>
    %64 = arith.addf %56, %63 : vector<128x128xf32>
    %65 = arith.subf %0, %64 : vector<128x128xf32>
    %cst_30 = arith.constant dense<0.000000e+00> : vector<128x256xf32>
    %66 = tpu.matmul %65, %2, %cst_30 {dimension_numbers = #tpu.dot_dimension_numbers<[1], [0], [0], [1], [0, 0, 1, 1], [], []>} : vector<128x128xf32>, vector<128x256xf32>, vector<128x256xf32> -> vector<128x256xf32>
    %cst_31 = arith.constant 1.000000e-01 : f32
    %67 = vector.broadcast %cst_31 : f32 to vector<128x256xf32>
    %68 = arith.mulf %66, %67 : vector<128x256xf32>
    %69 = arith.addf %60, %68 : vector<128x256xf32>
    %cst_32 = arith.constant 0.00999999977 : f32
    %70 = vector.broadcast %cst_32 : f32 to vector<128x256xf32>
    %71 = arith.subf %69, %70 : vector<128x256xf32>
    %cst_33 = arith.constant 0.000000e+00 : f32
    %72 = vector.broadcast %cst_33 : f32 to vector<128x256xf32>
    %73 = arith.maximumf %71, %72 : vector<128x256xf32>
    %cst_34 = arith.constant dense<0.000000e+00> : vector<128x128xf32>
    %74 = tpu.matmul %73, %1, %cst_34 {dimension_numbers = #tpu.dot_dimension_numbers<[1], [0], [0], [1], [0, 0, 1, 1], [], []>} : vector<128x256xf32>, vector<256x128xf32>, vector<128x128xf32> -> vector<128x128xf32>
    %c0_35 = arith.constant 0 : index
    %c0_36 = arith.constant 0 : index
    %75 = vector.load %arg5[%c0_35, %c0_36] : memref<128x256xf32, #tpu.memory_space<vmem>>, vector<128x256xf32>
    tpu.vector_store %arg5[%c0_35, %c0_36], %73 {strides = array<i32>} : memref<128x256xf32, #tpu.memory_space<vmem>>, vector<128x256xf32>,
    %c0_37 = arith.constant 0 : index
    %c0_38 = arith.constant 0 : index
    %76 = vector.load %arg4[%c0_37, %c0_38] : memref<128x128xf32, #tpu.memory_space<vmem>>, vector<128x128xf32>
    tpu.vector_store %arg4[%c0_37, %c0_38], %74 {strides = array<i32>} : memref<128x128xf32, #tpu.memory_space<vmem>>, vector<128x128xf32>,
    return
  }
  func.func @transform_0(%arg0: i32) -> (i32, i32) {
    %c0_i32 = arith.constant 0 : i32
    %c0_i32_0 = arith.constant 0 : i32
    return %arg0, %c0_i32 : i32, i32
  }
  func.func @transform_1(%arg0: i32) -> (i32, i32) {
    %c0_i32 = arith.constant 0 : i32
    %c0_i32_0 = arith.constant 0 : i32
    %c0_i32_1 = arith.constant 0 : i32
    return %c0_i32, %c0_i32_0 : i32, i32
  }
  func.func @transform_2(%arg0: i32) -> (i32, i32) {
    %c0_i32 = arith.constant 0 : i32
    %c0_i32_0 = arith.constant 0 : i32
    %c0_i32_1 = arith.constant 0 : i32
    return %c0_i32, %c0_i32_0 : i32, i32
  }
  func.func @transform_3(%arg0: i32) -> (i32, i32) {
    %c0_i32 = arith.constant 0 : i32
    %c0_i32_0 = arith.constant 0 : i32
    return %arg0, %c0_i32 : i32, i32
  }
  func.func @transform_4(%arg0: i32) -> (i32, i32) {
    %c0_i32 = arith.constant 0 : i32
    %c0_i32_0 = arith.constant 0 : i32
    return %arg0, %c0_i32 : i32, i32
  }
}

</mosaic_0001>

<llo_original>
// kernel: tpu_custom_call.1
$region0: #{tpu_custom_call.1}
  #allocation0 [shape = 'u32[]', space=smem, size = 0x4, offset = 0x4, fixed_abs, tag = 'smem constant byte address 0x4 - core index']
  #allocation1 [shape = 'u32[144,128]{1,0:T(1,128)}', space=vmem, size = 0x12000, scoped, tag = 'internal scratch']
  %s0 = inlined_call_operand.hbm [shape: f32[128,128], index: 0, kind: input, shape index: {}]
  %s1 = inlined_call_operand.hbm [shape: f32[256,128], index: 1, kind: input, shape index: {}]
  %s2 = inlined_call_operand.hbm [shape: f32[128,256], index: 2, kind: input, shape index: {}]
  %s3 = inlined_call_operand.hbm [shape: f32[128,128], index: 3, kind: output, shape index: {0}]
  %s4 = inlined_call_operand.hbm [shape: f32[128,256], index: 4, kind: output, shape index: {1}]
  %5 = xla_tuple %s3, %s4
  %s6 = sld [smem:[#allocation0]]
  $region42: #{tpu_custom_call.1} parent=0
    _
  %s8 = ssub.s32 1, %s6
  %s9 = scalar_select 0, %s8, %s6
  $region1: #{tpu_custom_call.1} parent=0
    #allocation2 [shape = 'u8[65536]{0}', space=vmem, size = 0x10000, scoped, tag = 'input window, operand 0, single buffered']
    #allocation3 [shape = 's32[1]{0}', space=sflag, size = 0x4, scoped, tag = 'scoped memory for tpu_custom_call.1']
    #allocation4 [shape = 's32[1]{0}', space=sflag, size = 0x4, scoped, tag = 'scoped memory for tpu_custom_call.1']
    #allocation5 [shape = 'u8[131072]{0}', space=vmem, size = 0x20000, scoped, tag = 'input window, operand 1, single buffered']
    #allocation6 [shape = 's32[1]{0}', space=sflag, size = 0x4, scoped, tag = 'scoped memory for tpu_custom_call.1']
    #allocation7 [shape = 'u8[131072]{0}', space=vmem, size = 0x20000, scoped, tag = 'input window, operand 2, single buffered']
    #allocation8 [shape = 'u8[65536]{0}', space=vmem, size = 0x10000, scoped, tag = 'output window, operand 0, single buffered']
    #allocation9 [shape = 'u8[131072]{0}', space=vmem, size = 0x20000, scoped, tag = 'output window, operand 1, single buffered']
    #allocation10 [shape = 's32[1]{0}', space=sflag, size = 0x4, scoped, tag = 'scoped memory for tpu_custom_call.1']
    %10 = vsyncpa [#allocation3], 0
    %11 = vsyncpa [#allocation6], 0
    %12 = vsyncpa [#allocation4], 0
    %13 = vsyncpa [#allocation10], 0
    // Predicated region
    $region2: #{tpu_custom_call.1} parent=1 // pred_check
      _
    $region3: #{tpu_custom_call.1} parent=1 // pred_check_branch
      %15 = sbr.rel (0) target = $region5
    $region4: #{tpu_custom_call.1} parent=1 // pred_region
      %s17 = ssub.s32 2048, 2048
      %18 = vsyncadd [#allocation3], %s17
      %s19 = sshll.u32 [#allocation2], 4
      %s20 = int_to_ptr.vmem [resolvable:$true] %s19
      %25 = dma.hbm_to_vmem [thread:$0]  %s0, 2048, %s20, [#allocation3], 128, 128, 8
    $region5: #{tpu_custom_call.1} parent=1 // pred_fallthru
      _
    // Predicated region
    $region6: #{tpu_custom_call.1} parent=1 // pred_check
      _
    $region7: #{tpu_custom_call.1} parent=1 // pred_check_branch
      %27 = sbr.rel (0) target = $region9
    $region8: #{tpu_custom_call.1} parent=1 // pred_region
      %s29 = ssub.s32 4096, 4096
      %30 = vsyncadd [#allocation6], %s29
      %s31 = sshll.u32 [#allocation5], 4
      %s32 = int_to_ptr.vmem [resolvable:$true] %s31
      %37 = dma.hbm_to_vmem [thread:$0]  %s1, 4096, %s32, [#allocation6], 128, 128, 8
    $region9: #{tpu_custom_call.1} parent=1 // pred_fallthru
      _
    // Predicated region
    $region10: #{tpu_custom_call.1} parent=1 // pred_check
      _
    $region11: #{tpu_custom_call.1} parent=1 // pred_check_branch
      %39 = sbr.rel (0) target = $region13
    $region12: #{tpu_custom_call.1} parent=1 // pred_region
      %s41 = ssub.s32 4096, 4096
      %42 = vsyncadd [#allocation6], %s41
      %s43 = sshll.u32 [#allocation7], 4
      %s44 = int_to_ptr.vmem [resolvable:$true] %s43
      %49 = dma.hbm_to_vmem [thread:$0]  %s2, 4096, %s44, [#allocation6], 256, 256, 16
    $region13: #{tpu_custom_call.1} parent=1 // pred_fallthru
      _
    // Predicated region
    $region14: #{tpu_custom_call.1} parent=1 // pred_check
      _
    $region15: #{tpu_custom_call.1} parent=1 // pred_check_branch
      %51 = sbr.rel (0) target = $region17
    $region16: #{tpu_custom_call.1} parent=1 // pred_region
      %52 = dma.done [#allocation3], 2048
    $region17: #{tpu_custom_call.1} parent=1 // pred_fallthru
      _
    // Predicated region
    $region18: #{tpu_custom_call.1} parent=1 // pred_check
      _
    $region19: #{tpu_custom_call.1} parent=1 // pred_check_branch
      %54 = sbr.rel (0) target = $region21
    $region20: #{tpu_custom_call.1} parent=1 // pred_region
      %55 = dma.done [#allocation6], 4096
    $region21: #{tpu_custom_call.1} parent=1 // pred_fallthru
      _
    // Predicated region
    $region22: #{tpu_custom_call.1} parent=1 // pred_check
      _
    $region23: #{tpu_custom_call.1} parent=1 // pred_check_branch
      %57 = sbr.rel (0) target = $region25
    $region24: #{tpu_custom_call.1} parent=1 // pred_region
      %58 = dma.done [#allocation6], 4096
    $region25: #{tpu_custom_call.1} parent=1 // pred_fallthru
      _
    %v59 = vld [vmem:[#allocation2] sm:$0xff]
    %v60 = vld [vmem:[#allocation2 + $0x8] sm:$0xff]
    %v61 = vld [vmem:[#allocation2 + $0x10] sm:$0xff]
    %v62 = vld [vmem:[#allocation2 + $0x18] sm:$0xff]
    %v63 = vld [vmem:[#allocation2 + $0x20] sm:$0xff]
    %v64 = vld [vmem:[#allocation2 + $0x28] sm:$0xff]
    %v65 = vld [vmem:[#allocation2 + $0x30] sm:$0xff]
    %v66 = vld [vmem:[#allocation2 + $0x38] sm:$0xff]
    %v67 = vld [vmem:[#allocation2 + $0x40] sm:$0xff]
    %v68 = vld [vmem:[#allocation2 + $0x48] sm:$0xff]
    %v69 = vld [vmem:[#allocation2 + $0x50] sm:$0xff]
    %v70 = vld [vmem:[#allocation2 + $0x58] sm:$0xff]
    %v71 = vld [vmem:[#allocation2 + $0x60] sm:$0xff]
    %v72 = vld [vmem:[#allocation2 + $0x68] sm:$0xff]
    %v73 = vld [vmem:[#allocation2 + $0x70] sm:$0xff]
    %v74 = vld [vmem:[#allocation2 + $0x78] sm:$0xff]
    %v75 = vld [vmem:[#allocation5] sm:$0xff]
    %v76 = vld [vmem:[#allocation5 + $0x8] sm:$0xff]
    %v77 = vld [vmem:[#allocation5 + $0x10] sm:$0xff]
    %v78 = vld [vmem:[#allocation5 + $0x18] sm:$0xff]
    %v79 = vld [vmem:[#allocation5 + $0x20] sm:$0xff]
    %v80 = vld [vmem:[#allocation5 + $0x28] sm:$0xff]
    %v81 = vld [vmem:[#allocation5 + $0x30] sm:$0xff]
    %v82 = vld [vmem:[#allocation5 + $0x38] sm:$0xff]
    %v83 = vld [vmem:[#allocation5 + $0x40] sm:$0xff]
    %v84 = vld [vmem:[#allocation5 + $0x48] sm:$0xff]
    %v85 = vld [vmem:[#allocation5 + $0x50] sm:$0xff]
    %v86 = vld [vmem:[#allocation5 + $0x58] sm:$0xff]
    %v87 = vld [vmem:[#allocation5 + $0x60] sm:$0xff]
    %v88 = vld [vmem:[#allocation5 + $0x68] sm:$0xff]
    %v89 = vld [vmem:[#allocation5 + $0x70] sm:$0xff]
    %v90 = vld [vmem:[#allocation5 + $0x78] sm:$0xff]
    %v91 = vld [vmem:[#allocation5 + $0x80] sm:$0xff]
    %v92 = vld [vmem:[#allocation5 + $0x88] sm:$0xff]
    %v93 = vld [vmem:[#allocation5 + $0x90] sm:$0xff]
    %v94 = vld [vmem:[#allocation5 + $0x98] sm:$0xff]
    %v95 = vld [vmem:[#allocation5 + $0xa0] sm:$0xff]
    %v96 = vld [vmem:[#allocation5 + $0xa8] sm:$0xff]
    %v97 = vld [vmem:[#allocation5 + $0xb0] sm:$0xff]
    %v98 = vld [vmem:[#allocation5 + $0xb8] sm:$0xff]
    %v99 = vld [vmem:[#allocation5 + $0xc0] sm:$0xff]
    %v100 = vld [vmem:[#allocation5 + $0xc8] sm:$0xff]
    %v101 = vld [vmem:[#allocation5 + $0xd0] sm:$0xff]
    %v102 = vld [vmem:[#allocation5 + $0xd8] sm:$0xff]
    %v103 = vld [vmem:[#allocation5 + $0xe0] sm:$0xff]
    %v104 = vld [vmem:[#allocation5 + $0xe8] sm:$0xff]
    %v105 = vld [vmem:[#allocation5 + $0xf0] sm:$0xff]
    %v106 = vld [vmem:[#allocation5 + $0xf8] sm:$0xff]
    %v107 = vld [vmem:[#allocation7] sm:$0xff]
    %v108 = vld [vmem:[#allocation7 + $0x8] sm:$0xff]
    %v109 = vld [vmem:[#allocation7 + $0x10] sm:$0xff]
    %v110 = vld [vmem:[#allocation7 + $0x18] sm:$0xff]
    %v111 = vld [vmem:[#allocation7 + $0x20] sm:$0xff]
    %v112 = vld [vmem:[#allocation7 + $0x28] sm:$0xff]
    %v113 = vld [vmem:[#allocation7 + $0x30] sm:$0xff]
    %v114 = vld [vmem:[#allocation7 + $0x38] sm:$0xff]
    %v115 = vld [vmem:[#allocation7 + $0x40] sm:$0xff]
    %v116 = vld [vmem:[#allocation7 + $0x48] sm:$0xff]
    %v117 = vld [vmem:[#allocation7 + $0x50] sm:$0xff]
    %v118 = vld [vmem:[#allocation7 + $0x58] sm:$0xff]
    %v119 = vld [vmem:[#allocation7 + $0x60] sm:$0xff]
    %v120 = vld [vmem:[#allocation7 + $0x68] sm:$0xff]
    %v121 = vld [vmem:[#allocation7 + $0x70] sm:$0xff]
    %v122 = vld [vmem:[#allocation7 + $0x78] sm:$0xff]
    %v123 = vld [vmem:[#allocation7 + $0x80] sm:$0xff]
    %v124 = vld [vmem:[#allocation7 + $0x88] sm:$0xff]
    %v125 = vld [vmem:[#allocation7 + $0x90] sm:$0xff]
    %v126 = vld [vmem:[#allocation7 + $0x98] sm:$0xff]
    %v127 = vld [vmem:[#allocation7 + $0xa0] sm:$0xff]
    %v128 = vld [vmem:[#allocation7 + $0xa8] sm:$0xff]
    %v129 = vld [vmem:[#allocation7 + $0xb0] sm:$0xff]
    %v130 = vld [vmem:[#allocation7 + $0xb8] sm:$0xff]
    %v131 = vld [vmem:[#allocation7 + $0xc0] sm:$0xff]
    %v132 = vld [vmem:[#allocation7 + $0xc8] sm:$0xff]
    %v133 = vld [vmem:[#allocation7 + $0xd0] sm:$0xff]
    %v134 = vld [vmem:[#allocation7 + $0xd8] sm:$0xff]
    %v135 = vld [vmem:[#allocation7 + $0xe0] sm:$0xff]
    %v136 = vld [vmem:[#allocation7 + $0xe8] sm:$0xff]
    %v137 = vld [vmem:[#allocation7 + $0xf0] sm:$0xff]
    %v138 = vld [vmem:[#allocation7 + $0xf8] sm:$0xff]
    %139 = vmatprep.subr.mxu0 %v138
    %140 = vmatpush1.msra.mxu0 %v137
    %141 = vmatprep.subr.mxu0 %v136
    %142 = vmatpush1.msra.mxu0 %v135
    %143 = vmatprep.subr.mxu0 %v134
    %144 = vmatpush1.msra.mxu0 %v133
    %145 = vmatprep.subr.mxu0 %v132
    %146 = vmatpush1.msra.mxu0 %v131
    %147 = vmatprep.subr.mxu0 %v130
    %148 = vmatpush1.msra.mxu0 %v129
    %149 = vmatprep.subr.mxu0 %v128
    %150 = vmatpush1.msra.mxu0 %v127
    %151 = vmatprep.subr.mxu0 %v126
    %152 = vmatpush1.msra.mxu0 %v125
    %153 = vmatprep.subr.mxu0 %v124
    %154 = vmatpush1.msra.mxu0 %v123
    %155 = vmatprep.subr.mxu0 %v122
    %156 = vmatpush1.msra.mxu0 %v121
    %157 = vmatprep.subr.mxu0 %v120
    %158 = vmatpush1.msra.mxu0 %v119
    %159 = vmatprep.subr.mxu0 %v118
    %160 = vmatpush1.msra.mxu0 %v117
    %161 = vmatprep.subr.mxu0 %v116
    %162 = vmatpush1.msra.mxu0 %v115
    %163 = vmatprep.subr.mxu0 %v114
    %164 = vmatpush1.msra.mxu0 %v113
    %165 = vmatprep.subr.mxu0 %v112
    %166 = vmatpush1.msra.mxu0 %v111
    %167 = vmatprep.subr.mxu0 %v110
    %168 = vmatpush1.msra.mxu0 %v109
    %169 = vmatprep.subr.mxu0 %v108
    %170 = vmatpush1.msra.mxu0 %v107
    %171 = vmatprep.subr.mxu0 0.0
    %172 = vmatpush2.msra.mxu0 0.0
    %173 = vmatprep.subr.mxu0 0.0
    %174 = vmatpush2.msra.mxu0 0.0
    %175 = vmatprep.subr.mxu0 0.0
    %176 = vmatpush2.msra.mxu0 0.0
    %177 = vmatprep.subr.mxu0 0.0
    %178 = vmatpush2.msra.mxu0 0.0
    %179 = vmatprep.subr.mxu0 0.0
    %180 = vmatpush2.msra.mxu0 0.0
    %181 = vmatprep.subr.mxu0 0.0
    %182 = vmatpush2.msra.mxu0 0.0
    %183 = vmatprep.subr.mxu0 0.0
    %184 = vmatpush2.msra.mxu0 0.0
    %185 = vmatprep.subr.mxu0 0.0
    %186 = vmatpush2.msra.mxu0 0.0
    %187 = vmatprep.subr.mxu0 0.0
    %188 = vmatpush2.msra.mxu0 0.0
    %189 = vmatprep.subr.mxu0 0.0
    %190 = vmatpush2.msra.mxu0 0.0
    %191 = vmatprep.subr.mxu0 0.0
    %192 = vmatpush2.msra.mxu0 0.0
    %193 = vmatprep.subr.mxu0 0.0
    %194 = vmatpush2.msra.mxu0 0.0
    %195 = vmatprep.subr.mxu0 0.0
    %196 = vmatpush2.msra.mxu0 0.0
    %197 = vmatprep.subr.mxu0 0.0
    %198 = vmatpush2.msra.mxu0 0.0
    %199 = vmatprep.subr.mxu0 0.0
    %200 = vmatpush2.msra.mxu0 0.0
    %201 = vmatprep.subr.mxu0 0.0
    %202 = vmatpush2.msra.mxu0 0.0
    %203 = vmatprep.mubr.f32.mxu0 0.0
    %204 = vmatmul.mubr.f32.gmra.mxu0 %v59
    %v205 = vpop.f32.mrf.mxu0
    %v206 = vadd.f32 0.0, %v205
    %v207 = vpop.f32.mrf.mxu0
    %v208 = vadd.f32 0.0, %v207
    %209 = vmatprep.mubr.f32.mxu0 0.0
    %210 = vmatmul.mubr.f32.gmra.mxu0 %v60
    %v211 = vpop.f32.mrf.mxu0
    %v212 = vadd.f32 0.0, %v211
    %v213 = vpop.f32.mrf.mxu0
    %v214 = vadd.f32 0.0, %v213
    %215 = vmatprep.mubr.f32.mxu0 0.0
    %216 = vmatmul.mubr.f32.gmra.mxu0 %v61
    %v217 = vpop.f32.mrf.mxu0
    %v218 = vadd.f32 0.0, %v217
    %v219 = vpop.f32.mrf.mxu0
    %v220 = vadd.f32 0.0, %v219
    %221 = vmatprep.mubr.f32.mxu0 0.0
    %222 = vmatmul.mubr.f32.gmra.mxu0 %v62
    %v223 = vpop.f32.mrf.mxu0
    %v224 = vadd.f32 0.0, %v223
    %v225 = vpop.f32.mrf.mxu0
    %v226 = vadd.f32 0.0, %v225
    %227 = vmatprep.mubr.f32.mxu0 0.0
    %228 = vmatmul.mubr.f32.gmra.mxu0 %v63
    %v229 = vpop.f32.mrf.mxu0
    %v230 = vadd.f32 0.0, %v229
    %v231 = vpop.f32.mrf.mxu0
    %v232 = vadd.f32 0.0, %v231
    %233 = vmatprep.mubr.f32.mxu0 0.0
    %234 = vmatmul.mubr.f32.gmra.mxu0 %v64
    %v235 = vpop.f32.mrf.mxu0
    %v236 = vadd.f32 0.0, %v235
    %v237 = vpop.f32.mrf.mxu0
    %v238 = vadd.f32 0.0, %v237
    %239 = vmatprep.mubr.f32.mxu0 0.0
    %240 = vmatmul.mubr.f32.gmra.mxu0 %v65
    %v241 = vpop.f32.mrf.mxu0
    %v242 = vadd.f32 0.0, %v241
    %v243 = vpop.f32.mrf.mxu0
    %v244 = vadd.f32 0.0, %v243
    %245 = vmatprep.mubr.f32.mxu0 0.0
    %246 = vmatmul.mubr.f32.gmra.mxu0 %v66
    %v247 = vpop.f32.mrf.mxu0
    %v248 = vadd.f32 0.0, %v247
    %v249 = vpop.f32.mrf.mxu0
    %v250 = vadd.f32 0.0, %v249
    %251 = vmatprep.mubr.f32.mxu0 0.0
    %252 = vmatmul.mubr.f32.gmra.mxu0 %v67
    %v253 = vpop.f32.mrf.mxu0
    %v254 = vadd.f32 0.0, %v253
    %v255 = vpop.f32.mrf.mxu0
    %v256 = vadd.f32 0.0, %v255
    %257 = vmatprep.mubr.f32.mxu0 0.0
    %258 = vmatmul.mubr.f32.gmra.mxu0 %v68
    %v259 = vpop.f32.mrf.mxu0
    %v260 = vadd.f32 0.0, %v259
    %v261 = vpop.f32.mrf.mxu0
    %v262 = vadd.f32 0.0, %v261
    %263 = vmatprep.mubr.f32.mxu0 0.0
    %264 = vmatmul.mubr.f32.gmra.mxu0 %v69
    %v265 = vpop.f32.mrf.mxu0
    %v266 = vadd.f32 0.0, %v265
    %v267 = vpop.f32.mrf.mxu0
    %v268 = vadd.f32 0.0, %v267
    %269 = vmatprep.mubr.f32.mxu0 0.0
    %270 = vmatmul.mubr.f32.gmra.mxu0 %v70
    %v271 = vpop.f32.mrf.mxu0
    %v272 = vadd.f32 0.0, %v271
    %v273 = vpop.f32.mrf.mxu0
    %v274 = vadd.f32 0.0, %v273
    %275 = vmatprep.mubr.f32.mxu0 0.0
    %276 = vmatmul.mubr.f32.gmra.mxu0 %v71
    %v277 = vpop.f32.mrf.mxu0
    %v278 = vadd.f32 0.0, %v277
    %v279 = vpop.f32.mrf.mxu0
    %v280 = vadd.f32 0.0, %v279
    %281 = vmatprep.mubr.f32.mxu0 0.0
    %282 = vmatmul.mubr.f32.gmra.mxu0 %v72
    %v283 = vpop.f32.mrf.mxu0
    %v284 = vadd.f32 0.0, %v283
    %v285 = vpop.f32.mrf.mxu0
    %v286 = vadd.f32 0.0, %v285
    %287 = vmatprep.mubr.f32.mxu0 0.0
    %288 = vmatmul.mubr.f32.gmra.mxu0 %v73
    %v289 = vpop.f32.mrf.mxu0
    %v290 = vadd.f32 0.0, %v289
    %v291 = vpop.f32.mrf.mxu0
    %v292 = vadd.f32 0.0, %v291
    %293 = vmatprep.mubr.f32.mxu0 0.0
    %294 = vmatmul.mubr.f32.gmra.mxu0 %v74
    %v295 = vpop.f32.mrf.mxu0
    %v296 = vadd.f32 0.0, %v295
    %v297 = vpop.f32.mrf.mxu0
    %v298 = vadd.f32 0.0, %v297
    %299 = vdwg.mxu0
    %v300 = vmul.f32 %v206, 0.1
    %v301 = vmul.f32 %v208, 0.1
    %v302 = vmul.f32 %v212, 0.1
    %v303 = vmul.f32 %v214, 0.1
    %v304 = vmul.f32 %v218, 0.1
    %v305 = vmul.f32 %v220, 0.1
    %v306 = vmul.f32 %v224, 0.1
    %v307 = vmul.f32 %v226, 0.1
    %v308 = vmul.f32 %v230, 0.1
    %v309 = vmul.f32 %v232, 0.1
    %v310 = vmul.f32 %v236, 0.1
    %v311 = vmul.f32 %v238, 0.1
    %v312 = vmul.f32 %v242, 0.1
    %v313 = vmul.f32 %v244, 0.1
    %v314 = vmul.f32 %v248, 0.1
    %v315 = vmul.f32 %v250, 0.1
    %v316 = vmul.f32 %v254, 0.1
    %v317 = vmul.f32 %v256, 0.1
    %v318 = vmul.f32 %v260, 0.1
    %v319 = vmul.f32 %v262, 0.1
    %v320 = vmul.f32 %v266, 0.1
    %v321 = vmul.f32 %v268, 0.1
    %v322 = vmul.f32 %v272, 0.1
    %v323 = vmul.f32 %v274, 0.1
    %v324 = vmul.f32 %v278, 0.1
    %v325 = vmul.f32 %v280, 0.1
    %v326 = vmul.f32 %v284, 0.1
    %v327 = vmul.f32 %v286, 0.1
    %v328 = vmul.f32 %v290, 0.1
    %v329 = vmul.f32 %v292, 0.1
    %v330 = vmul.f32 %v296, 0.1
    %v331 = vmul.f32 %v298, 0.1
    %v332 = vsub.f32 %v300, 0.01
    %v333 = vsub.f32 %v301, 0.01
    %v334 = vsub.f32 %v302, 0.01
    %v335 = vsub.f32 %v303, 0.01
    %v336 = vsub.f32 %v304, 0.01
    %v337 = vsub.f32 %v305, 0.01
    %v338 = vsub.f32 %v306, 0.01
    %v339 = vsub.f32 %v307, 0.01
    %v340 = vsub.f32 %v308, 0.01
    %v341 = vsub.f32 %v309, 0.01
    %v342 = vsub.f32 %v310, 0.01
    %v343 = vsub.f32 %v311, 0.01
    %v344 = vsub.f32 %v312, 0.01
    %v345 = vsub.f32 %v313, 0.01
    %v346 = vsub.f32 %v314, 0.01
    %v347 = vsub.f32 %v315, 0.01
    %v348 = vsub.f32 %v316, 0.01
    %v349 = vsub.f32 %v317, 0.01
    %v350 = vsub.f32 %v318, 0.01
    %v351 = vsub.f32 %v319, 0.01
    %v352 = vsub.f32 %v320, 0.01
    %v353 = vsub.f32 %v321, 0.01
    %v354 = vsub.f32 %v322, 0.01
    %v355 = vsub.f32 %v323, 0.01
    %v356 = vsub.f32 %v324, 0.01
    %v357 = vsub.f32 %v325, 0.01
    %v358 = vsub.f32 %v326, 0.01
    %v359 = vsub.f32 %v327, 0.01
    %v360 = vsub.f32 %v328, 0.01
    %v361 = vsub.f32 %v329, 0.01
    %v362 = vsub.f32 %v330, 0.01
    %v363 = vsub.f32 %v331, 0.01
    %v364 = vmax.f32 %v332, 0.0
    %v365 = vmax.f32 %v333, 0.0
    %v366 = vmax.f32 %v334, 0.0
    %v367 = vmax.f32 %v335, 0.0
    %v368 = vmax.f32 %v336, 0.0
    %v369 = vmax.f32 %v337, 0.0
    %v370 = vmax.f32 %v338, 0.0
    %v371 = vmax.f32 %v339, 0.0
    %v372 = vmax.f32 %v340, 0.0
    %v373 = vmax.f32 %v341, 0.0
    %v374 = vmax.f32 %v342, 0.0
    %v375 = vmax.f32 %v343, 0.0
    %v376 = vmax.f32 %v344, 0.0
    %v377 = vmax.f32 %v345, 0.0
    %v378 = vmax.f32 %v346, 0.0
    %v379 = vmax.f32 %v347, 0.0
    %v380 = vmax.f32 %v348, 0.0
    %v381 = vmax.f32 %v349, 0.0
    %v382 = vmax.f32 %v350, 0.0
    %v383 = vmax.f32 %v351, 0.0
    %v384 = vmax.f32 %v352, 0.0
    %v385 = vmax.f32 %v353, 0.0
    %v386 = vmax.f32 %v354, 0.0
    %v387 = vmax.f32 %v355, 0.0
    %v388 = vmax.f32 %v356, 0.0
    %v389 = vmax.f32 %v357, 0.0
    %v390 = vmax.f32 %v358, 0.0
    %v391 = vmax.f32 %v359, 0.0
    %v392 = vmax.f32 %v360, 0.0
    %v393 = vmax.f32 %v361, 0.0
    %v394 = vmax.f32 %v362, 0.0
    %v395 = vmax.f32 %v363, 0.0
    %396 = vmatprep.subr.mxu0 0.0
    %397 = vmatpush1.msra.mxu0 %v90
    %398 = vmatprep.subr.mxu0 0.0
    %399 = vmatpush1.msra.mxu0 %v89
    %400 = vmatprep.subr.mxu0 0.0
    %401 = vmatpush1.msra.mxu0 %v88
    %402 = vmatprep.subr.mxu0 0.0
    %403 = vmatpush1.msra.mxu0 %v87
    %404 = vmatprep.subr.mxu0 0.0
    %405 = vmatpush1.msra.mxu0 %v86
    %406 = vmatprep.subr.mxu0 0.0
    %407 = vmatpush1.msra.mxu0 %v85
    %408 = vmatprep.subr.mxu0 0.0
    %409 = vmatpush1.msra.mxu0 %v84
    %410 = vmatprep.subr.mxu0 0.0
    %411 = vmatpush1.msra.mxu0 %v83
    %412 = vmatprep.subr.mxu0 0.0
    %413 = vmatpush1.msra.mxu0 %v82
    %414 = vmatprep.subr.mxu0 0.0
    %415 = vmatpush1.msra.mxu0 %v81
    %416 = vmatprep.subr.mxu0 0.0
    %417 = vmatpush1.msra.mxu0 %v80
    %418 = vmatprep.subr.mxu0 0.0
    %419 = vmatpush1.msra.mxu0 %v79
    %420 = vmatprep.subr.mxu0 0.0
    %421 = vmatpush1.msra.mxu0 %v78
    %422 = vmatprep.subr.mxu0 0.0
    %423 = vmatpush1.msra.mxu0 %v77
    %424 = vmatprep.subr.mxu0 0.0
    %425 = vmatpush1.msra.mxu0 %v76
    %426 = vmatprep.subr.mxu0 0.0
    %427 = vmatpush1.msra.mxu0 %v75
    %428 = vmatprep.subr.mxu0 0.0
    %429 = vmatpush2.msra.mxu0 %v106
    %430 = vmatprep.subr.mxu0 0.0
    %431 = vmatpush2.msra.mxu0 %v105
    %432 = vmatprep.subr.mxu0 0.0
    %433 = vmatpush2.msra.mxu0 %v104
    %434 = vmatprep.subr.mxu0 0.0
    %435 = vmatpush2.msra.mxu0 %v103
    %436 = vmatprep.subr.mxu0 0.0
    %437 = vmatpush2.msra.mxu0 %v102
    %438 = vmatprep.subr.mxu0 0.0
    %439 = vmatpush2.msra.mxu0 %v101
    %440 = vmatprep.subr.mxu0 0.0
    %441 = vmatpush2.msra.mxu0 %v100
    %442 = vmatprep.subr.mxu0 0.0
    %443 = vmatpush2.msra.mxu0 %v99
    %444 = vmatprep.subr.mxu0 0.0
    %445 = vmatpush2.msra.mxu0 %v98
    %446 = vmatprep.subr.mxu0 0.0
    %447 = vmatpush2.msra.mxu0 %v97
    %448 = vmatprep.subr.mxu0 0.0
    %449 = vmatpush2.msra.mxu0 %v96
    %450 = vmatprep.subr.mxu0 0.0
    %451 = vmatpush2.msra.mxu0 %v95
    %452 = vmatprep.subr.mxu0 0.0
    %453 = vmatpush2.msra.mxu0 %v94
    %454 = vmatprep.subr.mxu0 0.0
    %455 = vmatpush2.msra.mxu0 %v93
    %456 = vmatprep.subr.mxu0 0.0
    %457 = vmatpush2.msra.mxu0 %v92
    %458 = vmatprep.subr.mxu0 0.0
    %459 = vmatpush2.msra.mxu0 %v91
    %460 = vmatprep.mubr.f32.mxu0 %v365
    %461 = vmatmul.mubr.f32.gmra.mxu0 %v364
    %v462 = vpop.f32.mrf.mxu0
    %v463 = vadd.f32 0.0, %v462
    %v464 = vpop.f32.mrf.mxu0
    %465 = vmatprep.mubr.f32.mxu0 %v367
    %466 = vmatmul.mubr.f32.gmra.mxu0 %v366
    %v467 = vpop.f32.mrf.mxu0
    %v468 = vadd.f32 0.0, %v467
    %v469 = vpop.f32.mrf.mxu0
    %470 = vmatprep.mubr.f32.mxu0 %v369
    %471 = vmatmul.mubr.f32.gmra.mxu0 %v368
    %v472 = vpop.f32.mrf.mxu0
    %v473 = vadd.f32 0.0, %v472
    %v474 = vpop.f32.mrf.mxu0
    %475 = vmatprep.mubr.f32.mxu0 %v371
    %476 = vmatmul.mubr.f32.gmra.mxu0 %v370
    %v477 = vpop.f32.mrf.mxu0
    %v478 = vadd.f32 0.0, %v477
    %v479 = vpop.f32.mrf.mxu0
    %480 = vmatprep.mubr.f32.mxu0 %v373
    %481 = vmatmul.mubr.f32.gmra.mxu0 %v372
    %v482 = vpop.f32.mrf.mxu0
    %v483 = vadd.f32 0.0, %v482
    %v484 = vpop.f32.mrf.mxu0
    %485 = vmatprep.mubr.f32.mxu0 %v375
    %486 = vmatmul.mubr.f32.gmra.mxu0 %v374
    %v487 = vpop.f32.mrf.mxu0
    %v488 = vadd.f32 0.0, %v487
    %v489 = vpop.f32.mrf.mxu0
    %490 = vmatprep.mubr.f32.mxu0 %v377
    %491 = vmatmul.mubr.f32.gmra.mxu0 %v376
    %v492 = vpop.f32.mrf.mxu0
    %v493 = vadd.f32 0.0, %v492
    %v494 = vpop.f32.mrf.mxu0
    %495 = vmatprep.mubr.f32.mxu0 %v379
    %496 = vmatmul.mubr.f32.gmra.mxu0 %v378
    %v497 = vpop.f32.mrf.mxu0
    %v498 = vadd.f32 0.0, %v497
    %v499 = vpop.f32.mrf.mxu0
    %500 = vmatprep.mubr.f32.mxu0 %v381
    %501 = vmatmul.mubr.f32.gmra.mxu0 %v380
    %v502 = vpop.f32.mrf.mxu0
    %v503 = vadd.f32 0.0, %v502
    %v504 = vpop.f32.mrf.mxu0
    %505 = vmatprep.mubr.f32.mxu0 %v383
    %506 = vmatmul.mubr.f32.gmra.mxu0 %v382
    %v507 = vpop.f32.mrf.mxu0
    %v508 = vadd.f32 0.0, %v507
    %v509 = vpop.f32.mrf.mxu0
    %510 = vmatprep.mubr.f32.mxu0 %v385
    %511 = vmatmul.mubr.f32.gmra.mxu0 %v384
    %v512 = vpop.f32.mrf.mxu0
    %v513 = vadd.f32 0.0, %v512
    %v514 = vpop.f32.mrf.mxu0
    %515 = vmatprep.mubr.f32.mxu0 %v387
    %516 = vmatmul.mubr.f32.gmra.mxu0 %v386
    %v517 = vpop.f32.mrf.mxu0
    %v518 = vadd.f32 0.0, %v517
    %v519 = vpop.f32.mrf.mxu0
    %520 = vmatprep.mubr.f32.mxu0 %v389
    %521 = vmatmul.mubr.f32.gmra.mxu0 %v388
    %v522 = vpop.f32.mrf.mxu0
    %v523 = vadd.f32 0.0, %v522
    %v524 = vpop.f32.mrf.mxu0
    %525 = vmatprep.mubr.f32.mxu0 %v391
    %526 = vmatmul.mubr.f32.gmra.mxu0 %v390
    %v527 = vpop.f32.mrf.mxu0
    %v528 = vadd.f32 0.0, %v527
    %v529 = vpop.f32.mrf.mxu0
    %530 = vmatprep.mubr.f32.mxu0 %v393
    %531 = vmatmul.mubr.f32.gmra.mxu0 %v392
    %v532 = vpop.f32.mrf.mxu0
    %v533 = vadd.f32 0.0, %v532
    %v534 = vpop.f32.mrf.mxu0
    %535 = vmatprep.mubr.f32.mxu0 %v395
    %536 = vmatmul.mubr.f32.gmra.mxu0 %v394
    %v537 = vpop.f32.mrf.mxu0
    %v538 = vadd.f32 0.0, %v537
    %v539 = vpop.f32.mrf.mxu0
    %540 = vdwg.mxu0
    %v541 = vsub.f32 %v59, %v463
    %v542 = vsub.f32 %v60, %v468
    %v543 = vsub.f32 %v61, %v473
    %v544 = vsub.f32 %v62, %v478
    %v545 = vsub.f32 %v63, %v483
    %v546 = vsub.f32 %v64, %v488
    %v547 = vsub.f32 %v65, %v493
    %v548 = vsub.f32 %v66, %v498
    %v549 = vsub.f32 %v67, %v503
    %v550 = vsub.f32 %v68, %v508
    %v551 = vsub.f32 %v69, %v513
    %v552 = vsub.f32 %v70, %v518
    %v553 = vsub.f32 %v71, %v523
    %v554 = vsub.f32 %v72, %v528
    %v555 = vsub.f32 %v73, %v533
    %v556 = vsub.f32 %v74, %v538
    %557 = vmatprep.subr.mxu0 %v138
    %558 = vmatpush1.msra.mxu0 %v137
    %559 = vmatprep.subr.mxu0 %v136
    %560 = vmatpush1.msra.mxu0 %v135
    %561 = vmatprep.subr.mxu0 %v134
    %562 = vmatpush1.msra.mxu0 %v133
    %563 = vmatprep.subr.mxu0 %v132
    %564 = vmatpush1.msra.mxu0 %v131
    %565 = vmatprep.subr.mxu0 %v130
    %566 = vmatpush1.msra.mxu0 %v129
    %567 = vmatprep.subr.mxu0 %v128
    %568 = vmatpush1.msra.mxu0 %v127
    %569 = vmatprep.subr.mxu0 %v126
    %570 = vmatpush1.msra.mxu0 %v125
    %571 = vmatprep.subr.mxu0 %v124
    %572 = vmatpush1.msra.mxu0 %v123
    %573 = vmatprep.subr.mxu0 %v122
    %574 = vmatpush1.msra.mxu0 %v121
    %575 = vmatprep.subr.mxu0 %v120
    %576 = vmatpush1.msra.mxu0 %v119
    %577 = vmatprep.subr.mxu0 %v118
    %578 = vmatpush1.msra.mxu0 %v117
    %579 = vmatprep.subr.mxu0 %v116
    %580 = vmatpush1.msra.mxu0 %v115
    %581 = vmatprep.subr.mxu0 %v114
    %582 = vmatpush1.msra.mxu0 %v113
    %583 = vmatprep.subr.mxu0 %v112
    %584 = vmatpush1.msra.mxu0 %v111
    %585 = vmatprep.subr.mxu0 %v110
    %586 = vmatpush1.msra.mxu0 %v109
    %587 = vmatprep.subr.mxu0 %v108
    %588 = vmatpush1.msra.mxu0 %v107
    %589 = vmatprep.subr.mxu0 0.0
    %590 = vmatpush2.msra.mxu0 0.0
    %591 = vmatprep.subr.mxu0 0.0
    %592 = vmatpush2.msra.mxu0 0.0
    %593 = vmatprep.subr.mxu0 0.0
    %594 = vmatpush2.msra.mxu0 0.0
    %595 = vmatprep.subr.mxu0 0.0
    %596 = vmatpush2.msra.mxu0 0.0
    %597 = vmatprep.subr.mxu0 0.0
    %598 = vmatpush2.msra.mxu0 0.0
    %599 = vmatprep.subr.mxu0 0.0
    %600 = vmatpush2.msra.mxu0 0.0
    %601 = vmatprep.subr.mxu0 0.0
    %602 = vmatpush2.msra.mxu0 0.0
    %603 = vmatprep.subr.mxu0 0.0
    %604 = vmatpush2.msra.mxu0 0.0
    %605 = vmatprep.subr.mxu0 0.0
    %606 = vmatpush2.msra.mxu0 0.0
    %607 = vmatprep.subr.mxu0 0.0
    %608 = vmatpush2.msra.mxu0 0.0
    %609 = vmatprep.subr.mxu0 0.0
    %610 = vmatpush2.msra.mxu0 0.0
    %611 = vmatprep.subr.mxu0 0.0
    %612 = vmatpush2.msra.mxu0 0.0
    %613 = vmatprep.subr.mxu0 0.0
    %614 = vmatpush2.msra.mxu0 0.0
    %615 = vmatprep.subr.mxu0 0.0
    %616 = vmatpush2.msra.mxu0 0.0
    %617 = vmatprep.subr.mxu0 0.0
    %618 = vmatpush2.msra.mxu0 0.0
    %619 = vmatprep.subr.mxu0 0.0
    %620 = vmatpush2.msra.mxu0 0.0
    %621 = vmatprep.mubr.f32.mxu0 0.0
    %622 = vmatmul.mubr.f32.gmra.mxu0 %v541
    %v623 = vpop.f32.mrf.mxu0
    %v624 = vadd.f32 0.0, %v623
    %v625 = vpop.f32.mrf.mxu0
    %v626 = vadd.f32 0.0, %v625
    %627 = vmatprep.mubr.f32.mxu0 0.0
    %628 = vmatmul.mubr.f32.gmra.mxu0 %v542
    %v629 = vpop.f32.mrf.mxu0
    %v630 = vadd.f32 0.0, %v629
    %v631 = vpop.f32.mrf.mxu0
    %v632 = vadd.f32 0.0, %v631
    %633 = vmatprep.mubr.f32.mxu0 0.0
    %634 = vmatmul.mubr.f32.gmra.mxu0 %v543
    %v635 = vpop.f32.mrf.mxu0
    %v636 = vadd.f32 0.0, %v635
    %v637 = vpop.f32.mrf.mxu0
    %v638 = vadd.f32 0.0, %v637
    %639 = vmatprep.mubr.f32.mxu0 0.0
    %640 = vmatmul.mubr.f32.gmra.mxu0 %v544
    %v641 = vpop.f32.mrf.mxu0
    %v642 = vadd.f32 0.0, %v641
    %v643 = vpop.f32.mrf.mxu0
    %v644 = vadd.f32 0.0, %v643
    %645 = vmatprep.mubr.f32.mxu0 0.0
    %646 = vmatmul.mubr.f32.gmra.mxu0 %v545
    %v647 = vpop.f32.mrf.mxu0
    %v648 = vadd.f32 0.0, %v647
    %v649 = vpop.f32.mrf.mxu0
    %v650 = vadd.f32 0.0, %v649
    %651 = vmatprep.mubr.f32.mxu0 0.0
    %652 = vmatmul.mubr.f32.gmra.mxu0 %v546
    %v653 = vpop.f32.mrf.mxu0
    %v654 = vadd.f32 0.0, %v653
    %v655 = vpop.f32.mrf.mxu0
    %v656 = vadd.f32 0.0, %v655
    %657 = vmatprep.mubr.f32.mxu0 0.0
    %658 = vmatmul.mubr.f32.gmra.mxu0 %v547
    %v659 = vpop.f32.mrf.mxu0
    %v660 = vadd.f32 0.0, %v659
    %v661 = vpop.f32.mrf.mxu0
    %v662 = vadd.f32 0.0, %v661
    %663 = vmatprep.mubr.f32.mxu0 0.0
    %664 = vmatmul.mubr.f32.gmra.mxu0 %v548
    %v665 = vpop.f32.mrf.mxu0
    %v666 = vadd.f32 0.0, %v665
    %v667 = vpop.f32.mrf.mxu0
    %v668 = vadd.f32 0.0, %v667
    %669 = vmatprep.mubr.f32.mxu0 0.0
    %670 = vmatmul.mubr.f32.gmra.mxu0 %v549
    %v671 = vpop.f32.mrf.mxu0
    %v672 = vadd.f32 0.0, %v671
    %v673 = vpop.f32.mrf.mxu0
    %v674 = vadd.f32 0.0, %v673
    %675 = vmatprep.mubr.f32.mxu0 0.0
    %676 = vmatmul.mubr.f32.gmra.mxu0 %v550
    %v677 = vpop.f32.mrf.mxu0
    %v678 = vadd.f32 0.0, %v677
    %v679 = vpop.f32.mrf.mxu0
    %v680 = vadd.f32 0.0, %v679
    %681 = vmatprep.mubr.f32.mxu0 0.0
    %682 = vmatmul.mubr.f32.gmra.mxu0 %v551
    %v683 = vpop.f32.mrf.mxu0
    %v684 = vadd.f32 0.0, %v683
    %v685 = vpop.f32.mrf.mxu0
    %v686 = vadd.f32 0.0, %v685
    %687 = vmatprep.mubr.f32.mxu0 0.0
    %688 = vmatmul.mubr.f32.gmra.mxu0 %v552
    %v689 = vpop.f32.mrf.mxu0
    %v690 = vadd.f32 0.0, %v689
    %v691 = vpop.f32.mrf.mxu0
    %v692 = vadd.f32 0.0, %v691
    %693 = vmatprep.mubr.f32.mxu0 0.0
    %694 = vmatmul.mubr.f32.gmra.mxu0 %v553
    %v695 = vpop.f32.mrf.mxu0
    %v696 = vadd.f32 0.0, %v695
    %v697 = vpop.f32.mrf.mxu0
    %v698 = vadd.f32 0.0, %v697
    %699 = vmatprep.mubr.f32.mxu0 0.0
    %700 = vmatmul.mubr.f32.gmra.mxu0 %v554
    %v701 = vpop.f32.mrf.mxu0
    %v702 = vadd.f32 0.0, %v701
    %v703 = vpop.f32.mrf.mxu0
    %v704 = vadd.f32 0.0, %v703
    %705 = vmatprep.mubr.f32.mxu0 0.0
    %706 = vmatmul.mubr.f32.gmra.mxu0 %v555
    %v707 = vpop.f32.mrf.mxu0
    %v708 = vadd.f32 0.0, %v707
    %v709 = vpop.f32.mrf.mxu0
    %v710 = vadd.f32 0.0, %v709
    %711 = vmatprep.mubr.f32.mxu0 0.0
    %712 = vmatmul.mubr.f32.gmra.mxu0 %v556
    %v713 = vpop.f32.mrf.mxu0
    %v714 = vadd.f32 0.0, %v713
    %v715 = vpop.f32.mrf.mxu0
    %v716 = vadd.f32 0.0, %v715
    %717 = vdwg.mxu0
    %v718 = vmul.f32 %v624, 0.1
    %v719 = vmul.f32 %v626, 0.1
    %v720 = vmul.f32 %v630, 0.1
    %v721 = vmul.f32 %v632, 0.1
    %v722 = vmul.f32 %v636, 0.1
    %v723 = vmul.f32 %v638, 0.1
    %v724 = vmul.f32 %v642, 0.1
    %v725 = vmul.f32 %v644, 0.1
    %v726 = vmul.f32 %v648, 0.1
    %v727 = vmul.f32 %v650, 0.1
    %v728 = vmul.f32 %v654, 0.1
    %v729 = vmul.f32 %v656, 0.1
    %v730 = vmul.f32 %v660, 0.1
    %v731 = vmul.f32 %v662, 0.1
    %v732 = vmul.f32 %v666, 0.1
    %v733 = vmul.f32 %v668, 0.1
    %v734 = vmul.f32 %v672, 0.1
    %v735 = vmul.f32 %v674, 0.1
    %v736 = vmul.f32 %v678, 0.1
    %v737 = vmul.f32 %v680, 0.1
    %v738 = vmul.f32 %v684, 0.1
    %v739 = vmul.f32 %v686, 0.1
    %v740 = vmul.f32 %v690, 0.1
    %v741 = vmul.f32 %v692, 0.1
    %v742 = vmul.f32 %v696, 0.1
    %v743 = vmul.f32 %v698, 0.1
    %v744 = vmul.f32 %v702, 0.1
    %v745 = vmul.f32 %v704, 0.1
    %v746 = vmul.f32 %v708, 0.1
    %v747 = vmul.f32 %v710, 0.1
    %v748 = vmul.f32 %v714, 0.1
    %v749 = vmul.f32 %v716, 0.1
    %v750 = vadd.f32 %v364, %v718
    %v751 = vadd.f32 %v365, %v719
    %v752 = vadd.f32 %v366, %v720
    %v753 = vadd.f32 %v367, %v721
    %v754 = vadd.f32 %v368, %v722
    %v755 = vadd.f32 %v369, %v723
    %v756 = vadd.f32 %v370, %v724
    %v757 = vadd.f32 %v371, %v725
    %v758 = vadd.f32 %v372, %v726
    %v759 = vadd.f32 %v373, %v727
    %v760 = vadd.f32 %v374, %v728
    %v761 = vadd.f32 %v375, %v729
    %v762 = vadd.f32 %v376, %v730
    %v763 = vadd.f32 %v377, %v731
    %v764 = vadd.f32 %v378, %v732
    %v765 = vadd.f32 %v379, %v733
    %v766 = vadd.f32 %v380, %v734
    %v767 = vadd.f32 %v381, %v735
    %v768 = vadd.f32 %v382, %v736
    %v769 = vadd.f32 %v383, %v737
    %v770 = vadd.f32 %v384, %v738
    %v771 = vadd.f32 %v385, %v739
    %v772 = vadd.f32 %v386, %v740
    %v773 = vadd.f32 %v387, %v741
    %v774 = vadd.f32 %v388, %v742
    %v775 = vadd.f32 %v389, %v743
    %v776 = vadd.f32 %v390, %v744
    %v777 = vadd.f32 %v391, %v745
    %v778 = vadd.f32 %v392, %v746
    %v779 = vadd.f32 %v393, %v747
    %v780 = vadd.f32 %v394, %v748
    %v781 = vadd.f32 %v395, %v749
    %v782 = vsub.f32 %v750, 0.01
    %v783 = vsub.f32 %v751, 0.01
    %v784 = vsub.f32 %v752, 0.01
    %v785 = vsub.f32 %v753, 0.01
    %v786 = vsub.f32 %v754, 0.01
    %v787 = vsub.f32 %v755, 0.01
    %v788 = vsub.f32 %v756, 0.01
    %v789 = vsub.f32 %v757, 0.01
    %v790 = vsub.f32 %v758, 0.01
    %v791 = vsub.f32 %v759, 0.01
    %v792 = vsub.f32 %v760, 0.01
    %v793 = vsub.f32 %v761, 0.01
    %v794 = vsub.f32 %v762, 0.01
    %v795 = vsub.f32 %v763, 0.01
    %v796 = vsub.f32 %v764, 0.01
    %v797 = vsub.f32 %v765, 0.01
    %v798 = vsub.f32 %v766, 0.01
    %v799 = vsub.f32 %v767, 0.01
    %v800 = vsub.f32 %v768, 0.01
    %v801 = vsub.f32 %v769, 0.01
    %v802 = vsub.f32 %v770, 0.01
    %v803 = vsub.f32 %v771, 0.01
    %v804 = vsub.f32 %v772, 0.01
    %v805 = vsub.f32 %v773, 0.01
    %v806 = vsub.f32 %v774, 0.01
    %v807 = vsub.f32 %v775, 0.01
    %v808 = vsub.f32 %v776, 0.01
    %v809 = vsub.f32 %v777, 0.01
    %v810 = vsub.f32 %v778, 0.01
    %v811 = vsub.f32 %v779, 0.01
    %v812 = vsub.f32 %v780, 0.01
    %v813 = vsub.f32 %v781, 0.01
    %v814 = vmax.f32 %v782, 0.0
    %v815 = vmax.f32 %v783, 0.0
    %v816 = vmax.f32 %v784, 0.0
    %v817 = vmax.f32 %v785, 0.0
    %v818 = vmax.f32 %v786, 0.0
    %v819 = vmax.f32 %v787, 0.0
    %v820 = vmax.f32 %v788, 0.0
    %v821 = vmax.f32 %v789, 0.0
    %v822 = vmax.f32 %v790, 0.0
    %v823 = vmax.f32 %v791, 0.0
    %v824 = vmax.f32 %v792, 0.0
    %v825 = vmax.f32 %v793, 0.0
    %v826 = vmax.f32 %v794, 0.0
    %v827 = vmax.f32 %v795, 0.0
    %v828 = vmax.f32 %v796, 0.0
    %v829 = vmax.f32 %v797, 0.0
    %v830 = vmax.f32 %v798, 0.0
    %v831 = vmax.f32 %v799, 0.0
    %v832 = vmax.f32 %v800, 0.0
    %v833 = vmax.f32 %v801, 0.0
    %v834 = vmax.f32 %v802, 0.0
    %v835 = vmax.f32 %v803, 0.0
    %v836 = vmax.f32 %v804, 0.0
    %v837 = vmax.f32 %v805, 0.0
    %v838 = vmax.f32 %v806, 0.0
    %v839 = vmax.f32 %v807, 0.0
    %v840 = vmax.f32 %v808, 0.0
    %v841 = vmax.f32 %v809, 0.0
    %v842 = vmax.f32 %v810, 0.0
    %v843 = vmax.f32 %v811, 0.0
    %v844 = vmax.f32 %v812, 0.0
    %v845 = vmax.f32 %v813, 0.0
    %846 = vmatprep.subr.mxu0 0.0
    %847 = vmatpush1.msra.mxu0 %v90
    %848 = vmatprep.subr.mxu0 0.0
    %849 = vmatpush1.msra.mxu0 %v89
    %850 = vmatprep.subr.mxu0 0.0
    %851 = vmatpush1.msra.mxu0 %v88
    %852 = vmatprep.subr.mxu0 0.0
    %853 = vmatpush1.msra.mxu0 %v87
    %854 = vmatprep.subr.mxu0 0.0
    %855 = vmatpush1.msra.mxu0 %v86
    %856 = vmatprep.subr.mxu0 0.0
    %857 = vmatpush1.msra.mxu0 %v85
    %858 = vmatprep.subr.mxu0 0.0
    %859 = vmatpush1.msra.mxu0 %v84
    %860 = vmatprep.subr.mxu0 0.0
    %861 = vmatpush1.msra.mxu0 %v83
    %862 = vmatprep.subr.mxu0 0.0
    %863 = vmatpush1.msra.mxu0 %v82
    %864 = vmatprep.subr.mxu0 0.0
    %865 = vmatpush1.msra.mxu0 %v81
    %866 = vmatprep.subr.mxu0 0.0
    %867 = vmatpush1.msra.mxu0 %v80
    %868 = vmatprep.subr.mxu0 0.0
    %869 = vmatpush1.msra.mxu0 %v79
    %870 = vmatprep.subr.mxu0 0.0
    %871 = vmatpush1.msra.mxu0 %v78
    %872 = vmatprep.subr.mxu0 0.0
    %873 = vmatpush1.msra.mxu0 %v77
    %874 = vmatprep.subr.mxu0 0.0
    %875 = vmatpush1.msra.mxu0 %v76
    %876 = vmatprep.subr.mxu0 0.0
    %877 = vmatpush1.msra.mxu0 %v75
    %878 = vmatprep.subr.mxu0 0.0
    %879 = vmatpush2.msra.mxu0 %v106
    %880 = vmatprep.subr.mxu0 0.0
    %881 = vmatpush2.msra.mxu0 %v105
    %882 = vmatprep.subr.mxu0 0.0
    %883 = vmatpush2.msra.mxu0 %v104
    %884 = vmatprep.subr.mxu0 0.0
    %885 = vmatpush2.msra.mxu0 %v103
    %886 = vmatprep.subr.mxu0 0.0
    %887 = vmatpush2.msra.mxu0 %v102
    %888 = vmatprep.subr.mxu0 0.0
    %889 = vmatpush2.msra.mxu0 %v101
    %890 = vmatprep.subr.mxu0 0.0
    %891 = vmatpush2.msra.mxu0 %v100
    %892 = vmatprep.subr.mxu0 0.0
    %893 = vmatpush2.msra.mxu0 %v99
    %894 = vmatprep.subr.mxu0 0.0
    %895 = vmatpush2.msra.mxu0 %v98
    %896 = vmatprep.subr.mxu0 0.0
    %897 = vmatpush2.msra.mxu0 %v97
    %898 = vmatprep.subr.mxu0 0.0
    %899 = vmatpush2.msra.mxu0 %v96
    %900 = vmatprep.subr.mxu0 0.0
    %901 = vmatpush2.msra.mxu0 %v95
    %902 = vmatprep.subr.mxu0 0.0
    %903 = vmatpush2.msra.mxu0 %v94
    %904 = vmatprep.subr.mxu0 0.0
    %905 = vmatpush2.msra.mxu0 %v93
    %906 = vmatprep.subr.mxu0 0.0
    %907 = vmatpush2.msra.mxu0 %v92
    %908 = vmatprep.subr.mxu0 0.0
    %909 = vmatpush2.msra.mxu0 %v91
    %910 = vmatprep.mubr.f32.mxu0 %v815
    %911 = vmatmul.mubr.f32.gmra.mxu0 %v814
    %v912 = vpop.f32.mrf.mxu0
    %v913 = vadd.f32 0.0, %v912
    %v914 = vpop.f32.mrf.mxu0
    %915 = vmatprep.mubr.f32.mxu0 %v817
    %916 = vmatmul.mubr.f32.gmra.mxu0 %v816
    %v917 = vpop.f32.mrf.mxu0
    %v918 = vadd.f32 0.0, %v917
    %v919 = vpop.f32.mrf.mxu0
    %920 = vmatprep.mubr.f32.mxu0 %v819
    %921 = vmatmul.mubr.f32.gmra.mxu0 %v818
    %v922 = vpop.f32.mrf.mxu0
    %v923 = vadd.f32 0.0, %v922
    %v924 = vpop.f32.mrf.mxu0
    %925 = vmatprep.mubr.f32.mxu0 %v821
    %926 = vmatmul.mubr.f32.gmra.mxu0 %v820
    %v927 = vpop.f32.mrf.mxu0
    %v928 = vadd.f32 0.0, %v927
    %v929 = vpop.f32.mrf.mxu0
    %930 = vmatprep.mubr.f32.mxu0 %v823
    %931 = vmatmul.mubr.f32.gmra.mxu0 %v822
    %v932 = vpop.f32.mrf.mxu0
    %v933 = vadd.f32 0.0, %v932
    %v934 = vpop.f32.mrf.mxu0
    %935 = vmatprep.mubr.f32.mxu0 %v825
    %936 = vmatmul.mubr.f32.gmra.mxu0 %v824
    %v937 = vpop.f32.mrf.mxu0
    %v938 = vadd.f32 0.0, %v937
    %v939 = vpop.f32.mrf.mxu0
    %940 = vmatprep.mubr.f32.mxu0 %v827
    %941 = vmatmul.mubr.f32.gmra.mxu0 %v826
    %v942 = vpop.f32.mrf.mxu0
    %v943 = vadd.f32 0.0, %v942
    %v944 = vpop.f32.mrf.mxu0
    %945 = vmatprep.mubr.f32.mxu0 %v829
    %946 = vmatmul.mubr.f32.gmra.mxu0 %v828
    %v947 = vpop.f32.mrf.mxu0
    %v948 = vadd.f32 0.0, %v947
    %v949 = vpop.f32.mrf.mxu0
    %950 = vmatprep.mubr.f32.mxu0 %v831
    %951 = vmatmul.mubr.f32.gmra.mxu0 %v830
    %v952 = vpop.f32.mrf.mxu0
    %v953 = vadd.f32 0.0, %v952
    %v954 = vpop.f32.mrf.mxu0
    %955 = vmatprep.mubr.f32.mxu0 %v833
    %956 = vmatmul.mubr.f32.gmra.mxu0 %v832
    %v957 = vpop.f32.mrf.mxu0
    %v958 = vadd.f32 0.0, %v957
    %v959 = vpop.f32.mrf.mxu0
    %960 = vmatprep.mubr.f32.mxu0 %v835
    %961 = vmatmul.mubr.f32.gmra.mxu0 %v834
    %v962 = vpop.f32.mrf.mxu0
    %v963 = vadd.f32 0.0, %v962
    %v964 = vpop.f32.mrf.mxu0
    %965 = vmatprep.mubr.f32.mxu0 %v837
    %966 = vmatmul.mubr.f32.gmra.mxu0 %v836
    %v967 = vpop.f32.mrf.mxu0
    %v968 = vadd.f32 0.0, %v967
    %v969 = vpop.f32.mrf.mxu0
    %970 = vmatprep.mubr.f32.mxu0 %v839
    %971 = vmatmul.mubr.f32.gmra.mxu0 %v838
    %v972 = vpop.f32.mrf.mxu0
    %v973 = vadd.f32 0.0, %v972
    %v974 = vpop.f32.mrf.mxu0
    %975 = vmatprep.mubr.f32.mxu0 %v841
    %976 = vmatmul.mubr.f32.gmra.mxu0 %v840
    %v977 = vpop.f32.mrf.mxu0
    %v978 = vadd.f32 0.0, %v977
    %v979 = vpop.f32.mrf.mxu0
    %980 = vmatprep.mubr.f32.mxu0 %v843
    %981 = vmatmul.mubr.f32.gmra.mxu0 %v842
    %v982 = vpop.f32.mrf.mxu0
    %v983 = vadd.f32 0.0, %v982
    %v984 = vpop.f32.mrf.mxu0
    %985 = vmatprep.mubr.f32.mxu0 %v845
    %986 = vmatmul.mubr.f32.gmra.mxu0 %v844
    %v987 = vpop.f32.mrf.mxu0
    %v988 = vadd.f32 0.0, %v987
    %v989 = vpop.f32.mrf.mxu0
    %990 = vdwg.mxu0
    %v991 = vsub.f32 %v814, %v364
    %v992 = vsub.f32 %v815, %v365
    %v993 = vsub.f32 %v816, %v366
    %v994 = vsub.f32 %v817, %v367
    %v995 = vsub.f32 %v818, %v368
    %v996 = vsub.f32 %v819, %v369
    %v997 = vsub.f32 %v820, %v370
    %v998 = vsub.f32 %v821, %v371
    %v999 = vsub.f32 %v822, %v372
    %v1000 = vsub.f32 %v823, %v373
    %v1001 = vsub.f32 %v824, %v374
    %v1002 = vsub.f32 %v825, %v375
    %v1003 = vsub.f32 %v826, %v376
    %v1004 = vsub.f32 %v827, %v377
    %v1005 = vsub.f32 %v828, %v378
    %v1006 = vsub.f32 %v829, %v379
    %v1007 = vsub.f32 %v830, %v380
    %v1008 = vsub.f32 %v831, %v381
    %v1009 = vsub.f32 %v832, %v382
    %v1010 = vsub.f32 %v833, %v383
    %v1011 = vsub.f32 %v834, %v384
    %v1012 = vsub.f32 %v835, %v385
    %v1013 = vsub.f32 %v836, %v386
    %v1014 = vsub.f32 %v837, %v387
    %v1015 = vsub.f32 %v838, %v388
    %v1016 = vsub.f32 %v839, %v389
    %v1017 = vsub.f32 %v840, %v390
    %v1018 = vsub.f32 %v841, %v391
    %v1019 = vsub.f32 %v842, %v392
    %v1020 = vsub.f32 %v843, %v393
    %v1021 = vsub.f32 %v844, %v394
    %v1022 = vsub.f32 %v845, %v395
    %v1023 = vmul.f32 %v991, 0.2817535
    %v1024 = vmul.f32 %v992, 0.2817535
    %v1025 = vmul.f32 %v993, 0.2817535
    %v1026 = vmul.f32 %v994, 0.2817535
    %v1027 = vmul.f32 %v995, 0.2817535
    %v1028 = vmul.f32 %v996, 0.2817535
    %v1029 = vmul.f32 %v997, 0.2817535
    %v1030 = vmul.f32 %v998, 0.2817535
    %v1031 = vmul.f32 %v999, 0.2817535
    %v1032 = vmul.f32 %v1000, 0.2817535
    %v1033 = vmul.f32 %v1001, 0.2817535
    %v1034 = vmul.f32 %v1002, 0.2817535
    %v1035 = vmul.f32 %v1003, 0.2817535
    %v1036 = vmul.f32 %v1004, 0.2817535
    %v1037 = vmul.f32 %v1005, 0.2817535
    %v1038 = vmul.f32 %v1006, 0.2817535
    %v1039 = vmul.f32 %v1007, 0.2817535
    %v1040 = vmul.f32 %v1008, 0.2817535
    %v1041 = vmul.f32 %v1009, 0.2817535
    %v1042 = vmul.f32 %v1010, 0.2817535
    %v1043 = vmul.f32 %v1011, 0.2817535
    %v1044 = vmul.f32 %v1012, 0.2817535
    %v1045 = vmul.f32 %v1013, 0.2817535
    %v1046 = vmul.f32 %v1014, 0.2817535
    %v1047 = vmul.f32 %v1015, 0.2817535
    %v1048 = vmul.f32 %v1016, 0.2817535
    %v1049 = vmul.f32 %v1017, 0.2817535
    %v1050 = vmul.f32 %v1018, 0.2817535
    %v1051 = vmul.f32 %v1019, 0.2817535
    %v1052 = vmul.f32 %v1020, 0.2817535
    %v1053 = vmul.f32 %v1021, 0.2817535
    %v1054 = vmul.f32 %v1022, 0.2817535
    %v1055 = vadd.f32 %v814, %v1023
    %v1056 = vadd.f32 %v815, %v1024
    %v1057 = vadd.f32 %v816, %v1025
    %v1058 = vadd.f32 %v817, %v1026
    %v1059 = vadd.f32 %v818, %v1027
    %v1060 = vadd.f32 %v819, %v1028
    %v1061 = vadd.f32 %v820, %v1029
    %v1062 = vadd.f32 %v821, %v1030
    %v1063 = vadd.f32 %v822, %v1031
    %v1064 = vadd.f32 %v823, %v1032
    %v1065 = vadd.f32 %v824, %v1033
    %v1066 = vadd.f32 %v825, %v1034
    %v1067 = vadd.f32 %v826, %v1035
    %v1068 = vadd.f32 %v827, %v1036
    %v1069 = vadd.f32 %v828, %v1037
    %v1070 = vadd.f32 %v829, %v1038
    %v1071 = vadd.f32 %v830, %v1039
    %v1072 = vadd.f32 %v831, %v1040
    %v1073 = vadd.f32 %v832, %v1041
    %v1074 = vadd.f32 %v833, %v1042
    %v1075 = vadd.f32 %v834, %v1043
    %v1076 = vadd.f32 %v835, %v1044
    %v1077 = vadd.f32 %v836, %v1045
    %v1078 = vadd.f32 %v837, %v1046
    %v1079 = vadd.f32 %v838, %v1047
    %v1080 = vadd.f32 %v839, %v1048
    %v1081 = vadd.f32 %v840, %v1049
    %v1082 = vadd.f32 %v841, %v1050
    %v1083 = vadd.f32 %v842, %v1051
    %v1084 = vadd.f32 %v843, %v1052
    %v1085 = vadd.f32 %v844, %v1053
    %v1086 = vadd.f32 %v845, %v1054
    %v1087 = vsub.f32 %v913, %v463
    %v1088 = vsub.f32 %v918, %v468
    %v1089 = vsub.f32 %v923, %v473
    %v1090 = vsub.f32 %v928, %v478
    %v1091 = vsub.f32 %v933, %v483
    %v1092 = vsub.f32 %v938, %v488
    %v1093 = vsub.f32 %v943, %v493
    %v1094 = vsub.f32 %v948, %v498
    %v1095 = vsub.f32 %v953, %v503
    %v1096 = vsub.f32 %v958, %v508
    %v1097 = vsub.f32 %v963, %v513
    %v1098 = vsub.f32 %v968, %v518
    %v1099 = vsub.f32 %v973, %v523
    %v1100 = vsub.f32 %v978, %v528
    %v1101 = vsub.f32 %v983, %v533
    %v1102 = vsub.f32 %v988, %v538
    %v1103 = vmul.f32 %v1087, 0.2817535
    %v1104 = vmul.f32 %v1088, 0.2817535
    %v1105 = vmul.f32 %v1089, 0.2817535
    %v1106 = vmul.f32 %v1090, 0.2817535
    %v1107 = vmul.f32 %v1091, 0.2817535
    %v1108 = vmul.f32 %v1092, 0.2817535
    %v1109 = vmul.f32 %v1093, 0.2817535
    %v1110 = vmul.f32 %v1094, 0.2817535
    %v1111 = vmul.f32 %v1095, 0.2817535
    %v1112 = vmul.f32 %v1096, 0.2817535
    %v1113 = vmul.f32 %v1097, 0.2817535
    %v1114 = vmul.f32 %v1098, 0.2817535
    %v1115 = vmul.f32 %v1099, 0.2817535
    %v1116 = vmul.f32 %v1100, 0.2817535
    %v1117 = vmul.f32 %v1101, 0.2817535
    %v1118 = vmul.f32 %v1102, 0.2817535
    %v1119 = vadd.f32 %v913, %v1103
    %v1120 = vadd.f32 %v918, %v1104
    %v1121 = vadd.f32 %v923, %v1105
    %v1122 = vadd.f32 %v928, %v1106
    %v1123 = vadd.f32 %v933, %v1107
    %v1124 = vadd.f32 %v938, %v1108
    %v1125 = vadd.f32 %v943, %v1109
    %v1126 = vadd.f32 %v948, %v1110
    %v1127 = vadd.f32 %v953, %v1111
    %v1128 = vadd.f32 %v958, %v1112
    %v1129 = vadd.f32 %v963, %v1113
    %v1130 = vadd.f32 %v968, %v1114
    %v1131 = vadd.f32 %v973, %v1115
    %v1132 = vadd.f32 %v978, %v1116
    %v1133 = vadd.f32 %v983, %v1117
    %v1134 = vadd.f32 %v988, %v1118
    %v1135 = vsub.f32 %v59, %v1119
    %v1136 = vsub.f32 %v60, %v1120
    %v1137 = vsub.f32 %v61, %v1121
    %v1138 = vsub.f32 %v62, %v1122
    %v1139 = vsub.f32 %v63, %v1123
    %v1140 = vsub.f32 %v64, %v1124
    %v1141 = vsub.f32 %v65, %v1125
    %v1142 = vsub.f32 %v66, %v1126
    %v1143 = vsub.f32 %v67, %v1127
    %v1144 = vsub.f32 %v68, %v1128
    %v1145 = vsub.f32 %v69, %v1129
    %v1146 = vsub.f32 %v70, %v1130
    %v1147 = vsub.f32 %v71, %v1131
    %v1148 = vsub.f32 %v72, %v1132
    %v1149 = vsub.f32 %v73, %v1133
    %v1150 = vsub.f32 %v74, %v1134
    %1151 = vmatprep.subr.mxu0 %v138
    %1152 = vmatpush1.msra.mxu0 %v137
    %1153 = vmatprep.subr.mxu0 %v136
    %1154 = vmatpush1.msra.mxu0 %v135
    %1155 = vmatprep.subr.mxu0 %v134
    %1156 = vmatpush1.msra.mxu0 %v133
    %1157 = vmatprep.subr.mxu0 %v132
    %1158 = vmatpush1.msra.mxu0 %v131
    %1159 = vmatprep.subr.mxu0 %v130
    %1160 = vmatpush1.msra.mxu0 %v129
    %1161 = vmatprep.subr.mxu0 %v128
    %1162 = vmatpush1.msra.mxu0 %v127
    %1163 = vmatprep.subr.mxu0 %v126
    %1164 = vmatpush1.msra.mxu0 %v125
    %1165 = vmatprep.subr.mxu0 %v124
    %1166 = vmatpush1.msra.mxu0 %v123
    %1167 = vmatprep.subr.mxu0 %v122
    %1168 = vmatpush1.msra.mxu0 %v121
    %1169 = vmatprep.subr.mxu0 %v120
    %1170 = vmatpush1.msra.mxu0 %v119
    %1171 = vmatprep.subr.mxu0 %v118
    %1172 = vmatpush1.msra.mxu0 %v117
    %1173 = vmatprep.subr.mxu0 %v116
    %1174 = vmatpush1.msra.mxu0 %v115
    %1175 = vmatprep.subr.mxu0 %v114
    %1176 = vmatpush1.msra.mxu0 %v113
    %1177 = vmatprep.subr.mxu0 %v112
    %1178 = vmatpush1.msra.mxu0 %v111
    %1179 = vmatprep.subr.mxu0 %v110
    %1180 = vmatpush1.msra.mxu0 %v109
    %1181 = vmatprep.subr.mxu0 %v108
    %1182 = vmatpush1.msra.mxu0 %v107
    %1183 = vmatprep.subr.mxu0 0.0
    %1184 = vmatpush2.msra.mxu0 0.0
    %1185 = vmatprep.subr.mxu0 0.0
    %1186 = vmatpush2.msra.mxu0 0.0
    %1187 = vmatprep.subr.mxu0 0.0
    %1188 = vmatpush2.msra.mxu0 0.0
    %1189 = vmatprep.subr.mxu0 0.0
    %1190 = vmatpush2.msra.mxu0 0.0
    %1191 = vmatprep.subr.mxu0 0.0
    %1192 = vmatpush2.msra.mxu0 0.0
    %1193 = vmatprep.subr.mxu0 0.0
    %1194 = vmatpush2.msra.mxu0 0.0
    %1195 = vmatprep.subr.mxu0 0.0
    %1196 = vmatpush2.msra.mxu0 0.0
    %1197 = vmatprep.subr.mxu0 0.0
    %1198 = vmatpush2.msra.mxu0 0.0
    %1199 = vmatprep.subr.mxu0 0.0
    %1200 = vmatpush2.msra.mxu0 0.0
    %1201 = vmatprep.subr.mxu0 0.0
    %1202 = vmatpush2.msra.mxu0 0.0
    %1203 = vmatprep.subr.mxu0 0.0
    %1204 = vmatpush2.msra.mxu0 0.0
    %1205 = vmatprep.subr.mxu0 0.0
    %1206 = vmatpush2.msra.mxu0 0.0
    %1207 = vmatprep.subr.mxu0 0.0
    %1208 = vmatpush2.msra.mxu0 0.0
    %1209 = vmatprep.subr.mxu0 0.0
    %1210 = vmatpush2.msra.mxu0 0.0
    %1211 = vmatprep.subr.mxu0 0.0
    %1212 = vmatpush2.msra.mxu0 0.0
    %1213 = vmatprep.subr.mxu0 0.0
    %1214 = vmatpush2.msra.mxu0 0.0
    %1215 = vmatprep.mubr.f32.mxu0 0.0
    %1216 = vmatmul.mubr.f32.gmra.mxu0 %v1135
    %v1217 = vpop.f32.mrf.mxu0
    %v1218 = vadd.f32 0.0, %v1217
    %v1219 = vpop.f32.mrf.mxu0
    %v1220 = vadd.f32 0.0, %v1219
    %1221 = vmatprep.mubr.f32.mxu0 0.0
    %1222 = vmatmul.mubr.f32.gmra.mxu0 %v1136
    %v1223 = vpop.f32.mrf.mxu0
    %v1224 = vadd.f32 0.0, %v1223
    %v1225 = vpop.f32.mrf.mxu0
    %v1226 = vadd.f32 0.0, %v1225
    %1227 = vmatprep.mubr.f32.mxu0 0.0
    %1228 = vmatmul.mubr.f32.gmra.mxu0 %v1137
    %v1229 = vpop.f32.mrf.mxu0
    %v1230 = vadd.f32 0.0, %v1229
    %v1231 = vpop.f32.mrf.mxu0
    %v1232 = vadd.f32 0.0, %v1231
    %1233 = vmatprep.mubr.f32.mxu0 0.0
    %1234 = vmatmul.mubr.f32.gmra.mxu0 %v1138
    %v1235 = vpop.f32.mrf.mxu0
    %v1236 = vadd.f32 0.0, %v1235
    %v1237 = vpop.f32.mrf.mxu0
    %v1238 = vadd.f32 0.0, %v1237
    %1239 = vmatprep.mubr.f32.mxu0 0.0
    %1240 = vmatmul.mubr.f32.gmra.mxu0 %v1139
    %v1241 = vpop.f32.mrf.mxu0
    %v1242 = vadd.f32 0.0, %v1241
    %v1243 = vpop.f32.mrf.mxu0
    %v1244 = vadd.f32 0.0, %v1243
    %1245 = vmatprep.mubr.f32.mxu0 0.0
    %1246 = vmatmul.mubr.f32.gmra.mxu0 %v1140
    %v1247 = vpop.f32.mrf.mxu0
    %v1248 = vadd.f32 0.0, %v1247
    %v1249 = vpop.f32.mrf.mxu0
    %v1250 = vadd.f32 0.0, %v1249
    %1251 = vmatprep.mubr.f32.mxu0 0.0
    %1252 = vmatmul.mubr.f32.gmra.mxu0 %v1141
    %v1253 = vpop.f32.mrf.mxu0
    %v1254 = vadd.f32 0.0, %v1253
    %v1255 = vpop.f32.mrf.mxu0
    %v1256 = vadd.f32 0.0, %v1255
    %1257 = vmatprep.mubr.f32.mxu0 0.0
    %1258 = vmatmul.mubr.f32.gmra.mxu0 %v1142
    %v1259 = vpop.f32.mrf.mxu0
    %v1260 = vadd.f32 0.0, %v1259
    %v1261 = vpop.f32.mrf.mxu0
    %v1262 = vadd.f32 0.0, %v1261
    %1263 = vmatprep.mubr.f32.mxu0 0.0
    %1264 = vmatmul.mubr.f32.gmra.mxu0 %v1143
    %v1265 = vpop.f32.mrf.mxu0
    %v1266 = vadd.f32 0.0, %v1265
    %v1267 = vpop.f32.mrf.mxu0
    %v1268 = vadd.f32 0.0, %v1267
    %1269 = vmatprep.mubr.f32.mxu0 0.0
    %1270 = vmatmul.mubr.f32.gmra.mxu0 %v1144
    %v1271 = vpop.f32.mrf.mxu0
    %v1272 = vadd.f32 0.0, %v1271
    %v1273 = vpop.f32.mrf.mxu0
    %v1274 = vadd.f32 0.0, %v1273
    %1275 = vmatprep.mubr.f32.mxu0 0.0
    %1276 = vmatmul.mubr.f32.gmra.mxu0 %v1145
    %v1277 = vpop.f32.mrf.mxu0
    %v1278 = vadd.f32 0.0, %v1277
    %v1279 = vpop.f32.mrf.mxu0
    %v1280 = vadd.f32 0.0, %v1279
    %1281 = vmatprep.mubr.f32.mxu0 0.0
    %1282 = vmatmul.mubr.f32.gmra.mxu0 %v1146
    %v1283 = vpop.f32.mrf.mxu0
    %v1284 = vadd.f32 0.0, %v1283
    %v1285 = vpop.f32.mrf.mxu0
    %v1286 = vadd.f32 0.0, %v1285
    %1287 = vmatprep.mubr.f32.mxu0 0.0
    %1288 = vmatmul.mubr.f32.gmra.mxu0 %v1147
    %v1289 = vpop.f32.mrf.mxu0
    %v1290 = vadd.f32 0.0, %v1289
    %v1291 = vpop.f32.mrf.mxu0
    %v1292 = vadd.f32 0.0, %v1291
    %1293 = vmatprep.mubr.f32.mxu0 0.0
    %1294 = vmatmul.mubr.f32.gmra.mxu0 %v1148
    %v1295 = vpop.f32.mrf.mxu0
    %v1296 = vadd.f32 0.0, %v1295
    %v1297 = vpop.f32.mrf.mxu0
    %v1298 = vadd.f32 0.0, %v1297
    %1299 = vmatprep.mubr.f32.mxu0 0.0
    %1300 = vmatmul.mubr.f32.gmra.mxu0 %v1149
    %v1301 = vpop.f32.mrf.mxu0
    %v1302 = vadd.f32 0.0, %v1301
    %v1303 = vpop.f32.mrf.mxu0
    %v1304 = vadd.f32 0.0, %v1303
    %1305 = vmatprep.mubr.f32.mxu0 0.0
    %1306 = vmatmul.mubr.f32.gmra.mxu0 %v1150
    %v1307 = vpop.f32.mrf.mxu0
    %v1308 = vadd.f32 0.0, %v1307
    %v1309 = vpop.f32.mrf.mxu0
    %v1310 = vadd.f32 0.0, %v1309
    %1311 = vdwg.mxu0
    %v1312 = vmul.f32 %v1218, 0.1
    %v1313 = vmul.f32 %v1220, 0.1
    %v1314 = vmul.f32 %v1224, 0.1
    %v1315 = vmul.f32 %v1226, 0.1
    %v1316 = vmul.f32 %v1230, 0.1
    %v1317 = vmul.f32 %v1232, 0.1
    %v1318 = vmul.f32 %v1236, 0.1
    %v1319 = vmul.f32 %v1238, 0.1
    %v1320 = vmul.f32 %v1242, 0.1
    %v1321 = vmul.f32 %v1244, 0.1
    %v1322 = vmul.f32 %v1248, 0.1
    %v1323 = vmul.f32 %v1250, 0.1
    %v1324 = vmul.f32 %v1254, 0.1
    %v1325 = vmul.f32 %v1256, 0.1
    %v1326 = vmul.f32 %v1260, 0.1
    %v1327 = vmul.f32 %v1262, 0.1
    %v1328 = vmul.f32 %v1266, 0.1
    %v1329 = vmul.f32 %v1268, 0.1
    %v1330 = vmul.f32 %v1272, 0.1
    %v1331 = vmul.f32 %v1274, 0.1
    %v1332 = vmul.f32 %v1278, 0.1
    %v1333 = vmul.f32 %v1280, 0.1
    %v1334 = vmul.f32 %v1284, 0.1
    %v1335 = vmul.f32 %v1286, 0.1
    %v1336 = vmul.f32 %v1290, 0.1
    %v1337 = vmul.f32 %v1292, 0.1
    %v1338 = vmul.f32 %v1296, 0.1
    %v1339 = vmul.f32 %v1298, 0.1
    %v1340 = vmul.f32 %v1302, 0.1
    %v1341 = vmul.f32 %v1304, 0.1
    %v1342 = vmul.f32 %v1308, 0.1
    %v1343 = vmul.f32 %v1310, 0.1
    %v1344 = vadd.f32 %v1055, %v1312
    %v1345 = vadd.f32 %v1056, %v1313
    %v1346 = vadd.f32 %v1057, %v1314
    %v1347 = vadd.f32 %v1058, %v1315
    %v1348 = vadd.f32 %v1059, %v1316
    %v1349 = vadd.f32 %v1060, %v1317
    %v1350 = vadd.f32 %v1061, %v1318
    %v1351 = vadd.f32 %v1062, %v1319
    %v1352 = vadd.f32 %v1063, %v1320
    %v1353 = vadd.f32 %v1064, %v1321
    %v1354 = vadd.f32 %v1065, %v1322
    %v1355 = vadd.f32 %v1066, %v1323
    %v1356 = vadd.f32 %v1067, %v1324
    %v1357 = vadd.f32 %v1068, %v1325
    %v1358 = vadd.f32 %v1069, %v1326
    %v1359 = vadd.f32 %v1070, %v1327
    %v1360 = vadd.f32 %v1071, %v1328
    %v1361 = vadd.f32 %v1072, %v1329
    %v1362 = vadd.f32 %v1073, %v1330
    %v1363 = vadd.f32 %v1074, %v1331
    %v1364 = vadd.f32 %v1075, %v1332
    %v1365 = vadd.f32 %v1076, %v1333
    %v1366 = vadd.f32 %v1077, %v1334
    %v1367 = vadd.f32 %v1078, %v1335
    %v1368 = vadd.f32 %v1079, %v1336
    %v1369 = vadd.f32 %v1080, %v1337
    %v1370 = vadd.f32 %v1081, %v1338
    %v1371 = vadd.f32 %v1082, %v1339
    %v1372 = vadd.f32 %v1083, %v1340
    %v1373 = vadd.f32 %v1084, %v1341
    %v1374 = vadd.f32 %v1085, %v1342
    %v1375 = vadd.f32 %v1086, %v1343
    %v1376 = vsub.f32 %v1344, 0.01
    %v1377 = vsub.f32 %v1345, 0.01
    %v1378 = vsub.f32 %v1346, 0.01
    %v1379 = vsub.f32 %v1347, 0.01
    %v1380 = vsub.f32 %v1348, 0.01
    %v1381 = vsub.f32 %v1349, 0.01
    %v1382 = vsub.f32 %v1350, 0.01
    %v1383 = vsub.f32 %v1351, 0.01
    %v1384 = vsub.f32 %v1352, 0.01
    %v1385 = vsub.f32 %v1353, 0.01
    %v1386 = vsub.f32 %v1354, 0.01
    %v1387 = vsub.f32 %v1355, 0.01
    %v1388 = vsub.f32 %v1356, 0.01
    %v1389 = vsub.f32 %v1357, 0.01
    %v1390 = vsub.f32 %v1358, 0.01
    %v1391 = vsub.f32 %v1359, 0.01
    %v1392 = vsub.f32 %v1360, 0.01
    %v1393 = vsub.f32 %v1361, 0.01
    %v1394 = vsub.f32 %v1362, 0.01
    %v1395 = vsub.f32 %v1363, 0.01
    %v1396 = vsub.f32 %v1364, 0.01
    %v1397 = vsub.f32 %v1365, 0.01
    %v1398 = vsub.f32 %v1366, 0.01
    %v1399 = vsub.f32 %v1367, 0.01
    %v1400 = vsub.f32 %v1368, 0.01
    %v1401 = vsub.f32 %v1369, 0.01
    %v1402 = vsub.f32 %v1370, 0.01
    %v1403 = vsub.f32 %v1371, 0.01
    %v1404 = vsub.f32 %v1372, 0.01
    %v1405 = vsub.f32 %v1373, 0.01
    %v1406 = vsub.f32 %v1374, 0.01
    %v1407 = vsub.f32 %v1375, 0.01
    %v1408 = vmax.f32 %v1376, 0.0
    %v1409 = vmax.f32 %v1377, 0.0
    %v1410 = vmax.f32 %v1378, 0.0
    %v1411 = vmax.f32 %v1379, 0.0
    %v1412 = vmax.f32 %v1380, 0.0
    %v1413 = vmax.f32 %v1381, 0.0
    %v1414 = vmax.f32 %v1382, 0.0
    %v1415 = vmax.f32 %v1383, 0.0
    %v1416 = vmax.f32 %v1384, 0.0
    %v1417 = vmax.f32 %v1385, 0.0
    %v1418 = vmax.f32 %v1386, 0.0
    %v1419 = vmax.f32 %v1387, 0.0
    %v1420 = vmax.f32 %v1388, 0.0
    %v1421 = vmax.f32 %v1389, 0.0
    %v1422 = vmax.f32 %v1390, 0.0
    %v1423 = vmax.f32 %v1391, 0.0
    %v1424 = vmax.f32 %v1392, 0.0
    %v1425 = vmax.f32 %v1393, 0.0
    %v1426 = vmax.f32 %v1394, 0.0
    %v1427 = vmax.f32 %v1395, 0.0
    %v1428 = vmax.f32 %v1396, 0.0
    %v1429 = vmax.f32 %v1397, 0.0
    %v1430 = vmax.f32 %v1398, 0.0
    %v1431 = vmax.f32 %v1399, 0.0
    %v1432 = vmax.f32 %v1400, 0.0
    %v1433 = vmax.f32 %v1401, 0.0
    %v1434 = vmax.f32 %v1402, 0.0
    %v1435 = vmax.f32 %v1403, 0.0
    %v1436 = vmax.f32 %v1404, 0.0
    %v1437 = vmax.f32 %v1405, 0.0
    %v1438 = vmax.f32 %v1406, 0.0
    %v1439 = vmax.f32 %v1407, 0.0
    %1440 = vmatprep.subr.mxu0 0.0
    %1441 = vmatpush1.msra.mxu0 %v90
    %1442 = vmatprep.subr.mxu0 0.0
    %1443 = vmatpush1.msra.mxu0 %v89
    %1444 = vmatprep.subr.mxu0 0.0
    %1445 = vmatpush1.msra.mxu0 %v88
    %1446 = vmatprep.subr.mxu0 0.0
    %1447 = vmatpush1.msra.mxu0 %v87
    %1448 = vmatprep.subr.mxu0 0.0
    %1449 = vmatpush1.msra.mxu0 %v86
    %1450 = vmatprep.subr.mxu0 0.0
    %1451 = vmatpush1.msra.mxu0 %v85
    %1452 = vmatprep.subr.mxu0 0.0
    %1453 = vmatpush1.msra.mxu0 %v84
    %1454 = vmatprep.subr.mxu0 0.0
    %1455 = vmatpush1.msra.mxu0 %v83
    %1456 = vmatprep.subr.mxu0 0.0
    %1457 = vmatpush1.msra.mxu0 %v82
    %1458 = vmatprep.subr.mxu0 0.0
    %1459 = vmatpush1.msra.mxu0 %v81
    %1460 = vmatprep.subr.mxu0 0.0
    %1461 = vmatpush1.msra.mxu0 %v80
    %1462 = vmatprep.subr.mxu0 0.0
    %1463 = vmatpush1.msra.mxu0 %v79
    %1464 = vmatprep.subr.mxu0 0.0
    %1465 = vmatpush1.msra.mxu0 %v78
    %1466 = vmatprep.subr.mxu0 0.0
    %1467 = vmatpush1.msra.mxu0 %v77
    %1468 = vmatprep.subr.mxu0 0.0
    %1469 = vmatpush1.msra.mxu0 %v76
    %1470 = vmatprep.subr.mxu0 0.0
    %1471 = vmatpush1.msra.mxu0 %v75
    %1472 = vmatprep.subr.mxu0 0.0
    %1473 = vmatpush2.msra.mxu0 %v106
    %1474 = vmatprep.subr.mxu0 0.0
    %1475 = vmatpush2.msra.mxu0 %v105
    %1476 = vmatprep.subr.mxu0 0.0
    %1477 = vmatpush2.msra.mxu0 %v104
    %1478 = vmatprep.subr.mxu0 0.0
    %1479 = vmatpush2.msra.mxu0 %v103
    %1480 = vmatprep.subr.mxu0 0.0
    %1481 = vmatpush2.msra.mxu0 %v102
    %1482 = vmatprep.subr.mxu0 0.0
    %1483 = vmatpush2.msra.mxu0 %v101
    %1484 = vmatprep.subr.mxu0 0.0
    %1485 = vmatpush2.msra.mxu0 %v100
    %1486 = vmatprep.subr.mxu0 0.0
    %1487 = vmatpush2.msra.mxu0 %v99
    %1488 = vmatprep.subr.mxu0 0.0
    %1489 = vmatpush2.msra.mxu0 %v98
    %1490 = vmatprep.subr.mxu0 0.0
    %1491 = vmatpush2.msra.mxu0 %v97
    %1492 = vmatprep.subr.mxu0 0.0
    %1493 = vmatpush2.msra.mxu0 %v96
    %1494 = vmatprep.subr.mxu0 0.0
    %1495 = vmatpush2.msra.mxu0 %v95
    %1496 = vmatprep.subr.mxu0 0.0
    %1497 = vmatpush2.msra.mxu0 %v94
    %1498 = vmatprep.subr.mxu0 0.0
    %1499 = vmatpush2.msra.mxu0 %v93
    %1500 = vmatprep.subr.mxu0 0.0
    %1501 = vmatpush2.msra.mxu0 %v92
    %1502 = vmatprep.subr.mxu0 0.0
    %1503 = vmatpush2.msra.mxu0 %v91
    %1504 = vmatprep.mubr.f32.mxu0 %v1409
    %1505 = vmatmul.mubr.f32.gmra.mxu0 %v1408
    %v1506 = vpop.f32.mrf.mxu0
    %v1507 = vadd.f32 0.0, %v1506
    %v1508 = vpop.f32.mrf.mxu0
    %1509 = vmatprep.mubr.f32.mxu0 %v1411
    %1510 = vmatmul.mubr.f32.gmra.mxu0 %v1410
    %v1511 = vpop.f32.mrf.mxu0
    %v1512 = vadd.f32 0.0, %v1511
    %v1513 = vpop.f32.mrf.mxu0
    %1514 = vmatprep.mubr.f32.mxu0 %v1413
    %1515 = vmatmul.mubr.f32.gmra.mxu0 %v1412
    %v1516 = vpop.f32.mrf.mxu0
    %v1517 = vadd.f32 0.0, %v1516
    %v1518 = vpop.f32.mrf.mxu0
    %1519 = vmatprep.mubr.f32.mxu0 %v1415
    %1520 = vmatmul.mubr.f32.gmra.mxu0 %v1414
    %v1521 = vpop.f32.mrf.mxu0
    %v1522 = vadd.f32 0.0, %v1521
    %v1523 = vpop.f32.mrf.mxu0
    %1524 = vmatprep.mubr.f32.mxu0 %v1417
    %1525 = vmatmul.mubr.f32.gmra.mxu0 %v1416
    %v1526 = vpop.f32.mrf.mxu0
    %v1527 = vadd.f32 0.0, %v1526
    %v1528 = vpop.f32.mrf.mxu0
    %1529 = vmatprep.mubr.f32.mxu0 %v1419
    %1530 = vmatmul.mubr.f32.gmra.mxu0 %v1418
    %v1531 = vpop.f32.mrf.mxu0
    %v1532 = vadd.f32 0.0, %v1531
    %v1533 = vpop.f32.mrf.mxu0
    %1534 = vmatprep.mubr.f32.mxu0 %v1421
    %1535 = vmatmul.mubr.f32.gmra.mxu0 %v1420
    %v1536 = vpop.f32.mrf.mxu0
    %v1537 = vadd.f32 0.0, %v1536
    %v1538 = vpop.f32.mrf.mxu0
    %1539 = vmatprep.mubr.f32.mxu0 %v1423
    %1540 = vmatmul.mubr.f32.gmra.mxu0 %v1422
    %v1541 = vpop.f32.mrf.mxu0
    %v1542 = vadd.f32 0.0, %v1541
    %v1543 = vpop.f32.mrf.mxu0
    %1544 = vmatprep.mubr.f32.mxu0 %v1425
    %1545 = vmatmul.mubr.f32.gmra.mxu0 %v1424
    %v1546 = vpop.f32.mrf.mxu0
    %v1547 = vadd.f32 0.0, %v1546
    %v1548 = vpop.f32.mrf.mxu0
    %1549 = vmatprep.mubr.f32.mxu0 %v1427
    %1550 = vmatmul.mubr.f32.gmra.mxu0 %v1426
    %v1551 = vpop.f32.mrf.mxu0
    %v1552 = vadd.f32 0.0, %v1551
    %v1553 = vpop.f32.mrf.mxu0
    %1554 = vmatprep.mubr.f32.mxu0 %v1429
    %1555 = vmatmul.mubr.f32.gmra.mxu0 %v1428
    %v1556 = vpop.f32.mrf.mxu0
    %v1557 = vadd.f32 0.0, %v1556
    %v1558 = vpop.f32.mrf.mxu0
    %1559 = vmatprep.mubr.f32.mxu0 %v1431
    %1560 = vmatmul.mubr.f32.gmra.mxu0 %v1430
    %v1561 = vpop.f32.mrf.mxu0
    %v1562 = vadd.f32 0.0, %v1561
    %v1563 = vpop.f32.mrf.mxu0
    %1564 = vmatprep.mubr.f32.mxu0 %v1433
    %1565 = vmatmul.mubr.f32.gmra.mxu0 %v1432
    %v1566 = vpop.f32.mrf.mxu0
    %v1567 = vadd.f32 0.0, %v1566
    %v1568 = vpop.f32.mrf.mxu0
    %1569 = vmatprep.mubr.f32.mxu0 %v1435
    %1570 = vmatmul.mubr.f32.gmra.mxu0 %v1434
    %v1571 = vpop.f32.mrf.mxu0
    %v1572 = vadd.f32 0.0, %v1571
    %v1573 = vpop.f32.mrf.mxu0
    %1574 = vmatprep.mubr.f32.mxu0 %v1437
    %1575 = vmatmul.mubr.f32.gmra.mxu0 %v1436
    %v1576 = vpop.f32.mrf.mxu0
    %v1577 = vadd.f32 0.0, %v1576
    %v1578 = vpop.f32.mrf.mxu0
    %1579 = vmatprep.mubr.f32.mxu0 %v1439
    %1580 = vmatmul.mubr.f32.gmra.mxu0 %v1438
    %v1581 = vpop.f32.mrf.mxu0
    %v1582 = vadd.f32 0.0, %v1581
    %v1583 = vpop.f32.mrf.mxu0
    %1584 = vdwg.mxu0
    %v1585 = vsub.f32 %v1408, %v814
    %v1586 = vsub.f32 %v1409, %v815
    %v1587 = vsub.f32 %v1410, %v816
    %v1588 = vsub.f32 %v1411, %v817
    %v1589 = vsub.f32 %v1412, %v818
    %v1590 = vsub.f32 %v1413, %v819
    %v1591 = vsub.f32 %v1414, %v820
    %v1592 = vsub.f32 %v1415, %v821
    %v1593 = vsub.f32 %v1416, %v822
    %v1594 = vsub.f32 %v1417, %v823
    %v1595 = vsub.f32 %v1418, %v824
    %v1596 = vsub.f32 %v1419, %v825
    %v1597 = vsub.f32 %v1420, %v826
    %v1598 = vsub.f32 %v1421, %v827
    %v1599 = vsub.f32 %v1422, %v828
    %v1600 = vsub.f32 %v1423, %v829
    %v1601 = vsub.f32 %v1424, %v830
    %v1602 = vsub.f32 %v1425, %v831
    %v1603 = vsub.f32 %v1426, %v832
    %v1604 = vsub.f32 %v1427, %v833
    %v1605 = vsub.f32 %v1428, %v834
    %v1606 = vsub.f32 %v1429, %v835
    %v1607 = vsub.f32 %v1430, %v836
    %v1608 = vsub.f32 %v1431, %v837
    %v1609 = vsub.f32 %v1432, %v838
    %v1610 = vsub.f32 %v1433, %v839
    %v1611 = vsub.f32 %v1434, %v840
    %v1612 = vsub.f32 %v1435, %v841
    %v1613 = vsub.f32 %v1436, %v842
    %v1614 = vsub.f32 %v1437, %v843
    %v1615 = vsub.f32 %v1438, %v844
    %v1616 = vsub.f32 %v1439, %v845
    %v1617 = vmul.f32 %v1585, 0.43404278
    %v1618 = vmul.f32 %v1586, 0.43404278
    %v1619 = vmul.f32 %v1587, 0.43404278
    %v1620 = vmul.f32 %v1588, 0.43404278
    %v1621 = vmul.f32 %v1589, 0.43404278
    %v1622 = vmul.f32 %v1590, 0.43404278
    %v1623 = vmul.f32 %v1591, 0.43404278
    %v1624 = vmul.f32 %v1592, 0.43404278
    %v1625 = vmul.f32 %v1593, 0.43404278
    %v1626 = vmul.f32 %v1594, 0.43404278
    %v1627 = vmul.f32 %v1595, 0.43404278
    %v1628 = vmul.f32 %v1596, 0.43404278
    %v1629 = vmul.f32 %v1597, 0.43404278
    %v1630 = vmul.f32 %v1598, 0.43404278
    %v1631 = vmul.f32 %v1599, 0.43404278
    %v1632 = vmul.f32 %v1600, 0.43404278
    %v1633 = vmul.f32 %v1601, 0.43404278
    %v1634 = vmul.f32 %v1602, 0.43404278
    %v1635 = vmul.f32 %v1603, 0.43404278
    %v1636 = vmul.f32 %v1604, 0.43404278
    %v1637 = vmul.f32 %v1605, 0.43404278
    %v1638 = vmul.f32 %v1606, 0.43404278
    %v1639 = vmul.f32 %v1607, 0.43404278
    %v1640 = vmul.f32 %v1608, 0.43404278
    %v1641 = vmul.f32 %v1609, 0.43404278
    %v1642 = vmul.f32 %v1610, 0.43404278
    %v1643 = vmul.f32 %v1611, 0.43404278
    %v1644 = vmul.f32 %v1612, 0.43404278
    %v1645 = vmul.f32 %v1613, 0.43404278
    %v1646 = vmul.f32 %v1614, 0.43404278
    %v1647 = vmul.f32 %v1615, 0.43404278
    %v1648 = vmul.f32 %v1616, 0.43404278
    %v1649 = vadd.f32 %v1408, %v1617
    %v1650 = vadd.f32 %v1409, %v1618
    %v1651 = vadd.f32 %v1410, %v1619
    %v1652 = vadd.f32 %v1411, %v1620
    %v1653 = vadd.f32 %v1412, %v1621
    %v1654 = vadd.f32 %v1413, %v1622
    %v1655 = vadd.f32 %v1414, %v1623
    %v1656 = vadd.f32 %v1415, %v1624
    %v1657 = vadd.f32 %v1416, %v1625
    %v1658 = vadd.f32 %v1417, %v1626
    %v1659 = vadd.f32 %v1418, %v1627
    %v1660 = vadd.f32 %v1419, %v1628
    %v1661 = vadd.f32 %v1420, %v1629
    %v1662 = vadd.f32 %v1421, %v1630
    %v1663 = vadd.f32 %v1422, %v1631
    %v1664 = vadd.f32 %v1423, %v1632
    %v1665 = vadd.f32 %v1424, %v1633
    %v1666 = vadd.f32 %v1425, %v1634
    %v1667 = vadd.f32 %v1426, %v1635
    %v1668 = vadd.f32 %v1427, %v1636
    %v1669 = vadd.f32 %v1428, %v1637
    %v1670 = vadd.f32 %v1429, %v1638
    %v1671 = vadd.f32 %v1430, %v1639
    %v1672 = vadd.f32 %v1431, %v1640
    %v1673 = vadd.f32 %v1432, %v1641
    %v1674 = vadd.f32 %v1433, %v1642
    %v1675 = vadd.f32 %v1434, %v1643
    %v1676 = vadd.f32 %v1435, %v1644
    %v1677 = vadd.f32 %v1436, %v1645
    %v1678 = vadd.f32 %v1437, %v1646
    %v1679 = vadd.f32 %v1438, %v1647
    %v1680 = vadd.f32 %v1439, %v1648
    %v1681 = vsub.f32 %v1507, %v913
    %v1682 = vsub.f32 %v1512, %v918
    %v1683 = vsub.f32 %v1517, %v923
    %v1684 = vsub.f32 %v1522, %v928
    %v1685 = vsub.f32 %v1527, %v933
    %v1686 = vsub.f32 %v1532, %v938
    %v1687 = vsub.f32 %v1537, %v943
    %v1688 = vsub.f32 %v1542, %v948
    %v1689 = vsub.f32 %v1547, %v953
    %v1690 = vsub.f32 %v1552, %v958
    %v1691 = vsub.f32 %v1557, %v963
    %v1692 = vsub.f32 %v1562, %v968
    %v1693 = vsub.f32 %v1567, %v973
    %v1694 = vsub.f32 %v1572, %v978
    %v1695 = vsub.f32 %v1577, %v983
    %v1696 = vsub.f32 %v1582, %v988
    %v1697 = vmul.f32 %v1681, 0.43404278
    %v1698 = vmul.f32 %v1682, 0.43404278
    %v1699 = vmul.f32 %v1683, 0.43404278
    %v1700 = vmul.f32 %v1684, 0.43404278
    %v1701 = vmul.f32 %v1685, 0.43404278
    %v1702 = vmul.f32 %v1686, 0.43404278
    %v1703 = vmul.f32 %v1687, 0.43404278
    %v1704 = vmul.f32 %v1688, 0.43404278
    %v1705 = vmul.f32 %v1689, 0.43404278
    %v1706 = vmul.f32 %v1690, 0.43404278
    %v1707 = vmul.f32 %v1691, 0.43404278
    %v1708 = vmul.f32 %v1692, 0.43404278
    %v1709 = vmul.f32 %v1693, 0.43404278
    %v1710 = vmul.f32 %v1694, 0.43404278
    %v1711 = vmul.f32 %v1695, 0.43404278
    %v1712 = vmul.f32 %v1696, 0.43404278
    %v1713 = vadd.f32 %v1507, %v1697
    %v1714 = vadd.f32 %v1512, %v1698
    %v1715 = vadd.f32 %v1517, %v1699
    %v1716 = vadd.f32 %v1522, %v1700
    %v1717 = vadd.f32 %v1527, %v1701
    %v1718 = vadd.f32 %v1532, %v1702
    %v1719 = vadd.f32 %v1537, %v1703
    %v1720 = vadd.f32 %v1542, %v1704
    %v1721 = vadd.f32 %v1547, %v1705
    %v1722 = vadd.f32 %v1552, %v1706
    %v1723 = vadd.f32 %v1557, %v1707
    %v1724 = vadd.f32 %v1562, %v1708
    %v1725 = vadd.f32 %v1567, %v1709
    %v1726 = vadd.f32 %v1572, %v1710
    %v1727 = vadd.f32 %v1577, %v1711
    %v1728 = vadd.f32 %v1582, %v1712
    %v1729 = vsub.f32 %v59, %v1713
    %v1730 = vsub.f32 %v60, %v1714
    %v1731 = vsub.f32 %v61, %v1715
    %v1732 = vsub.f32 %v62, %v1716
    %v1733 = vsub.f32 %v63, %v1717
    %v1734 = vsub.f32 %v64, %v1718
    %v1735 = vsub.f32 %v65, %v1719
    %v1736 = vsub.f32 %v66, %v1720
    %v1737 = vsub.f32 %v67, %v1721
    %v1738 = vsub.f32 %v68, %v1722
    %v1739 = vsub.f32 %v69, %v1723
    %v1740 = vsub.f32 %v70, %v1724
    %v1741 = vsub.f32 %v71, %v1725
    %v1742 = vsub.f32 %v72, %v1726
    %v1743 = vsub.f32 %v73, %v1727
    %v1744 = vsub.f32 %v74, %v1728
    %1745 = vmatprep.subr.mxu0 %v138
    %1746 = vmatpush1.msra.mxu0 %v137
    %1747 = vmatprep.subr.mxu0 %v136
    %1748 = vmatpush1.msra.mxu0 %v135
    %1749 = vmatprep.subr.mxu0 %v134
    %1750 = vmatpush1.msra.mxu0 %v133
    %1751 = vmatprep.subr.mxu0 %v132
    %1752 = vmatpush1.msra.mxu0 %v131
    %1753 = vmatprep.subr.mxu0 %v130
    %1754 = vmatpush1.msra.mxu0 %v129
    %1755 = vmatprep.subr.mxu0 %v128
    %1756 = vmatpush1.msra.mxu0 %v127
    %1757 = vmatprep.subr.mxu0 %v126
    %1758 = vmatpush1.msra.mxu0 %v125
    %1759 = vmatprep.subr.mxu0 %v124
    %1760 = vmatpush1.msra.mxu0 %v123
    %1761 = vmatprep.subr.mxu0 %v122
    %1762 = vmatpush1.msra.mxu0 %v121
    %1763 = vmatprep.subr.mxu0 %v120
    %1764 = vmatpush1.msra.mxu0 %v119
    %1765 = vmatprep.subr.mxu0 %v118
    %1766 = vmatpush1.msra.mxu0 %v117
    %1767 = vmatprep.subr.mxu0 %v116
    %1768 = vmatpush1.msra.mxu0 %v115
    %1769 = vmatprep.subr.mxu0 %v114
    %1770 = vmatpush1.msra.mxu0 %v113
    %1771 = vmatprep.subr.mxu0 %v112
    %1772 = vmatpush1.msra.mxu0 %v111
    %1773 = vmatprep.subr.mxu0 %v110
    %1774 = vmatpush1.msra.mxu0 %v109
    %1775 = vmatprep.subr.mxu0 %v108
    %1776 = vmatpush1.msra.mxu0 %v107
    %1777 = vmatprep.subr.mxu0 0.0
    %1778 = vmatpush2.msra.mxu0 0.0
    %1779 = vmatprep.subr.mxu0 0.0
    %1780 = vmatpush2.msra.mxu0 0.0
    %1781 = vmatprep.subr.mxu0 0.0
    %1782 = vmatpush2.msra.mxu0 0.0
    %1783 = vmatprep.subr.mxu0 0.0
    %1784 = vmatpush2.msra.mxu0 0.0
    %1785 = vmatprep.subr.mxu0 0.0
    %1786 = vmatpush2.msra.mxu0 0.0
    %1787 = vmatprep.subr.mxu0 0.0
    %1788 = vmatpush2.msra.mxu0 0.0
    %1789 = vmatprep.subr.mxu0 0.0
    %1790 = vmatpush2.msra.mxu0 0.0
    %1791 = vmatprep.subr.mxu0 0.0
    %1792 = vmatpush2.msra.mxu0 0.0
    %1793 = vmatprep.subr.mxu0 0.0
    %1794 = vmatpush2.msra.mxu0 0.0
    %1795 = vmatprep.subr.mxu0 0.0
    %1796 = vmatpush2.msra.mxu0 0.0
    %1797 = vmatprep.subr.mxu0 0.0
    %1798 = vmatpush2.msra.mxu0 0.0
    %1799 = vmatprep.subr.mxu0 0.0
    %1800 = vmatpush2.msra.mxu0 0.0
    %1801 = vmatprep.subr.mxu0 0.0
    %1802 = vmatpush2.msra.mxu0 0.0
    %1803 = vmatprep.subr.mxu0 0.0
    %1804 = vmatpush2.msra.mxu0 0.0
    %1805 = vmatprep.subr.mxu0 0.0
    %1806 = vmatpush2.msra.mxu0 0.0
    %1807 = vmatprep.subr.mxu0 0.0
    %1808 = vmatpush2.msra.mxu0 0.0
    %1809 = vmatprep.mubr.f32.mxu0 0.0
    %1810 = vmatmul.mubr.f32.gmra.mxu0 %v1729
    %v1811 = vpop.f32.mrf.mxu0
    %v1812 = vadd.f32 0.0, %v1811
    %v1813 = vpop.f32.mrf.mxu0
    %v1814 = vadd.f32 0.0, %v1813
    %1815 = vmatprep.mubr.f32.mxu0 0.0
    %1816 = vmatmul.mubr.f32.gmra.mxu0 %v1730
    %v1817 = vpop.f32.mrf.mxu0
    %v1818 = vadd.f32 0.0, %v1817
    %v1819 = vpop.f32.mrf.mxu0
    %v1820 = vadd.f32 0.0, %v1819
    %1821 = vmatprep.mubr.f32.mxu0 0.0
    %1822 = vmatmul.mubr.f32.gmra.mxu0 %v1731
    %v1823 = vpop.f32.mrf.mxu0
    %v1824 = vadd.f32 0.0, %v1823
    %v1825 = vpop.f32.mrf.mxu0
    %v1826 = vadd.f32 0.0, %v1825
    %1827 = vmatprep.mubr.f32.mxu0 0.0
    %1828 = vmatmul.mubr.f32.gmra.mxu0 %v1732
    %v1829 = vpop.f32.mrf.mxu0
    %v1830 = vadd.f32 0.0, %v1829
    %v1831 = vpop.f32.mrf.mxu0
    %v1832 = vadd.f32 0.0, %v1831
    %1833 = vmatprep.mubr.f32.mxu0 0.0
    %1834 = vmatmul.mubr.f32.gmra.mxu0 %v1733
    %v1835 = vpop.f32.mrf.mxu0
    %v1836 = vadd.f32 0.0, %v1835
    %v1837 = vpop.f32.mrf.mxu0
    %v1838 = vadd.f32 0.0, %v1837
    %1839 = vmatprep.mubr.f32.mxu0 0.0
    %1840 = vmatmul.mubr.f32.gmra.mxu0 %v1734
    %v1841 = vpop.f32.mrf.mxu0
    %v1842 = vadd.f32 0.0, %v1841
    %v1843 = vpop.f32.mrf.mxu0
    %v1844 = vadd.f32 0.0, %v1843
    %1845 = vmatprep.mubr.f32.mxu0 0.0
    %1846 = vmatmul.mubr.f32.gmra.mxu0 %v1735
    %v1847 = vpop.f32.mrf.mxu0
    %v1848 = vadd.f32 0.0, %v1847
    %v1849 = vpop.f32.mrf.mxu0
    %v1850 = vadd.f32 0.0, %v1849
    %1851 = vmatprep.mubr.f32.mxu0 0.0
    %1852 = vmatmul.mubr.f32.gmra.mxu0 %v1736
    %v1853 = vpop.f32.mrf.mxu0
    %v1854 = vadd.f32 0.0, %v1853
    %v1855 = vpop.f32.mrf.mxu0
    %v1856 = vadd.f32 0.0, %v1855
    %1857 = vmatprep.mubr.f32.mxu0 0.0
    %1858 = vmatmul.mubr.f32.gmra.mxu0 %v1737
    %v1859 = vpop.f32.mrf.mxu0
    %v1860 = vadd.f32 0.0, %v1859
    %v1861 = vpop.f32.mrf.mxu0
    %v1862 = vadd.f32 0.0, %v1861
    %1863 = vmatprep.mubr.f32.mxu0 0.0
    %1864 = vmatmul.mubr.f32.gmra.mxu0 %v1738
    %v1865 = vpop.f32.mrf.mxu0
    %v1866 = vadd.f32 0.0, %v1865
    %v1867 = vpop.f32.mrf.mxu0
    %v1868 = vadd.f32 0.0, %v1867
    %1869 = vmatprep.mubr.f32.mxu0 0.0
    %1870 = vmatmul.mubr.f32.gmra.mxu0 %v1739
    %v1871 = vpop.f32.mrf.mxu0
    %v1872 = vadd.f32 0.0, %v1871
    %v1873 = vpop.f32.mrf.mxu0
    %v1874 = vadd.f32 0.0, %v1873
    %1875 = vmatprep.mubr.f32.mxu0 0.0
    %1876 = vmatmul.mubr.f32.gmra.mxu0 %v1740
    %v1877 = vpop.f32.mrf.mxu0
    %v1878 = vadd.f32 0.0, %v1877
    %v1879 = vpop.f32.mrf.mxu0
    %v1880 = vadd.f32 0.0, %v1879
    %1881 = vmatprep.mubr.f32.mxu0 0.0
    %1882 = vmatmul.mubr.f32.gmra.mxu0 %v1741
    %v1883 = vpop.f32.mrf.mxu0
    %v1884 = vadd.f32 0.0, %v1883
    %v1885 = vpop.f32.mrf.mxu0
    %v1886 = vadd.f32 0.0, %v1885
    %1887 = vmatprep.mubr.f32.mxu0 0.0
    %1888 = vmatmul.mubr.f32.gmra.mxu0 %v1742
    %v1889 = vpop.f32.mrf.mxu0
    %v1890 = vadd.f32 0.0, %v1889
    %v1891 = vpop.f32.mrf.mxu0
    %v1892 = vadd.f32 0.0, %v1891
    %1893 = vmatprep.mubr.f32.mxu0 0.0
    %1894 = vmatmul.mubr.f32.gmra.mxu0 %v1743
    %v1895 = vpop.f32.mrf.mxu0
    %v1896 = vadd.f32 0.0, %v1895
    %v1897 = vpop.f32.mrf.mxu0
    %v1898 = vadd.f32 0.0, %v1897
    %1899 = vmatprep.mubr.f32.mxu0 0.0
    %1900 = vmatmul.mubr.f32.gmra.mxu0 %v1744
    %v1901 = vpop.f32.mrf.mxu0
    %v1902 = vadd.f32 0.0, %v1901
    %v1903 = vpop.f32.mrf.mxu0
    %v1904 = vadd.f32 0.0, %v1903
    %1905 = vdwg.mxu0
    %v1906 = vmul.f32 %v1812, 0.1
    %v1907 = vmul.f32 %v1814, 0.1
    %v1908 = vmul.f32 %v1818, 0.1
    %v1909 = vmul.f32 %v1820, 0.1
    %v1910 = vmul.f32 %v1824, 0.1
    %v1911 = vmul.f32 %v1826, 0.1
    %v1912 = vmul.f32 %v1830, 0.1
    %v1913 = vmul.f32 %v1832, 0.1
    %v1914 = vmul.f32 %v1836, 0.1
    %v1915 = vmul.f32 %v1838, 0.1
    %v1916 = vmul.f32 %v1842, 0.1
    %v1917 = vmul.f32 %v1844, 0.1
    %v1918 = vmul.f32 %v1848, 0.1
    %v1919 = vmul.f32 %v1850, 0.1
    %v1920 = vmul.f32 %v1854, 0.1
    %v1921 = vmul.f32 %v1856, 0.1
    %v1922 = vmul.f32 %v1860, 0.1
    %v1923 = vmul.f32 %v1862, 0.1
    %v1924 = vmul.f32 %v1866, 0.1
    %v1925 = vmul.f32 %v1868, 0.1
    %v1926 = vmul.f32 %v1872, 0.1
    %v1927 = vmul.f32 %v1874, 0.1
    %v1928 = vmul.f32 %v1878, 0.1
    %v1929 = vmul.f32 %v1880, 0.1
    %v1930 = vmul.f32 %v1884, 0.1
    %v1931 = vmul.f32 %v1886, 0.1
    %v1932 = vmul.f32 %v1890, 0.1
    %v1933 = vmul.f32 %v1892, 0.1
    %v1934 = vmul.f32 %v1896, 0.1
    %v1935 = vmul.f32 %v1898, 0.1
    %v1936 = vmul.f32 %v1902, 0.1
    %v1937 = vmul.f32 %v1904, 0.1
    %v1938 = vadd.f32 %v1649, %v1906
    %v1939 = vadd.f32 %v1650, %v1907
    %v1940 = vadd.f32 %v1651, %v1908
    %v1941 = vadd.f32 %v1652, %v1909
    %v1942 = vadd.f32 %v1653, %v1910
    %v1943 = vadd.f32 %v1654, %v1911
    %v1944 = vadd.f32 %v1655, %v1912
    %v1945 = vadd.f32 %v1656, %v1913
    %v1946 = vadd.f32 %v1657, %v1914
    %v1947 = vadd.f32 %v1658, %v1915
    %v1948 = vadd.f32 %v1659, %v1916
    %v1949 = vadd.f32 %v1660, %v1917
    %v1950 = vadd.f32 %v1661, %v1918
    %v1951 = vadd.f32 %v1662, %v1919
    %v1952 = vadd.f32 %v1663, %v1920
    %v1953 = vadd.f32 %v1664, %v1921
    %v1954 = vadd.f32 %v1665, %v1922
    %v1955 = vadd.f32 %v1666, %v1923
    %v1956 = vadd.f32 %v1667, %v1924
    %v1957 = vadd.f32 %v1668, %v1925
    %v1958 = vadd.f32 %v1669, %v1926
    %v1959 = vadd.f32 %v1670, %v1927
    %v1960 = vadd.f32 %v1671, %v1928
    %v1961 = vadd.f32 %v1672, %v1929
    %v1962 = vadd.f32 %v1673, %v1930
    %v1963 = vadd.f32 %v1674, %v1931
    %v1964 = vadd.f32 %v1675, %v1932
    %v1965 = vadd.f32 %v1676, %v1933
    %v1966 = vadd.f32 %v1677, %v1934
    %v1967 = vadd.f32 %v1678, %v1935
    %v1968 = vadd.f32 %v1679, %v1936
    %v1969 = vadd.f32 %v1680, %v1937
    %v1970 = vsub.f32 %v1938, 0.01
    %v1971 = vsub.f32 %v1939, 0.01
    %v1972 = vsub.f32 %v1940, 0.01
    %v1973 = vsub.f32 %v1941, 0.01
    %v1974 = vsub.f32 %v1942, 0.01
    %v1975 = vsub.f32 %v1943, 0.01
    %v1976 = vsub.f32 %v1944, 0.01
    %v1977 = vsub.f32 %v1945, 0.01
    %v1978 = vsub.f32 %v1946, 0.01
    %v1979 = vsub.f32 %v1947, 0.01
    %v1980 = vsub.f32 %v1948, 0.01
    %v1981 = vsub.f32 %v1949, 0.01
    %v1982 = vsub.f32 %v1950, 0.01
    %v1983 = vsub.f32 %v1951, 0.01
    %v1984 = vsub.f32 %v1952, 0.01
    %v1985 = vsub.f32 %v1953, 0.01
    %v1986 = vsub.f32 %v1954, 0.01
    %v1987 = vsub.f32 %v1955, 0.01
    %v1988 = vsub.f32 %v1956, 0.01
    %v1989 = vsub.f32 %v1957, 0.01
    %v1990 = vsub.f32 %v1958, 0.01
    %v1991 = vsub.f32 %v1959, 0.01
    %v1992 = vsub.f32 %v1960, 0.01
    %v1993 = vsub.f32 %v1961, 0.01
    %v1994 = vsub.f32 %v1962, 0.01
    %v1995 = vsub.f32 %v1963, 0.01
    %v1996 = vsub.f32 %v1964, 0.01
    %v1997 = vsub.f32 %v1965, 0.01
    %v1998 = vsub.f32 %v1966, 0.01
    %v1999 = vsub.f32 %v1967, 0.01
    %v2000 = vsub.f32 %v1968, 0.01
    %v2001 = vsub.f32 %v1969, 0.01
    %v2002 = vmax.f32 %v1970, 0.0
    %v2003 = vmax.f32 %v1971, 0.0
    %v2004 = vmax.f32 %v1972, 0.0
    %v2005 = vmax.f32 %v1973, 0.0
    %v2006 = vmax.f32 %v1974, 0.0
    %v2007 = vmax.f32 %v1975, 0.0
    %v2008 = vmax.f32 %v1976, 0.0
    %v2009 = vmax.f32 %v1977, 0.0
    %v2010 = vmax.f32 %v1978, 0.0
    %v2011 = vmax.f32 %v1979, 0.0
    %v2012 = vmax.f32 %v1980, 0.0
    %v2013 = vmax.f32 %v1981, 0.0
    %v2014 = vmax.f32 %v1982, 0.0
    %v2015 = vmax.f32 %v1983, 0.0
    %v2016 = vmax.f32 %v1984, 0.0
    %v2017 = vmax.f32 %v1985, 0.0
    %v2018 = vmax.f32 %v1986, 0.0
    %v2019 = vmax.f32 %v1987, 0.0
    %v2020 = vmax.f32 %v1988, 0.0
    %v2021 = vmax.f32 %v1989, 0.0
    %v2022 = vmax.f32 %v1990, 0.0
    %v2023 = vmax.f32 %v1991, 0.0
    %v2024 = vmax.f32 %v1992, 0.0
    %v2025 = vmax.f32 %v1993, 0.0
    %v2026 = vmax.f32 %v1994, 0.0
    %v2027 = vmax.f32 %v1995, 0.0
    %v2028 = vmax.f32 %v1996, 0.0
    %v2029 = vmax.f32 %v1997, 0.0
    %v2030 = vmax.f32 %v1998, 0.0
    %v2031 = vmax.f32 %v1999, 0.0
    %v2032 = vmax.f32 %v2000, 0.0
    %v2033 = vmax.f32 %v2001, 0.0
    %2034 = vmatprep.subr.mxu0 0.0
    %2035 = vmatpush1.msra.mxu0 %v90
    %2036 = vmatprep.subr.mxu0 0.0
    %2037 = vmatpush1.msra.mxu0 %v89
    %2038 = vmatprep.subr.mxu0 0.0
    %2039 = vmatpush1.msra.mxu0 %v88
    %2040 = vmatprep.subr.mxu0 0.0
    %2041 = vmatpush1.msra.mxu0 %v87
    %2042 = vmatprep.subr.mxu0 0.0
    %2043 = vmatpush1.msra.mxu0 %v86
    %2044 = vmatprep.subr.mxu0 0.0
    %2045 = vmatpush1.msra.mxu0 %v85
    %2046 = vmatprep.subr.mxu0 0.0
    %2047 = vmatpush1.msra.mxu0 %v84
    %2048 = vmatprep.subr.mxu0 0.0
    %2049 = vmatpush1.msra.mxu0 %v83
    %2050 = vmatprep.subr.mxu0 0.0
    %2051 = vmatpush1.msra.mxu0 %v82
    %2052 = vmatprep.subr.mxu0 0.0
    %2053 = vmatpush1.msra.mxu0 %v81
    %2054 = vmatprep.subr.mxu0 0.0
    %2055 = vmatpush1.msra.mxu0 %v80
    %2056 = vmatprep.subr.mxu0 0.0
    %2057 = vmatpush1.msra.mxu0 %v79
    %2058 = vmatprep.subr.mxu0 0.0
    %2059 = vmatpush1.msra.mxu0 %v78
    %2060 = vmatprep.subr.mxu0 0.0
    %2061 = vmatpush1.msra.mxu0 %v77
    %2062 = vmatprep.subr.mxu0 0.0
    %2063 = vmatpush1.msra.mxu0 %v76
    %2064 = vmatprep.subr.mxu0 0.0
    %2065 = vmatpush1.msra.mxu0 %v75
    %2066 = vmatprep.subr.mxu0 0.0
    %2067 = vmatpush2.msra.mxu0 %v106
    %2068 = vmatprep.subr.mxu0 0.0
    %2069 = vmatpush2.msra.mxu0 %v105
    %2070 = vmatprep.subr.mxu0 0.0
    %2071 = vmatpush2.msra.mxu0 %v104
    %2072 = vmatprep.subr.mxu0 0.0
    %2073 = vmatpush2.msra.mxu0 %v103
    %2074 = vmatprep.subr.mxu0 0.0
    %2075 = vmatpush2.msra.mxu0 %v102
    %2076 = vmatprep.subr.mxu0 0.0
    %2077 = vmatpush2.msra.mxu0 %v101
    %2078 = vmatprep.subr.mxu0 0.0
    %2079 = vmatpush2.msra.mxu0 %v100
    %2080 = vmatprep.subr.mxu0 0.0
    %2081 = vmatpush2.msra.mxu0 %v99
    %2082 = vmatprep.subr.mxu0 0.0
    %2083 = vmatpush2.msra.mxu0 %v98
    %2084 = vmatprep.subr.mxu0 0.0
    %2085 = vmatpush2.msra.mxu0 %v97
    %2086 = vmatprep.subr.mxu0 0.0
    %2087 = vmatpush2.msra.mxu0 %v96
    %2088 = vmatprep.subr.mxu0 0.0
    %2089 = vmatpush2.msra.mxu0 %v95
    %2090 = vmatprep.subr.mxu0 0.0
    %2091 = vmatpush2.msra.mxu0 %v94
    %2092 = vmatprep.subr.mxu0 0.0
    %2093 = vmatpush2.msra.mxu0 %v93
    %2094 = vmatprep.subr.mxu0 0.0
    %2095 = vmatpush2.msra.mxu0 %v92
    %2096 = vmatprep.subr.mxu0 0.0
    %2097 = vmatpush2.msra.mxu0 %v91
    %2098 = vmatprep.mubr.f32.mxu0 %v2003
    %2099 = vmatmul.mubr.f32.gmra.mxu0 %v2002
    %v2100 = vpop.f32.mrf.mxu0
    %v2101 = vadd.f32 0.0, %v2100
    %v2102 = vpop.f32.mrf.mxu0
    %2103 = vmatprep.mubr.f32.mxu0 %v2005
    %2104 = vmatmul.mubr.f32.gmra.mxu0 %v2004
    %v2105 = vpop.f32.mrf.mxu0
    %v2106 = vadd.f32 0.0, %v2105
    %v2107 = vpop.f32.mrf.mxu0
    %2108 = vmatprep.mubr.f32.mxu0 %v2007
    %2109 = vmatmul.mubr.f32.gmra.mxu0 %v2006
    %v2110 = vpop.f32.mrf.mxu0
    %v2111 = vadd.f32 0.0, %v2110
    %v2112 = vpop.f32.mrf.mxu0
    %2113 = vmatprep.mubr.f32.mxu0 %v2009
    %2114 = vmatmul.mubr.f32.gmra.mxu0 %v2008
    %v2115 = vpop.f32.mrf.mxu0
    %v2116 = vadd.f32 0.0, %v2115
    %v2117 = vpop.f32.mrf.mxu0
    %2118 = vmatprep.mubr.f32.mxu0 %v2011
    %2119 = vmatmul.mubr.f32.gmra.mxu0 %v2010
    %v2120 = vpop.f32.mrf.mxu0
    %v2121 = vadd.f32 0.0, %v2120
    %v2122 = vpop.f32.mrf.mxu0
    %2123 = vmatprep.mubr.f32.mxu0 %v2013
    %2124 = vmatmul.mubr.f32.gmra.mxu0 %v2012
    %v2125 = vpop.f32.mrf.mxu0
    %v2126 = vadd.f32 0.0, %v2125
    %v2127 = vpop.f32.mrf.mxu0
    %2128 = vmatprep.mubr.f32.mxu0 %v2015
    %2129 = vmatmul.mubr.f32.gmra.mxu0 %v2014
    %v2130 = vpop.f32.mrf.mxu0
    %v2131 = vadd.f32 0.0, %v2130
    %v2132 = vpop.f32.mrf.mxu0
    %2133 = vmatprep.mubr.f32.mxu0 %v2017
    %2134 = vmatmul.mubr.f32.gmra.mxu0 %v2016
    %v2135 = vpop.f32.mrf.mxu0
    %v2136 = vadd.f32 0.0, %v2135
    %v2137 = vpop.f32.mrf.mxu0
    %2138 = vmatprep.mubr.f32.mxu0 %v2019
    %2139 = vmatmul.mubr.f32.gmra.mxu0 %v2018
    %v2140 = vpop.f32.mrf.mxu0
    %v2141 = vadd.f32 0.0, %v2140
    %v2142 = vpop.f32.mrf.mxu0
    %2143 = vmatprep.mubr.f32.mxu0 %v2021
    %2144 = vmatmul.mubr.f32.gmra.mxu0 %v2020
    %v2145 = vpop.f32.mrf.mxu0
    %v2146 = vadd.f32 0.0, %v2145
    %v2147 = vpop.f32.mrf.mxu0
    %2148 = vmatprep.mubr.f32.mxu0 %v2023
    %2149 = vmatmul.mubr.f32.gmra.mxu0 %v2022
    %v2150 = vpop.f32.mrf.mxu0
    %v2151 = vadd.f32 0.0, %v2150
    %v2152 = vpop.f32.mrf.mxu0
    %2153 = vmatprep.mubr.f32.mxu0 %v2025
    %2154 = vmatmul.mubr.f32.gmra.mxu0 %v2024
    %v2155 = vpop.f32.mrf.mxu0
    %v2156 = vadd.f32 0.0, %v2155
    %v2157 = vpop.f32.mrf.mxu0
    %2158 = vmatprep.mubr.f32.mxu0 %v2027
    %2159 = vmatmul.mubr.f32.gmra.mxu0 %v2026
    %v2160 = vpop.f32.mrf.mxu0
    %v2161 = vadd.f32 0.0, %v2160
    %v2162 = vpop.f32.mrf.mxu0
    %2163 = vmatprep.mubr.f32.mxu0 %v2029
    %2164 = vmatmul.mubr.f32.gmra.mxu0 %v2028
    %v2165 = vpop.f32.mrf.mxu0
    %v2166 = vadd.f32 0.0, %v2165
    %v2167 = vpop.f32.mrf.mxu0
    %2168 = vmatprep.mubr.f32.mxu0 %v2031
    %2169 = vmatmul.mubr.f32.gmra.mxu0 %v2030
    %v2170 = vpop.f32.mrf.mxu0
    %v2171 = vadd.f32 0.0, %v2170
    %v2172 = vpop.f32.mrf.mxu0
    %2173 = vmatprep.mubr.f32.mxu0 %v2033
    %2174 = vmatmul.mubr.f32.gmra.mxu0 %v2032
    %v2175 = vpop.f32.mrf.mxu0
    %v2176 = vadd.f32 0.0, %v2175
    %v2177 = vpop.f32.mrf.mxu0
    %2178 = vdwg.mxu0
    %v2179 = vsub.f32 %v2002, %v1408
    %v2180 = vsub.f32 %v2003, %v1409
    %v2181 = vsub.f32 %v2004, %v1410
    %v2182 = vsub.f32 %v2005, %v1411
    %v2183 = vsub.f32 %v2006, %v1412
    %v2184 = vsub.f32 %v2007, %v1413
    %v2185 = vsub.f32 %v2008, %v1414
    %v2186 = vsub.f32 %v2009, %v1415
    %v2187 = vsub.f32 %v2010, %v1416
    %v2188 = vsub.f32 %v2011, %v1417
    %v2189 = vsub.f32 %v2012, %v1418
    %v2190 = vsub.f32 %v2013, %v1419
    %v2191 = vsub.f32 %v2014, %v1420
    %v2192 = vsub.f32 %v2015, %v1421
    %v2193 = vsub.f32 %v2016, %v1422
    %v2194 = vsub.f32 %v2017, %v1423
    %v2195 = vsub.f32 %v2018, %v1424
    %v2196 = vsub.f32 %v2019, %v1425
    %v2197 = vsub.f32 %v2020, %v1426
    %v2198 = vsub.f32 %v2021, %v1427
    %v2199 = vsub.f32 %v2022, %v1428
    %v2200 = vsub.f32 %v2023, %v1429
    %v2201 = vsub.f32 %v2024, %v1430
    %v2202 = vsub.f32 %v2025, %v1431
    %v2203 = vsub.f32 %v2026, %v1432
    %v2204 = vsub.f32 %v2027, %v1433
    %v2205 = vsub.f32 %v2028, %v1434
    %v2206 = vsub.f32 %v2029, %v1435
    %v2207 = vsub.f32 %v2030, %v1436
    %v2208 = vsub.f32 %v2031, %v1437
    %v2209 = vsub.f32 %v2032, %v1438
    %v2210 = vsub.f32 %v2033, %v1439
    %v2211 = vmul.f32 %v2179, 0.5310638
    %v2212 = vmul.f32 %v2180, 0.5310638
    %v2213 = vmul.f32 %v2181, 0.5310638
    %v2214 = vmul.f32 %v2182, 0.5310638
    %v2215 = vmul.f32 %v2183, 0.5310638
    %v2216 = vmul.f32 %v2184, 0.5310638
    %v2217 = vmul.f32 %v2185, 0.5310638
    %v2218 = vmul.f32 %v2186, 0.5310638
    %v2219 = vmul.f32 %v2187, 0.5310638
    %v2220 = vmul.f32 %v2188, 0.5310638
    %v2221 = vmul.f32 %v2189, 0.5310638
    %v2222 = vmul.f32 %v2190, 0.5310638
    %v2223 = vmul.f32 %v2191, 0.5310638
    %v2224 = vmul.f32 %v2192, 0.5310638
    %v2225 = vmul.f32 %v2193, 0.5310638
    %v2226 = vmul.f32 %v2194, 0.5310638
    %v2227 = vmul.f32 %v2195, 0.5310638
    %v2228 = vmul.f32 %v2196, 0.5310638
    %v2229 = vmul.f32 %v2197, 0.5310638
    %v2230 = vmul.f32 %v2198, 0.5310638
    %v2231 = vmul.f32 %v2199, 0.5310638
    %v2232 = vmul.f32 %v2200, 0.5310638
    %v2233 = vmul.f32 %v2201, 0.5310638
    %v2234 = vmul.f32 %v2202, 0.5310638
    %v2235 = vmul.f32 %v2203, 0.5310638
    %v2236 = vmul.f32 %v2204, 0.5310638
    %v2237 = vmul.f32 %v2205, 0.5310638
    %v2238 = vmul.f32 %v2206, 0.5310638
    %v2239 = vmul.f32 %v2207, 0.5310638
    %v2240 = vmul.f32 %v2208, 0.5310638
    %v2241 = vmul.f32 %v2209, 0.5310638
    %v2242 = vmul.f32 %v2210, 0.5310638
    %v2243 = vadd.f32 %v2002, %v2211
    %v2244 = vadd.f32 %v2003, %v2212
    %v2245 = vadd.f32 %v2004, %v2213
    %v2246 = vadd.f32 %v2005, %v2214
    %v2247 = vadd.f32 %v2006, %v2215
    %v2248 = vadd.f32 %v2007, %v2216
    %v2249 = vadd.f32 %v2008, %v2217
    %v2250 = vadd.f32 %v2009, %v2218
    %v2251 = vadd.f32 %v2010, %v2219
    %v2252 = vadd.f32 %v2011, %v2220
    %v2253 = vadd.f32 %v2012, %v2221
    %v2254 = vadd.f32 %v2013, %v2222
    %v2255 = vadd.f32 %v2014, %v2223
    %v2256 = vadd.f32 %v2015, %v2224
    %v2257 = vadd.f32 %v2016, %v2225
    %v2258 = vadd.f32 %v2017, %v2226
    %v2259 = vadd.f32 %v2018, %v2227
    %v2260 = vadd.f32 %v2019, %v2228
    %v2261 = vadd.f32 %v2020, %v2229
    %v2262 = vadd.f32 %v2021, %v2230
    %v2263 = vadd.f32 %v2022, %v2231
    %v2264 = vadd.f32 %v2023, %v2232
    %v2265 = vadd.f32 %v2024, %v2233
    %v2266 = vadd.f32 %v2025, %v2234
    %v2267 = vadd.f32 %v2026, %v2235
    %v2268 = vadd.f32 %v2027, %v2236
    %v2269 = vadd.f32 %v2028, %v2237
    %v2270 = vadd.f32 %v2029, %v2238
    %v2271 = vadd.f32 %v2030, %v2239
    %v2272 = vadd.f32 %v2031, %v2240
    %v2273 = vadd.f32 %v2032, %v2241
    %v2274 = vadd.f32 %v2033, %v2242
    %v2275 = vsub.f32 %v2101, %v1507
    %v2276 = vsub.f32 %v2106, %v1512
    %v2277 = vsub.f32 %v2111, %v1517
    %v2278 = vsub.f32 %v2116, %v1522
    %v2279 = vsub.f32 %v2121, %v1527
    %v2280 = vsub.f32 %v2126, %v1532
    %v2281 = vsub.f32 %v2131, %v1537
    %v2282 = vsub.f32 %v2136, %v1542
    %v2283 = vsub.f32 %v2141, %v1547
    %v2284 = vsub.f32 %v2146, %v1552
    %v2285 = vsub.f32 %v2151, %v1557
    %v2286 = vsub.f32 %v2156, %v1562
    %v2287 = vsub.f32 %v2161, %v1567
    %v2288 = vsub.f32 %v2166, %v1572
    %v2289 = vsub.f32 %v2171, %v1577
    %v2290 = vsub.f32 %v2176, %v1582
    %v2291 = vmul.f32 %v2275, 0.5310638
    %v2292 = vmul.f32 %v2276, 0.5310638
    %v2293 = vmul.f32 %v2277, 0.5310638
    %v2294 = vmul.f32 %v2278, 0.5310638
    %v2295 = vmul.f32 %v2279, 0.5310638
    %v2296 = vmul.f32 %v2280, 0.5310638
    %v2297 = vmul.f32 %v2281, 0.5310638
    %v2298 = vmul.f32 %v2282, 0.5310638
    %v2299 = vmul.f32 %v2283, 0.5310638
    %v2300 = vmul.f32 %v2284, 0.5310638
    %v2301 = vmul.f32 %v2285, 0.5310638
    %v2302 = vmul.f32 %v2286, 0.5310638
    %v2303 = vmul.f32 %v2287, 0.5310638
    %v2304 = vmul.f32 %v2288, 0.5310638
    %v2305 = vmul.f32 %v2289, 0.5310638
    %v2306 = vmul.f32 %v2290, 0.5310638
    %v2307 = vadd.f32 %v2101, %v2291
    %v2308 = vadd.f32 %v2106, %v2292
    %v2309 = vadd.f32 %v2111, %v2293
    %v2310 = vadd.f32 %v2116, %v2294
    %v2311 = vadd.f32 %v2121, %v2295
    %v2312 = vadd.f32 %v2126, %v2296
    %v2313 = vadd.f32 %v2131, %v2297
    %v2314 = vadd.f32 %v2136, %v2298
    %v2315 = vadd.f32 %v2141, %v2299
    %v2316 = vadd.f32 %v2146, %v2300
    %v2317 = vadd.f32 %v2151, %v2301
    %v2318 = vadd.f32 %v2156, %v2302
    %v2319 = vadd.f32 %v2161, %v2303
    %v2320 = vadd.f32 %v2166, %v2304
    %v2321 = vadd.f32 %v2171, %v2305
    %v2322 = vadd.f32 %v2176, %v2306
    %v2323 = vsub.f32 %v59, %v2307
    %v2324 = vsub.f32 %v60, %v2308
    %v2325 = vsub.f32 %v61, %v2309
    %v2326 = vsub.f32 %v62, %v2310
    %v2327 = vsub.f32 %v63, %v2311
    %v2328 = vsub.f32 %v64, %v2312
    %v2329 = vsub.f32 %v65, %v2313
    %v2330 = vsub.f32 %v66, %v2314
    %v2331 = vsub.f32 %v67, %v2315
    %v2332 = vsub.f32 %v68, %v2316
    %v2333 = vsub.f32 %v69, %v2317
    %v2334 = vsub.f32 %v70, %v2318
    %v2335 = vsub.f32 %v71, %v2319
    %v2336 = vsub.f32 %v72, %v2320
    %v2337 = vsub.f32 %v73, %v2321
    %v2338 = vsub.f32 %v74, %v2322
    %2339 = vmatprep.subr.mxu0 %v138
    %2340 = vmatpush1.msra.mxu0 %v137
    %2341 = vmatprep.subr.mxu0 %v136
    %2342 = vmatpush1.msra.mxu0 %v135
    %2343 = vmatprep.subr.mxu0 %v134
    %2344 = vmatpush1.msra.mxu0 %v133
    %2345 = vmatprep.subr.mxu0 %v132
    %2346 = vmatpush1.msra.mxu0 %v131
    %2347 = vmatprep.subr.mxu0 %v130
    %2348 = vmatpush1.msra.mxu0 %v129
    %2349 = vmatprep.subr.mxu0 %v128
    %2350 = vmatpush1.msra.mxu0 %v127
    %2351 = vmatprep.subr.mxu0 %v126
    %2352 = vmatpush1.msra.mxu0 %v125
    %2353 = vmatprep.subr.mxu0 %v124
    %2354 = vmatpush1.msra.mxu0 %v123
    %2355 = vmatprep.subr.mxu0 %v122
    %2356 = vmatpush1.msra.mxu0 %v121
    %2357 = vmatprep.subr.mxu0 %v120
    %2358 = vmatpush1.msra.mxu0 %v119
    %2359 = vmatprep.subr.mxu0 %v118
    %2360 = vmatpush1.msra.mxu0 %v117
    %2361 = vmatprep.subr.mxu0 %v116
    %2362 = vmatpush1.msra.mxu0 %v115
    %2363 = vmatprep.subr.mxu0 %v114
    %2364 = vmatpush1.msra.mxu0 %v113
    %2365 = vmatprep.subr.mxu0 %v112
    %2366 = vmatpush1.msra.mxu0 %v111
    %2367 = vmatprep.subr.mxu0 %v110
    %2368 = vmatpush1.msra.mxu0 %v109
    %2369 = vmatprep.subr.mxu0 %v108
    %2370 = vmatpush1.msra.mxu0 %v107
    %2371 = vmatprep.subr.mxu0 0.0
    %2372 = vmatpush2.msra.mxu0 0.0
    %2373 = vmatprep.subr.mxu0 0.0
    %2374 = vmatpush2.msra.mxu0 0.0
    %2375 = vmatprep.subr.mxu0 0.0
    %2376 = vmatpush2.msra.mxu0 0.0
    %2377 = vmatprep.subr.mxu0 0.0
    %2378 = vmatpush2.msra.mxu0 0.0
    %2379 = vmatprep.subr.mxu0 0.0
    %2380 = vmatpush2.msra.mxu0 0.0
    %2381 = vmatprep.subr.mxu0 0.0
    %2382 = vmatpush2.msra.mxu0 0.0
    %2383 = vmatprep.subr.mxu0 0.0
    %2384 = vmatpush2.msra.mxu0 0.0
    %2385 = vmatprep.subr.mxu0 0.0
    %2386 = vmatpush2.msra.mxu0 0.0
    %2387 = vmatprep.subr.mxu0 0.0
    %2388 = vmatpush2.msra.mxu0 0.0
    %2389 = vmatprep.subr.mxu0 0.0
    %2390 = vmatpush2.msra.mxu0 0.0
    %2391 = vmatprep.subr.mxu0 0.0
    %2392 = vmatpush2.msra.mxu0 0.0
    %2393 = vmatprep.subr.mxu0 0.0
    %2394 = vmatpush2.msra.mxu0 0.0
    %2395 = vmatprep.subr.mxu0 0.0
    %2396 = vmatpush2.msra.mxu0 0.0
    %2397 = vmatprep.subr.mxu0 0.0
    %2398 = vmatpush2.msra.mxu0 0.0
    %2399 = vmatprep.subr.mxu0 0.0
    %2400 = vmatpush2.msra.mxu0 0.0
    %2401 = vmatprep.subr.mxu0 0.0
    %2402 = vmatpush2.msra.mxu0 0.0
    %2403 = vmatprep.mubr.f32.mxu0 0.0
    %2404 = vmatmul.mubr.f32.gmra.mxu0 %v2323
    %v2405 = vpop.f32.mrf.mxu0
    %v2406 = vadd.f32 0.0, %v2405
    %v2407 = vpop.f32.mrf.mxu0
    %v2408 = vadd.f32 0.0, %v2407
    %2409 = vmatprep.mubr.f32.mxu0 0.0
    %2410 = vmatmul.mubr.f32.gmra.mxu0 %v2324
    %v2411 = vpop.f32.mrf.mxu0
    %v2412 = vadd.f32 0.0, %v2411
    %v2413 = vpop.f32.mrf.mxu0
    %v2414 = vadd.f32 0.0, %v2413
    %2415 = vmatprep.mubr.f32.mxu0 0.0
    %2416 = vmatmul.mubr.f32.gmra.mxu0 %v2325
    %v2417 = vpop.f32.mrf.mxu0
    %v2418 = vadd.f32 0.0, %v2417
    %v2419 = vpop.f32.mrf.mxu0
    %v2420 = vadd.f32 0.0, %v2419
    %2421 = vmatprep.mubr.f32.mxu0 0.0
    %2422 = vmatmul.mubr.f32.gmra.mxu0 %v2326
    %v2423 = vpop.f32.mrf.mxu0
    %v2424 = vadd.f32 0.0, %v2423
    %v2425 = vpop.f32.mrf.mxu0
    %v2426 = vadd.f32 0.0, %v2425
    %2427 = vmatprep.mubr.f32.mxu0 0.0
    %2428 = vmatmul.mubr.f32.gmra.mxu0 %v2327
    %v2429 = vpop.f32.mrf.mxu0
    %v2430 = vadd.f32 0.0, %v2429
    %v2431 = vpop.f32.mrf.mxu0
    %v2432 = vadd.f32 0.0, %v2431
    %2433 = vmatprep.mubr.f32.mxu0 0.0
    %2434 = vmatmul.mubr.f32.gmra.mxu0 %v2328
    %v2435 = vpop.f32.mrf.mxu0
    %v2436 = vadd.f32 0.0, %v2435
    %v2437 = vpop.f32.mrf.mxu0
    %v2438 = vadd.f32 0.0, %v2437
    %2439 = vmatprep.mubr.f32.mxu0 0.0
    %2440 = vmatmul.mubr.f32.gmra.mxu0 %v2329
    %v2441 = vpop.f32.mrf.mxu0
    %v2442 = vadd.f32 0.0, %v2441
    %v2443 = vpop.f32.mrf.mxu0
    %v2444 = vadd.f32 0.0, %v2443
    %2445 = vmatprep.mubr.f32.mxu0 0.0
    %2446 = vmatmul.mubr.f32.gmra.mxu0 %v2330
    %v2447 = vpop.f32.mrf.mxu0
    %v2448 = vadd.f32 0.0, %v2447
    %v2449 = vpop.f32.mrf.mxu0
    %v2450 = vadd.f32 0.0, %v2449
    %2451 = vmatprep.mubr.f32.mxu0 0.0
    %2452 = vmatmul.mubr.f32.gmra.mxu0 %v2331
    %v2453 = vpop.f32.mrf.mxu0
    %v2454 = vadd.f32 0.0, %v2453
    %v2455 = vpop.f32.mrf.mxu0
    %v2456 = vadd.f32 0.0, %v2455
    %2457 = vmatprep.mubr.f32.mxu0 0.0
    %2458 = vmatmul.mubr.f32.gmra.mxu0 %v2332
    %v2459 = vpop.f32.mrf.mxu0
    %v2460 = vadd.f32 0.0, %v2459
    %v2461 = vpop.f32.mrf.mxu0
    %v2462 = vadd.f32 0.0, %v2461
    %2463 = vmatprep.mubr.f32.mxu0 0.0
    %2464 = vmatmul.mubr.f32.gmra.mxu0 %v2333
    %v2465 = vpop.f32.mrf.mxu0
    %v2466 = vadd.f32 0.0, %v2465
    %v2467 = vpop.f32.mrf.mxu0
    %v2468 = vadd.f32 0.0, %v2467
    %2469 = vmatprep.mubr.f32.mxu0 0.0
    %2470 = vmatmul.mubr.f32.gmra.mxu0 %v2334
    %v2471 = vpop.f32.mrf.mxu0
    %v2472 = vadd.f32 0.0, %v2471
    %v2473 = vpop.f32.mrf.mxu0
    %v2474 = vadd.f32 0.0, %v2473
    %2475 = vmatprep.mubr.f32.mxu0 0.0
    %2476 = vmatmul.mubr.f32.gmra.mxu0 %v2335
    %v2477 = vpop.f32.mrf.mxu0
    %v2478 = vadd.f32 0.0, %v2477
    %v2479 = vpop.f32.mrf.mxu0
    %v2480 = vadd.f32 0.0, %v2479
    %2481 = vmatprep.mubr.f32.mxu0 0.0
    %2482 = vmatmul.mubr.f32.gmra.mxu0 %v2336
    %v2483 = vpop.f32.mrf.mxu0
    %v2484 = vadd.f32 0.0, %v2483
    %v2485 = vpop.f32.mrf.mxu0
    %v2486 = vadd.f32 0.0, %v2485
    %2487 = vmatprep.mubr.f32.mxu0 0.0
    %2488 = vmatmul.mubr.f32.gmra.mxu0 %v2337
    %v2489 = vpop.f32.mrf.mxu0
    %v2490 = vadd.f32 0.0, %v2489
    %v2491 = vpop.f32.mrf.mxu0
    %v2492 = vadd.f32 0.0, %v2491
    %2493 = vmatprep.mubr.f32.mxu0 0.0
    %2494 = vmatmul.mubr.f32.gmra.mxu0 %v2338
    %v2495 = vpop.f32.mrf.mxu0
    %v2496 = vadd.f32 0.0, %v2495
    %v2497 = vpop.f32.mrf.mxu0
    %v2498 = vadd.f32 0.0, %v2497
    %2499 = vdwg.mxu0
    %v2500 = vmul.f32 %v2406, 0.1
    %v2501 = vmul.f32 %v2408, 0.1
    %v2502 = vmul.f32 %v2412, 0.1
    %v2503 = vmul.f32 %v2414, 0.1
    %v2504 = vmul.f32 %v2418, 0.1
    %v2505 = vmul.f32 %v2420, 0.1
    %v2506 = vmul.f32 %v2424, 0.1
    %v2507 = vmul.f32 %v2426, 0.1
    %v2508 = vmul.f32 %v2430, 0.1
    %v2509 = vmul.f32 %v2432, 0.1
    %v2510 = vmul.f32 %v2436, 0.1
    %v2511 = vmul.f32 %v2438, 0.1
    %v2512 = vmul.f32 %v2442, 0.1
    %v2513 = vmul.f32 %v2444, 0.1
    %v2514 = vmul.f32 %v2448, 0.1
    %v2515 = vmul.f32 %v2450, 0.1
    %v2516 = vmul.f32 %v2454, 0.1
    %v2517 = vmul.f32 %v2456, 0.1
    %v2518 = vmul.f32 %v2460, 0.1
    %v2519 = vmul.f32 %v2462, 0.1
    %v2520 = vmul.f32 %v2466, 0.1
    %v2521 = vmul.f32 %v2468, 0.1
    %v2522 = vmul.f32 %v2472, 0.1
    %v2523 = vmul.f32 %v2474, 0.1
    %v2524 = vmul.f32 %v2478, 0.1
    %v2525 = vmul.f32 %v2480, 0.1
    %v2526 = vmul.f32 %v2484, 0.1
    %v2527 = vmul.f32 %v2486, 0.1
    %v2528 = vmul.f32 %v2490, 0.1
    %v2529 = vmul.f32 %v2492, 0.1
    %v2530 = vmul.f32 %v2496, 0.1
    %v2531 = vmul.f32 %v2498, 0.1
    %v2532 = vadd.f32 %v2243, %v2500
    %v2533 = vadd.f32 %v2244, %v2501
    %v2534 = vadd.f32 %v2245, %v2502
    %v2535 = vadd.f32 %v2246, %v2503
    %v2536 = vadd.f32 %v2247, %v2504
    %v2537 = vadd.f32 %v2248, %v2505
    %v2538 = vadd.f32 %v2249, %v2506
    %v2539 = vadd.f32 %v2250, %v2507
    %v2540 = vadd.f32 %v2251, %v2508
    %v2541 = vadd.f32 %v2252, %v2509
    %v2542 = vadd.f32 %v2253, %v2510
    %v2543 = vadd.f32 %v2254, %v2511
    %v2544 = vadd.f32 %v2255, %v2512
    %v2545 = vadd.f32 %v2256, %v2513
    %v2546 = vadd.f32 %v2257, %v2514
    %v2547 = vadd.f32 %v2258, %v2515
    %v2548 = vadd.f32 %v2259, %v2516
    %v2549 = vadd.f32 %v2260, %v2517
    %v2550 = vadd.f32 %v2261, %v2518
    %v2551 = vadd.f32 %v2262, %v2519
    %v2552 = vadd.f32 %v2263, %v2520
    %v2553 = vadd.f32 %v2264, %v2521
    %v2554 = vadd.f32 %v2265, %v2522
    %v2555 = vadd.f32 %v2266, %v2523
    %v2556 = vadd.f32 %v2267, %v2524
    %v2557 = vadd.f32 %v2268, %v2525
    %v2558 = vadd.f32 %v2269, %v2526
    %v2559 = vadd.f32 %v2270, %v2527
    %v2560 = vadd.f32 %v2271, %v2528
    %v2561 = vadd.f32 %v2272, %v2529
    %v2562 = vadd.f32 %v2273, %v2530
    %v2563 = vadd.f32 %v2274, %v2531
    %v2564 = vsub.f32 %v2532, 0.01
    %v2565 = vsub.f32 %v2533, 0.01
    %v2566 = vsub.f32 %v2534, 0.01
    %v2567 = vsub.f32 %v2535, 0.01
    %v2568 = vsub.f32 %v2536, 0.01
    %v2569 = vsub.f32 %v2537, 0.01
    %v2570 = vsub.f32 %v2538, 0.01
    %v2571 = vsub.f32 %v2539, 0.01
    %v2572 = vsub.f32 %v2540, 0.01
    %v2573 = vsub.f32 %v2541, 0.01
    %v2574 = vsub.f32 %v2542, 0.01
    %v2575 = vsub.f32 %v2543, 0.01
    %v2576 = vsub.f32 %v2544, 0.01
    %v2577 = vsub.f32 %v2545, 0.01
    %v2578 = vsub.f32 %v2546, 0.01
    %v2579 = vsub.f32 %v2547, 0.01
    %v2580 = vsub.f32 %v2548, 0.01
    %v2581 = vsub.f32 %v2549, 0.01
    %v2582 = vsub.f32 %v2550, 0.01
    %v2583 = vsub.f32 %v2551, 0.01
    %v2584 = vsub.f32 %v2552, 0.01
    %v2585 = vsub.f32 %v2553, 0.01
    %v2586 = vsub.f32 %v2554, 0.01
    %v2587 = vsub.f32 %v2555, 0.01
    %v2588 = vsub.f32 %v2556, 0.01
    %v2589 = vsub.f32 %v2557, 0.01
    %v2590 = vsub.f32 %v2558, 0.01
    %v2591 = vsub.f32 %v2559, 0.01
    %v2592 = vsub.f32 %v2560, 0.01
    %v2593 = vsub.f32 %v2561, 0.01
    %v2594 = vsub.f32 %v2562, 0.01
    %v2595 = vsub.f32 %v2563, 0.01
    %v2596 = vmax.f32 %v2564, 0.0
    %v2597 = vmax.f32 %v2565, 0.0
    %v2598 = vmax.f32 %v2566, 0.0
    %v2599 = vmax.f32 %v2567, 0.0
    %v2600 = vmax.f32 %v2568, 0.0
    %v2601 = vmax.f32 %v2569, 0.0
    %v2602 = vmax.f32 %v2570, 0.0
    %v2603 = vmax.f32 %v2571, 0.0
    %v2604 = vmax.f32 %v2572, 0.0
    %v2605 = vmax.f32 %v2573, 0.0
    %v2606 = vmax.f32 %v2574, 0.0
    %v2607 = vmax.f32 %v2575, 0.0
    %v2608 = vmax.f32 %v2576, 0.0
    %v2609 = vmax.f32 %v2577, 0.0
    %v2610 = vmax.f32 %v2578, 0.0
    %v2611 = vmax.f32 %v2579, 0.0
    %v2612 = vmax.f32 %v2580, 0.0
    %v2613 = vmax.f32 %v2581, 0.0
    %v2614 = vmax.f32 %v2582, 0.0
    %v2615 = vmax.f32 %v2583, 0.0
    %v2616 = vmax.f32 %v2584, 0.0
    %v2617 = vmax.f32 %v2585, 0.0
    %v2618 = vmax.f32 %v2586, 0.0
    %v2619 = vmax.f32 %v2587, 0.0
    %v2620 = vmax.f32 %v2588, 0.0
    %v2621 = vmax.f32 %v2589, 0.0
    %v2622 = vmax.f32 %v2590, 0.0
    %v2623 = vmax.f32 %v2591, 0.0
    %v2624 = vmax.f32 %v2592, 0.0
    %v2625 = vmax.f32 %v2593, 0.0
    %v2626 = vmax.f32 %v2594, 0.0
    %v2627 = vmax.f32 %v2595, 0.0
    %2628 = vmatprep.subr.mxu0 0.0
    %2629 = vmatpush1.msra.mxu0 %v90
    %2630 = vmatprep.subr.mxu0 0.0
    %2631 = vmatpush1.msra.mxu0 %v89
    %2632 = vmatprep.subr.mxu0 0.0
    %2633 = vmatpush1.msra.mxu0 %v88
    %2634 = vmatprep.subr.mxu0 0.0
    %2635 = vmatpush1.msra.mxu0 %v87
    %2636 = vmatprep.subr.mxu0 0.0
    %2637 = vmatpush1.msra.mxu0 %v86
    %2638 = vmatprep.subr.mxu0 0.0
    %2639 = vmatpush1.msra.mxu0 %v85
    %2640 = vmatprep.subr.mxu0 0.0
    %2641 = vmatpush1.msra.mxu0 %v84
    %2642 = vmatprep.subr.mxu0 0.0
    %2643 = vmatpush1.msra.mxu0 %v83
    %2644 = vmatprep.subr.mxu0 0.0
    %2645 = vmatpush1.msra.mxu0 %v82
    %2646 = vmatprep.subr.mxu0 0.0
    %2647 = vmatpush1.msra.mxu0 %v81
    %2648 = vmatprep.subr.mxu0 0.0
    %2649 = vmatpush1.msra.mxu0 %v80
    %2650 = vmatprep.subr.mxu0 0.0
    %2651 = vmatpush1.msra.mxu0 %v79
    %2652 = vmatprep.subr.mxu0 0.0
    %2653 = vmatpush1.msra.mxu0 %v78
    %2654 = vmatprep.subr.mxu0 0.0
    %2655 = vmatpush1.msra.mxu0 %v77
    %2656 = vmatprep.subr.mxu0 0.0
    %2657 = vmatpush1.msra.mxu0 %v76
    %2658 = vmatprep.subr.mxu0 0.0
    %2659 = vmatpush1.msra.mxu0 %v75
    %2660 = vmatprep.subr.mxu0 0.0
    %2661 = vmatpush2.msra.mxu0 %v106
    %2662 = vmatprep.subr.mxu0 0.0
    %2663 = vmatpush2.msra.mxu0 %v105
    %2664 = vmatprep.subr.mxu0 0.0
    %2665 = vmatpush2.msra.mxu0 %v104
    %2666 = vmatprep.subr.mxu0 0.0
    %2667 = vmatpush2.msra.mxu0 %v103
    %2668 = vmatprep.subr.mxu0 0.0
    %2669 = vmatpush2.msra.mxu0 %v102
    %2670 = vmatprep.subr.mxu0 0.0
    %2671 = vmatpush2.msra.mxu0 %v101
    %2672 = vmatprep.subr.mxu0 0.0
    %2673 = vmatpush2.msra.mxu0 %v100
    %2674 = vmatprep.subr.mxu0 0.0
    %2675 = vmatpush2.msra.mxu0 %v99
    %2676 = vmatprep.subr.mxu0 0.0
    %2677 = vmatpush2.msra.mxu0 %v98
    %2678 = vmatprep.subr.mxu0 0.0
    %2679 = vmatpush2.msra.mxu0 %v97
    %2680 = vmatprep.subr.mxu0 0.0
    %2681 = vmatpush2.msra.mxu0 %v96
    %2682 = vmatprep.subr.mxu0 0.0
    %2683 = vmatpush2.msra.mxu0 %v95
    %2684 = vmatprep.subr.mxu0 0.0
    %2685 = vmatpush2.msra.mxu0 %v94
    %2686 = vmatprep.subr.mxu0 0.0
    %2687 = vmatpush2.msra.mxu0 %v93
    %2688 = vmatprep.subr.mxu0 0.0
    %2689 = vmatpush2.msra.mxu0 %v92
    %2690 = vmatprep.subr.mxu0 0.0
    %2691 = vmatpush2.msra.mxu0 %v91
    %2692 = vmatprep.mubr.f32.mxu0 %v2597
    %2693 = vmatmul.mubr.f32.gmra.mxu0 %v2596
    %v2694 = vpop.f32.mrf.mxu0
    %v2695 = vadd.f32 0.0, %v2694
    %v2696 = vpop.f32.mrf.mxu0
    %2697 = vmatprep.mubr.f32.mxu0 %v2599
    %2698 = vmatmul.mubr.f32.gmra.mxu0 %v2598
    %v2699 = vpop.f32.mrf.mxu0
    %v2700 = vadd.f32 0.0, %v2699
    %v2701 = vpop.f32.mrf.mxu0
    %2702 = vmatprep.mubr.f32.mxu0 %v2601
    %2703 = vmatmul.mubr.f32.gmra.mxu0 %v2600
    %v2704 = vpop.f32.mrf.mxu0
    %v2705 = vadd.f32 0.0, %v2704
    %v2706 = vpop.f32.mrf.mxu0
    %2707 = vmatprep.mubr.f32.mxu0 %v2603
    %2708 = vmatmul.mubr.f32.gmra.mxu0 %v2602
    %v2709 = vpop.f32.mrf.mxu0
    %v2710 = vadd.f32 0.0, %v2709
    %v2711 = vpop.f32.mrf.mxu0
    %2712 = vmatprep.mubr.f32.mxu0 %v2605
    %2713 = vmatmul.mubr.f32.gmra.mxu0 %v2604
    %v2714 = vpop.f32.mrf.mxu0
    %v2715 = vadd.f32 0.0, %v2714
    %v2716 = vpop.f32.mrf.mxu0
    %2717 = vmatprep.mubr.f32.mxu0 %v2607
    %2718 = vmatmul.mubr.f32.gmra.mxu0 %v2606
    %v2719 = vpop.f32.mrf.mxu0
    %v2720 = vadd.f32 0.0, %v2719
    %v2721 = vpop.f32.mrf.mxu0
    %2722 = vmatprep.mubr.f32.mxu0 %v2609
    %2723 = vmatmul.mubr.f32.gmra.mxu0 %v2608
    %v2724 = vpop.f32.mrf.mxu0
    %v2725 = vadd.f32 0.0, %v2724
    %v2726 = vpop.f32.mrf.mxu0
    %2727 = vmatprep.mubr.f32.mxu0 %v2611
    %2728 = vmatmul.mubr.f32.gmra.mxu0 %v2610
    %v2729 = vpop.f32.mrf.mxu0
    %v2730 = vadd.f32 0.0, %v2729
    %v2731 = vpop.f32.mrf.mxu0
    %2732 = vmatprep.mubr.f32.mxu0 %v2613
    %2733 = vmatmul.mubr.f32.gmra.mxu0 %v2612
    %v2734 = vpop.f32.mrf.mxu0
    %v2735 = vadd.f32 0.0, %v2734
    %v2736 = vpop.f32.mrf.mxu0
    %2737 = vmatprep.mubr.f32.mxu0 %v2615
    %2738 = vmatmul.mubr.f32.gmra.mxu0 %v2614
    %v2739 = vpop.f32.mrf.mxu0
    %v2740 = vadd.f32 0.0, %v2739
    %v2741 = vpop.f32.mrf.mxu0
    %2742 = vmatprep.mubr.f32.mxu0 %v2617
    %2743 = vmatmul.mubr.f32.gmra.mxu0 %v2616
    %v2744 = vpop.f32.mrf.mxu0
    %v2745 = vadd.f32 0.0, %v2744
    %v2746 = vpop.f32.mrf.mxu0
    %2747 = vmatprep.mubr.f32.mxu0 %v2619
    %2748 = vmatmul.mubr.f32.gmra.mxu0 %v2618
    %v2749 = vpop.f32.mrf.mxu0
    %v2750 = vadd.f32 0.0, %v2749
    %v2751 = vpop.f32.mrf.mxu0
    %2752 = vmatprep.mubr.f32.mxu0 %v2621
    %2753 = vmatmul.mubr.f32.gmra.mxu0 %v2620
    %v2754 = vpop.f32.mrf.mxu0
    %v2755 = vadd.f32 0.0, %v2754
    %v2756 = vpop.f32.mrf.mxu0
    %2757 = vmatprep.mubr.f32.mxu0 %v2623
    %2758 = vmatmul.mubr.f32.gmra.mxu0 %v2622
    %v2759 = vpop.f32.mrf.mxu0
    %v2760 = vadd.f32 0.0, %v2759
    %v2761 = vpop.f32.mrf.mxu0
    %2762 = vmatprep.mubr.f32.mxu0 %v2625
    %2763 = vmatmul.mubr.f32.gmra.mxu0 %v2624
    %v2764 = vpop.f32.mrf.mxu0
    %v2765 = vadd.f32 0.0, %v2764
    %v2766 = vpop.f32.mrf.mxu0
    %2767 = vmatprep.mubr.f32.mxu0 %v2627
    %2768 = vmatmul.mubr.f32.gmra.mxu0 %v2626
    %v2769 = vpop.f32.mrf.mxu0
    %v2770 = vadd.f32 0.0, %v2769
    %v2771 = vpop.f32.mrf.mxu0
    %2772 = vdwg.mxu0
    %2773 = vst [vmem:[#allocation9] sm:$0xff] %v2596
    %2774 = vst [vmem:[#allocation9 + $0x8] sm:$0xff] %v2597
    %2775 = vst [vmem:[#allocation9 + $0x10] sm:$0xff] %v2598
    %2776 = vst [vmem:[#allocation9 + $0x18] sm:$0xff] %v2599
    %2777 = vst [vmem:[#allocation9 + $0x20] sm:$0xff] %v2600
    %2778 = vst [vmem:[#allocation9 + $0x28] sm:$0xff] %v2601
    %2779 = vst [vmem:[#allocation9 + $0x30] sm:$0xff] %v2602
    %2780 = vst [vmem:[#allocation9 + $0x38] sm:$0xff] %v2603
    %2781 = vst [vmem:[#allocation9 + $0x40] sm:$0xff] %v2604
    %2782 = vst [vmem:[#allocation9 + $0x48] sm:$0xff] %v2605
    %2783 = vst [vmem:[#allocation9 + $0x50] sm:$0xff] %v2606
    %2784 = vst [vmem:[#allocation9 + $0x58] sm:$0xff] %v2607
    %2785 = vst [vmem:[#allocation9 + $0x60] sm:$0xff] %v2608
    %2786 = vst [vmem:[#allocation9 + $0x68] sm:$0xff] %v2609
    %2787 = vst [vmem:[#allocation9 + $0x70] sm:$0xff] %v2610
    %2788 = vst [vmem:[#allocation9 + $0x78] sm:$0xff] %v2611
    %2789 = vst [vmem:[#allocation9 + $0x80] sm:$0xff] %v2612
    %2790 = vst [vmem:[#allocation9 + $0x88] sm:$0xff] %v2613
    %2791 = vst [vmem:[#allocation9 + $0x90] sm:$0xff] %v2614
    %2792 = vst [vmem:[#allocation9 + $0x98] sm:$0xff] %v2615
    %2793 = vst [vmem:[#allocation9 + $0xa0] sm:$0xff] %v2616
    %2794 = vst [vmem:[#allocation9 + $0xa8] sm:$0xff] %v2617
    %2795 = vst [vmem:[#allocation9 + $0xb0] sm:$0xff] %v2618
    %2796 = vst [vmem:[#allocation9 + $0xb8] sm:$0xff] %v2619
    %2797 = vst [vmem:[#allocation9 + $0xc0] sm:$0xff] %v2620
    %2798 = vst [vmem:[#allocation9 + $0xc8] sm:$0xff] %v2621
    %2799 = vst [vmem:[#allocation9 + $0xd0] sm:$0xff] %v2622
    %2800 = vst [vmem:[#allocation9 + $0xd8] sm:$0xff] %v2623
    %2801 = vst [vmem:[#allocation9 + $0xe0] sm:$0xff] %v2624
    %2802 = vst [vmem:[#allocation9 + $0xe8] sm:$0xff] %v2625
    %2803 = vst [vmem:[#allocation9 + $0xf0] sm:$0xff] %v2626
    %2804 = vst [vmem:[#allocation9 + $0xf8] sm:$0xff] %v2627
    %2805 = vst [vmem:[#allocation8] sm:$0xff] %v2695
    %2806 = vst [vmem:[#allocation8 + $0x8] sm:$0xff] %v2700
    %2807 = vst [vmem:[#allocation8 + $0x10] sm:$0xff] %v2705
    %2808 = vst [vmem:[#allocation8 + $0x18] sm:$0xff] %v2710
    %2809 = vst [vmem:[#allocation8 + $0x20] sm:$0xff] %v2715
    %2810 = vst [vmem:[#allocation8 + $0x28] sm:$0xff] %v2720
    %2811 = vst [vmem:[#allocation8 + $0x30] sm:$0xff] %v2725
    %2812 = vst [vmem:[#allocation8 + $0x38] sm:$0xff] %v2730
    %2813 = vst [vmem:[#allocation8 + $0x40] sm:$0xff] %v2735
    %2814 = vst [vmem:[#allocation8 + $0x48] sm:$0xff] %v2740
    %2815 = vst [vmem:[#allocation8 + $0x50] sm:$0xff] %v2745
    %2816 = vst [vmem:[#allocation8 + $0x58] sm:$0xff] %v2750
    %2817 = vst [vmem:[#allocation8 + $0x60] sm:$0xff] %v2755
    %2818 = vst [vmem:[#allocation8 + $0x68] sm:$0xff] %v2760
    %2819 = vst [vmem:[#allocation8 + $0x70] sm:$0xff] %v2765
    %2820 = vst [vmem:[#allocation8 + $0x78] sm:$0xff] %v2770
    // Predicated region
    $region26: #{tpu_custom_call.1} parent=1 // pred_check
      _
    $region27: #{tpu_custom_call.1} parent=1 // pred_check_branch
      %2822 = sbr.rel (0) target = $region29
    $region28: #{tpu_custom_call.1} parent=1 // pred_region
      %s2824 = ssub.s32 2048, 2048
      %2825 = vsyncadd [#allocation4], %s2824
      %s2826 = sshll.u32 [#allocation8], 4
      %s2827 = int_to_ptr.vmem [resolvable:$true] %s2826
      %2832 = dma.vmem_to_hbm [thread:$0]  %s2827, 2048, %s3, [#allocation4], 128, 128, 8
    $region29: #{tpu_custom_call.1} parent=1 // pred_fallthru
      _
    // Predicated region
    $region30: #{tpu_custom_call.1} parent=1 // pred_check
      _
    $region31: #{tpu_custom_call.1} parent=1 // pred_check_branch
      %2834 = sbr.rel (0) target = $region33
    $region32: #{tpu_custom_call.1} parent=1 // pred_region
      %s2836 = ssub.s32 4096, 4096
      %2837 = vsyncadd [#allocation10], %s2836
      %s2838 = sshll.u32 [#allocation9], 4
      %s2839 = int_to_ptr.vmem [resolvable:$true] %s2838
      %2844 = dma.vmem_to_hbm [thread:$0]  %s2839, 4096, %s4, [#allocation10], 256, 256, 16
    $region33: #{tpu_custom_call.1} parent=1 // pred_fallthru
      _
    // Predicated region
    $region34: #{tpu_custom_call.1} parent=1 // pred_check
      _
    $region35: #{tpu_custom_call.1} parent=1 // pred_check_branch
      %2846 = sbr.rel (0) target = $region37
    $region36: #{tpu_custom_call.1} parent=1 // pred_region
      %2847 = dma.done [#allocation4], 2048
    $region37: #{tpu_custom_call.1} parent=1 // pred_fallthru
      _
    // Predicated region
    $region38: #{tpu_custom_call.1} parent=1 // pred_check
      _
    $region39: #{tpu_custom_call.1} parent=1 // pred_check_branch
      %2849 = sbr.rel (0) target = $region41
    $region40: #{tpu_custom_call.1} parent=1 // pred_region
      %2850 = dma.done [#allocation10], 4096
    $region41: #{tpu_custom_call.1} parent=1 // pred_fallthru
      _
    %2851 = vsyncpa [#allocation3], 1
    %2852 = vsyncpa [#allocation6], 1
    %2853 = vsyncpa [#allocation4], 1
    %2854 = vsyncpa [#allocation10], 1

// kernel: tpu_custom_call.1
$region0: #{tpu_custom_call.1}
  #allocation0 [shape = 'u32[]', space=smem, size = 0x4, offset = 0x4, fixed_abs, tag = 'smem constant byte address 0x4 - core index']
  #allocation1 [shape = 'u32[144,128]{1,0:T(1,128)}', space=vmem, size = 0x12000, scoped, tag = 'internal scratch']
  %s0 = inlined_call_operand.hbm [shape: f32[128,128], index: 0, kind: input, shape index: {}]
  %s1 = inlined_call_operand.hbm [shape: f32[256,128], index: 1, kind: input, shape index: {}]
  %s2 = inlined_call_operand.hbm [shape: f32[128,256], index: 2, kind: input, shape index: {}]
  %s3 = inlined_call_operand.hbm [shape: f32[128,128], index: 3, kind: output, shape index: {0}]
  %s4 = inlined_call_operand.hbm [shape: f32[128,256], index: 4, kind: output, shape index: {1}]
  %5 = xla_tuple %s3, %s4
  %s6 = sld [smem:[#allocation0]]
  $region42: #{tpu_custom_call.1} parent=0
    _
  %s8 = ssub.s32 1, %s6
  %s9 = scalar_select 0, %s8, %s6
  $region1: #{tpu_custom_call.1} parent=0
    #allocation2 [shape = 'u8[65536]{0}', space=vmem, size = 0x10000, scoped, tag = 'input window, operand 0, single buffered']
    #allocation3 [shape = 's32[1]{0}', space=sflag, size = 0x4, scoped, tag = 'scoped memory for tpu_custom_call.1']
    #allocation4 [shape = 's32[1]{0}', space=sflag, size = 0x4, scoped, tag = 'scoped memory for tpu_custom_call.1']
    #allocation5 [shape = 'u8[131072]{0}', space=vmem, size = 0x20000, scoped, tag = 'input window, operand 1, single buffered']
    #allocation6 [shape = 's32[1]{0}', space=sflag, size = 0x4, scoped, tag = 'scoped memory for tpu_custom_call.1']
    #allocation7 [shape = 'u8[131072]{0}', space=vmem, size = 0x20000, scoped, tag = 'input window, operand 2, single buffered']
    #allocation8 [shape = 'u8[65536]{0}', space=vmem, size = 0x10000, scoped, tag = 'output window, operand 0, single buffered']
    #allocation9 [shape = 'u8[131072]{0}', space=vmem, size = 0x20000, scoped, tag = 'output window, operand 1, single buffered']
    #allocation10 [shape = 's32[1]{0}', space=sflag, size = 0x4, scoped, tag = 'scoped memory for tpu_custom_call.1']
    %10 = vsyncpa [#allocation3], 0
    %11 = vsyncpa [#allocation6], 0
    %12 = vsyncpa [#allocation4], 0
    %13 = vsyncpa [#allocation10], 0
    // Predicated region
    $region2: #{tpu_custom_call.1} parent=1 // pred_check
      _
    $region3: #{tpu_custom_call.1} parent=1 // pred_check_branch
      %15 = sbr.rel (0) target = $region5
    $region4: #{tpu_custom_call.1} parent=1 // pred_region
      %s17 = ssub.s32 2048, 2048
      %18 = vsyncadd [#allocation3], %s17
      %s19 = sshll.u32 [#allocation2], 4
      %s20 = int_to_ptr.vmem [resolvable:$true] %s19
      %25 = dma.hbm_to_vmem [thread:$0]  %s0, 2048, %s20, [#allocation3], 128, 128, 8
    $region5: #{tpu_custom_call.1} parent=1 // pred_fallthru
      _
    // Predicated region
    $region6: #{tpu_custom_call.1} parent=1 // pred_check
      _
    $region7: #{tpu_custom_call.1} parent=1 // pred_check_branch
      %27 = sbr.rel (0) target = $region9
    $region8: #{tpu_custom_call.1} parent=1 // pred_region
      %s29 = ssub.s32 4096, 4096
      %30 = vsyncadd [#allocation6], %s29
      %s31 = sshll.u32 [#allocation5], 4
      %s32 = int_to_ptr.vmem [resolvable:$true] %s31
      %37 = dma.hbm_to_vmem [thread:$0]  %s1, 4096, %s32, [#allocation6], 128, 128, 8
    $region9: #{tpu_custom_call.1} parent=1 // pred_fallthru
      _
    // Predicated region
    $region10: #{tpu_custom_call.1} parent=1 // pred_check
      _
    $region11: #{tpu_custom_call.1} parent=1 // pred_check_branch
      %39 = sbr.rel (0) target = $region13
    $region12: #{tpu_custom_call.1} parent=1 // pred_region
      %s41 = ssub.s32 4096, 4096
      %42 = vsyncadd [#allocation6], %s41
      %s43 = sshll.u32 [#allocation7], 4
      %s44 = int_to_ptr.vmem [resolvable:$true] %s43
      %49 = dma.hbm_to_vmem [thread:$0]  %s2, 4096, %s44, [#allocation6], 256, 256, 16
    $region13: #{tpu_custom_call.1} parent=1 // pred_fallthru
      _
    // Predicated region
    $region14: #{tpu_custom_call.1} parent=1 // pred_check
      _
    $region15: #{tpu_custom_call.1} parent=1 // pred_check_branch
      %51 = sbr.rel (0) target = $region17
    $region16: #{tpu_custom_call.1} parent=1 // pred_region
      %52 = dma.done [#allocation3], 2048
    $region17: #{tpu_custom_call.1} parent=1 // pred_fallthru
      _
    // Predicated region
    $region18: #{tpu_custom_call.1} parent=1 // pred_check
      _
    $region19: #{tpu_custom_call.1} parent=1 // pred_check_branch
      %54 = sbr.rel (0) target = $region21
    $region20: #{tpu_custom_call.1} parent=1 // pred_region
      %55 = dma.done [#allocation6], 4096
    $region21: #{tpu_custom_call.1} parent=1 // pred_fallthru
      _
    // Predicated region
    $region22: #{tpu_custom_call.1} parent=1 // pred_check
      _
    $region23: #{tpu_custom_call.1} parent=1 // pred_check_branch
      %57 = sbr.rel (0) target = $region25
    $region24: #{tpu_custom_call.1} parent=1 // pred_region
      %58 = dma.done [#allocation6], 4096
    $region25: #{tpu_custom_call.1} parent=1 // pred_fallthru
      _
    %v59 = vld [vmem:[#allocation2] sm:$0xff]
    %v60 = vld [vmem:[#allocation2 + $0x8] sm:$0xff]
    %v61 = vld [vmem:[#allocation2 + $0x10] sm:$0xff]
    %v62 = vld [vmem:[#allocation2 + $0x18] sm:$0xff]
    %v63 = vld [vmem:[#allocation2 + $0x20] sm:$0xff]
    %v64 = vld [vmem:[#allocation2 + $0x28] sm:$0xff]
    %v65 = vld [vmem:[#allocation2 + $0x30] sm:$0xff]
    %v66 = vld [vmem:[#allocation2 + $0x38] sm:$0xff]
    %v67 = vld [vmem:[#allocation2 + $0x40] sm:$0xff]
    %v68 = vld [vmem:[#allocation2 + $0x48] sm:$0xff]
    %v69 = vld [vmem:[#allocation2 + $0x50] sm:$0xff]
    %v70 = vld [vmem:[#allocation2 + $0x58] sm:$0xff]
    %v71 = vld [vmem:[#allocation2 + $0x60] sm:$0xff]
    %v72 = vld [vmem:[#allocation2 + $0x68] sm:$0xff]
    %v73 = vld [vmem:[#allocation2 + $0x70] sm:$0xff]
    %v74 = vld [vmem:[#allocation2 + $0x78] sm:$0xff]
    %v75 = vld [vmem:[#allocation5] sm:$0xff]
    %v76 = vld [vmem:[#allocation5 + $0x8] sm:$0xff]
    %v77 = vld [vmem:[#allocation5 + $0x10] sm:$0xff]
    %v78 = vld [vmem:[#allocation5 + $0x18] sm:$0xff]
    %v79 = vld [vmem:[#allocation5 + $0x20] sm:$0xff]
    %v80 = vld [vmem:[#allocation5 + $0x28] sm:$0xff]
    %v81 = vld [vmem:[#allocation5 + $0x30] sm:$0xff]
    %v82 = vld [vmem:[#allocation5 + $0x38] sm:$0xff]
    %v83 = vld [vmem:[#allocation5 + $0x40] sm:$0xff]
    %v84 = vld [vmem:[#allocation5 + $0x48] sm:$0xff]
    %v85 = vld [vmem:[#allocation5 + $0x50] sm:$0xff]
    %v86 = vld [vmem:[#allocation5 + $0x58] sm:$0xff]
    %v87 = vld [vmem:[#allocation5 + $0x60] sm:$0xff]
    %v88 = vld [vmem:[#allocation5 + $0x68] sm:$0xff]
    %v89 = vld [vmem:[#allocation5 + $0x70] sm:$0xff]
    %v90 = vld [vmem:[#allocation5 + $0x78] sm:$0xff]
    %v91 = vld [vmem:[#allocation5 + $0x80] sm:$0xff]
    %v92 = vld [vmem:[#allocation5 + $0x88] sm:$0xff]
    %v93 = vld [vmem:[#allocation5 + $0x90] sm:$0xff]
    %v94 = vld [vmem:[#allocation5 + $0x98] sm:$0xff]
    %v95 = vld [vmem:[#allocation5 + $0xa0] sm:$0xff]
    %v96 = vld [vmem:[#allocation5 + $0xa8] sm:$0xff]
    %v97 = vld [vmem:[#allocation5 + $0xb0] sm:$0xff]
    %v98 = vld [vmem:[#allocation5 + $0xb8] sm:$0xff]
    %v99 = vld [vmem:[#allocation5 + $0xc0] sm:$0xff]
    %v100 = vld [vmem:[#allocation5 + $0xc8] sm:$0xff]
    %v101 = vld [vmem:[#allocation5 + $0xd0] sm:$0xff]
    %v102 = vld [vmem:[#allocation5 + $0xd8] sm:$0xff]
    %v103 = vld [vmem:[#allocation5 + $0xe0] sm:$0xff]
    %v104 = vld [vmem:[#allocation5 + $0xe8] sm:$0xff]
    %v105 = vld [vmem:[#allocation5 + $0xf0] sm:$0xff]
    %v106 = vld [vmem:[#allocation5 + $0xf8] sm:$0xff]
    %v107 = vld [vmem:[#allocation7] sm:$0xff]
    %v108 = vld [vmem:[#allocation7 + $0x8] sm:$0xff]
    %v109 = vld [vmem:[#allocation7 + $0x10] sm:$0xff]
    %v110 = vld [vmem:[#allocation7 + $0x18] sm:$0xff]
    %v111 = vld [vmem:[#allocation7 + $0x20] sm:$0xff]
    %v112 = vld [vmem:[#allocation7 + $0x28] sm:$0xff]
    %v113 = vld [vmem:[#allocation7 + $0x30] sm:$0xff]
    %v114 = vld [vmem:[#allocation7 + $0x38] sm:$0xff]
    %v115 = vld [vmem:[#allocation7 + $0x40] sm:$0xff]
    %v116 = vld [vmem:[#allocation7 + $0x48] sm:$0xff]
    %v117 = vld [vmem:[#allocation7 + $0x50] sm:$0xff]
    %v118 = vld [vmem:[#allocation7 + $0x58] sm:$0xff]
    %v119 = vld [vmem:[#allocation7 + $0x60] sm:$0xff]
    %v120 = vld [vmem:[#allocation7 + $0x68] sm:$0xff]
    %v121 = vld [vmem:[#allocation7 + $0x70] sm:$0xff]
    %v122 = vld [vmem:[#allocation7 + $0x78] sm:$0xff]
    %v123 = vld [vmem:[#allocation7 + $0x80] sm:$0xff]
    %v124 = vld [vmem:[#allocation7 + $0x88] sm:$0xff]
    %v125 = vld [vmem:[#allocation7 + $0x90] sm:$0xff]
    %v126 = vld [vmem:[#allocation7 + $0x98] sm:$0xff]
    %v127 = vld [vmem:[#allocation7 + $0xa0] sm:$0xff]
    %v128 = vld [vmem:[#allocation7 + $0xa8] sm:$0xff]
    %v129 = vld [vmem:[#allocation7 + $0xb0] sm:$0xff]
    %v130 = vld [vmem:[#allocation7 + $0xb8] sm:$0xff]
    %v131 = vld [vmem:[#allocation7 + $0xc0] sm:$0xff]
    %v132 = vld [vmem:[#allocation7 + $0xc8] sm:$0xff]
    %v133 = vld [vmem:[#allocation7 + $0xd0] sm:$0xff]
    %v134 = vld [vmem:[#allocation7 + $0xd8] sm:$0xff]
    %v135 = vld [vmem:[#allocation7 + $0xe0] sm:$0xff]
    %v136 = vld [vmem:[#allocation7 + $0xe8] sm:$0xff]
    %v137 = vld [vmem:[#allocation7 + $0xf0] sm:$0xff]
    %v138 = vld [vmem:[#allocation7 + $0xf8] sm:$0xff]
    %139 = vmatprep.subr.mxu0 %v138
    %140 = vmatpush1.msra.mxu0 %v137
    %141 = vmatprep.subr.mxu0 %v136
    %142 = vmatpush1.msra.mxu0 %v135
    %143 = vmatprep.subr.mxu0 %v134
    %144 = vmatpush1.msra.mxu0 %v133
    %145 = vmatprep.subr.mxu0 %v132
    %146 = vmatpush1.msra.mxu0 %v131
    %147 = vmatprep.subr.mxu0 %v130
    %148 = vmatpush1.msra.mxu0 %v129
    %149 = vmatprep.subr.mxu0 %v128
    %150 = vmatpush1.msra.mxu0 %v127
    %151 = vmatprep.subr.mxu0 %v126
    %152 = vmatpush1.msra.mxu0 %v125
    %153 = vmatprep.subr.mxu0 %v124
    %154 = vmatpush1.msra.mxu0 %v123
    %155 = vmatprep.subr.mxu0 %v122
    %156 = vmatpush1.msra.mxu0 %v121
    %157 = vmatprep.subr.mxu0 %v120
    %158 = vmatpush1.msra.mxu0 %v119
    %159 = vmatprep.subr.mxu0 %v118
    %160 = vmatpush1.msra.mxu0 %v117
    %161 = vmatprep.subr.mxu0 %v116
    %162 = vmatpush1.msra.mxu0 %v115
    %163 = vmatprep.subr.mxu0 %v114
    %164 = vmatpush1.msra.mxu0 %v113
    %165 = vmatprep.subr.mxu0 %v112
    %166 = vmatpush1.msra.mxu0 %v111
    %167 = vmatprep.subr.mxu0 %v110
    %168 = vmatpush1.msra.mxu0 %v109
    %169 = vmatprep.subr.mxu0 %v108
    %170 = vmatpush1.msra.mxu0 %v107
    %171 = vmatprep.subr.mxu0 0.0
    %172 = vmatpush2.msra.mxu0 0.0
    %173 = vmatprep.subr.mxu0 0.0
    %174 = vmatpush2.msra.mxu0 0.0
    %175 = vmatprep.subr.mxu0 0.0
    %176 = vmatpush2.msra.mxu0 0.0
    %177 = vmatprep.subr.mxu0 0.0
    %178 = vmatpush2.msra.mxu0 0.0
    %179 = vmatprep.subr.mxu0 0.0
    %180 = vmatpush2.msra.mxu0 0.0
    %181 = vmatprep.subr.mxu0 0.0
    %182 = vmatpush2.msra.mxu0 0.0
    %183 = vmatprep.subr.mxu0 0.0
    %184 = vmatpush2.msra.mxu0 0.0
    %185 = vmatprep.subr.mxu0 0.0
    %186 = vmatpush2.msra.mxu0 0.0
    %187 = vmatprep.subr.mxu0 0.0
    %188 = vmatpush2.msra.mxu0 0.0
    %189 = vmatprep.subr.mxu0 0.0
    %190 = vmatpush2.msra.mxu0 0.0
    %191 = vmatprep.subr.mxu0 0.0
    %192 = vmatpush2.msra.mxu0 0.0
    %193 = vmatprep.subr.mxu0 0.0
    %194 = vmatpush2.msra.mxu0 0.0
    %195 = vmatprep.subr.mxu0 0.0
    %196 = vmatpush2.msra.mxu0 0.0
    %197 = vmatprep.subr.mxu0 0.0
    %198 = vmatpush2.msra.mxu0 0.0
    %199 = vmatprep.subr.mxu0 0.0
    %200 = vmatpush2.msra.mxu0 0.0
    %201 = vmatprep.subr.mxu0 0.0
    %202 = vmatpush2.msra.mxu0 0.0
    %203 = vmatprep.mubr.f32.mxu0 0.0
    %204 = vmatmul.mubr.f32.gmra.mxu0 %v59
    %v205 = vpop.f32.mrf.mxu0
    %v206 = vadd.f32 0.0, %v205
    %v207 = vpop.f32.mrf.mxu0
    %v208 = vadd.f32 0.0, %v207
    %209 = vmatprep.mubr.f32.mxu0 0.0
    %210 = vmatmul.mubr.f32.gmra.mxu0 %v60
    %v211 = vpop.f32.mrf.mxu0
    %v212 = vadd.f32 0.0, %v211
    %v213 = vpop.f32.mrf.mxu0
    %v214 = vadd.f32 0.0, %v213
    %215 = vmatprep.mubr.f32.mxu0 0.0
    %216 = vmatmul.mubr.f32.gmra.mxu0 %v61
    %v217 = vpop.f32.mrf.mxu0
    %v218 = vadd.f32 0.0, %v217
    %v219 = vpop.f32.mrf.mxu0
    %v220 = vadd.f32 0.0, %v219
    %221 = vmatprep.mubr.f32.mxu0 0.0
    %222 = vmatmul.mubr.f32.gmra.mxu0 %v62
    %v223 = vpop.f32.mrf.mxu0
    %v224 = vadd.f32 0.0, %v223
    %v225 = vpop.f32.mrf.mxu0
    %v226 = vadd.f32 0.0, %v225
    %227 = vmatprep.mubr.f32.mxu0 0.0
    %228 = vmatmul.mubr.f32.gmra.mxu0 %v63
    %v229 = vpop.f32.mrf.mxu0
    %v230 = vadd.f32 0.0, %v229
    %v231 = vpop.f32.mrf.mxu0
    %v232 = vadd.f32 0.0, %v231
    %233 = vmatprep.mubr.f32.mxu0 0.0
    %234 = vmatmul.mubr.f32.gmra.mxu0 %v64
    %v235 = vpop.f32.mrf.mxu0
    %v236 = vadd.f32 0.0, %v235
    %v237 = vpop.f32.mrf.mxu0
    %v238 = vadd.f32 0.0, %v237
    %239 = vmatprep.mubr.f32.mxu0 0.0
    %240 = vmatmul.mubr.f32.gmra.mxu0 %v65
    %v241 = vpop.f32.mrf.mxu0
    %v242 = vadd.f32 0.0, %v241
    %v243 = vpop.f32.mrf.mxu0
    %v244 = vadd.f32 0.0, %v243
    %245 = vmatprep.mubr.f32.mxu0 0.0
    %246 = vmatmul.mubr.f32.gmra.mxu0 %v66
    %v247 = vpop.f32.mrf.mxu0
    %v248 = vadd.f32 0.0, %v247
    %v249 = vpop.f32.mrf.mxu0
    %v250 = vadd.f32 0.0, %v249
    %251 = vmatprep.mubr.f32.mxu0 0.0
    %252 = vmatmul.mubr.f32.gmra.mxu0 %v67
    %v253 = vpop.f32.mrf.mxu0
    %v254 = vadd.f32 0.0, %v253
    %v255 = vpop.f32.mrf.mxu0
    %v256 = vadd.f32 0.0, %v255
    %257 = vmatprep.mubr.f32.mxu0 0.0
    %258 = vmatmul.mubr.f32.gmra.mxu0 %v68
    %v259 = vpop.f32.mrf.mxu0
    %v260 = vadd.f32 0.0, %v259
    %v261 = vpop.f32.mrf.mxu0
    %v262 = vadd.f32 0.0, %v261
    %263 = vmatprep.mubr.f32.mxu0 0.0
    %264 = vmatmul.mubr.f32.gmra.mxu0 %v69
    %v265 = vpop.f32.mrf.mxu0
    %v266 = vadd.f32 0.0, %v265
    %v267 = vpop.f32.mrf.mxu0
    %v268 = vadd.f32 0.0, %v267
    %269 = vmatprep.mubr.f32.mxu0 0.0
    %270 = vmatmul.mubr.f32.gmra.mxu0 %v70
    %v271 = vpop.f32.mrf.mxu0
    %v272 = vadd.f32 0.0, %v271
    %v273 = vpop.f32.mrf.mxu0
    %v274 = vadd.f32 0.0, %v273
    %275 = vmatprep.mubr.f32.mxu0 0.0
    %276 = vmatmul.mubr.f32.gmra.mxu0 %v71
    %v277 = vpop.f32.mrf.mxu0
    %v278 = vadd.f32 0.0, %v277
    %v279 = vpop.f32.mrf.mxu0
    %v280 = vadd.f32 0.0, %v279
    %281 = vmatprep.mubr.f32.mxu0 0.0
    %282 = vmatmul.mubr.f32.gmra.mxu0 %v72
    %v283 = vpop.f32.mrf.mxu0
    %v284 = vadd.f32 0.0, %v283
    %v285 = vpop.f32.mrf.mxu0
    %v286 = vadd.f32 0.0, %v285
    %287 = vmatprep.mubr.f32.mxu0 0.0
    %288 = vmatmul.mubr.f32.gmra.mxu0 %v73
    %v289 = vpop.f32.mrf.mxu0
    %v290 = vadd.f32 0.0, %v289
    %v291 = vpop.f32.mrf.mxu0
    %v292 = vadd.f32 0.0, %v291
    %293 = vmatprep.mubr.f32.mxu0 0.0
    %294 = vmatmul.mubr.f32.gmra.mxu0 %v74
    %v295 = vpop.f32.mrf.mxu0
    %v296 = vadd.f32 0.0, %v295
    %v297 = vpop.f32.mrf.mxu0
    %v298 = vadd.f32 0.0, %v297
    %299 = vdwg.mxu0
    %v300 = vmul.f32 %v206, 0.1
    %v301 = vmul.f32 %v208, 0.1
    %v302 = vmul.f32 %v212, 0.1
    %v303 = vmul.f32 %v214, 0.1
    %v304 = vmul.f32 %v218, 0.1
    %v305 = vmul.f32 %v220, 0.1
    %v306 = vmul.f32 %v224, 0.1
    %v307 = vmul.f32 %v226, 0.1
    %v308 = vmul.f32 %v230, 0.1
    %v309 = vmul.f32 %v232, 0.1
    %v310 = vmul.f32 %v236, 0.1
    %v311 = vmul.f32 %v238, 0.1
    %v312 = vmul.f32 %v242, 0.1
    %v313 = vmul.f32 %v244, 0.1
    %v314 = vmul.f32 %v248, 0.1
    %v315 = vmul.f32 %v250, 0.1
    %v316 = vmul.f32 %v254, 0.1
    %v317 = vmul.f32 %v256, 0.1
    %v318 = vmul.f32 %v260, 0.1
    %v319 = vmul.f32 %v262, 0.1
    %v320 = vmul.f32 %v266, 0.1
    %v321 = vmul.f32 %v268, 0.1
    %v322 = vmul.f32 %v272, 0.1
    %v323 = vmul.f32 %v274, 0.1
    %v324 = vmul.f32 %v278, 0.1
    %v325 = vmul.f32 %v280, 0.1
    %v326 = vmul.f32 %v284, 0.1
    %v327 = vmul.f32 %v286, 0.1
    %v328 = vmul.f32 %v290, 0.1
    %v329 = vmul.f32 %v292, 0.1
    %v330 = vmul.f32 %v296, 0.1
    %v331 = vmul.f32 %v298, 0.1
    %v332 = vsub.f32 %v300, 0.01
    %v333 = vsub.f32 %v301, 0.01
    %v334 = vsub.f32 %v302, 0.01
    %v335 = vsub.f32 %v303, 0.01
    %v336 = vsub.f32 %v304, 0.01
    %v337 = vsub.f32 %v305, 0.01
    %v338 = vsub.f32 %v306, 0.01
    %v339 = vsub.f32 %v307, 0.01
    %v340 = vsub.f32 %v308, 0.01
    %v341 = vsub.f32 %v309, 0.01
    %v342 = vsub.f32 %v310, 0.01
    %v343 = vsub.f32 %v311, 0.01
    %v344 = vsub.f32 %v312, 0.01
    %v345 = vsub.f32 %v313, 0.01
    %v346 = vsub.f32 %v314, 0.01
    %v347 = vsub.f32 %v315, 0.01
    %v348 = vsub.f32 %v316, 0.01
    %v349 = vsub.f32 %v317, 0.01
    %v350 = vsub.f32 %v318, 0.01
    %v351 = vsub.f32 %v319, 0.01
    %v352 = vsub.f32 %v320, 0.01
    %v353 = vsub.f32 %v321, 0.01
    %v354 = vsub.f32 %v322, 0.01
    %v355 = vsub.f32 %v323, 0.01
    %v356 = vsub.f32 %v324, 0.01
    %v357 = vsub.f32 %v325, 0.01
    %v358 = vsub.f32 %v326, 0.01
    %v359 = vsub.f32 %v327, 0.01
    %v360 = vsub.f32 %v328, 0.01
    %v361 = vsub.f32 %v329, 0.01
    %v362 = vsub.f32 %v330, 0.01
    %v363 = vsub.f32 %v331, 0.01
    %v364 = vmax.f32 %v332, 0.0
    %v365 = vmax.f32 %v333, 0.0
    %v366 = vmax.f32 %v334, 0.0
    %v367 = vmax.f32 %v335, 0.0
    %v368 = vmax.f32 %v336, 0.0
    %v369 = vmax.f32 %v337, 0.0
    %v370 = vmax.f32 %v338, 0.0
    %v371 = vmax.f32 %v339, 0.0
    %v372 = vmax.f32 %v340, 0.0
    %v373 = vmax.f32 %v341, 0.0
    %v374 = vmax.f32 %v342, 0.0
    %v375 = vmax.f32 %v343, 0.0
    %v376 = vmax.f32 %v344, 0.0
    %v377 = vmax.f32 %v345, 0.0
    %v378 = vmax.f32 %v346, 0.0
    %v379 = vmax.f32 %v347, 0.0
    %v380 = vmax.f32 %v348, 0.0
    %v381 = vmax.f32 %v349, 0.0
    %v382 = vmax.f32 %v350, 0.0
    %v383 = vmax.f32 %v351, 0.0
    %v384 = vmax.f32 %v352, 0.0
    %v385 = vmax.f32 %v353, 0.0
    %v386 = vmax.f32 %v354, 0.0
    %v387 = vmax.f32 %v355, 0.0
    %v388 = vmax.f32 %v356, 0.0
    %v389 = vmax.f32 %v357, 0.0
    %v390 = vmax.f32 %v358, 0.0
    %v391 = vmax.f32 %v359, 0.0
    %v392 = vmax.f32 %v360, 0.0
    %v393 = vmax.f32 %v361, 0.0
    %v394 = vmax.f32 %v362, 0.0
    %v395 = vmax.f32 %v363, 0.0
    %396 = vmatprep.subr.mxu0 0.0
    %397 = vmatpush1.msra.mxu0 %v90
    %398 = vmatprep.subr.mxu0 0.0
    %399 = vmatpush1.msra.mxu0 %v89
    %400 = vmatprep.subr.mxu0 0.0
    %401 = vmatpush1.msra.mxu0 %v88
    %402 = vmatprep.subr.mxu0 0.0
    %403 = vmatpush1.msra.mxu0 %v87
    %404 = vmatprep.subr.mxu0 0.0
    %405 = vmatpush1.msra.mxu0 %v86
    %406 = vmatprep.subr.mxu0 0.0
    %407 = vmatpush1.msra.mxu0 %v85
    %408 = vmatprep.subr.mxu0 0.0
    %409 = vmatpush1.msra.mxu0 %v84
    %410 = vmatprep.subr.mxu0 0.0
    %411 = vmatpush1.msra.mxu0 %v83
    %412 = vmatprep.subr.mxu0 0.0
    %413 = vmatpush1.msra.mxu0 %v82
    %414 = vmatprep.subr.mxu0 0.0
    %415 = vmatpush1.msra.mxu0 %v81
    %416 = vmatprep.subr.mxu0 0.0
    %417 = vmatpush1.msra.mxu0 %v80
    %418 = vmatprep.subr.mxu0 0.0
    %419 = vmatpush1.msra.mxu0 %v79
    %420 = vmatprep.subr.mxu0 0.0
    %421 = vmatpush1.msra.mxu0 %v78
    %422 = vmatprep.subr.mxu0 0.0
    %423 = vmatpush1.msra.mxu0 %v77
    %424 = vmatprep.subr.mxu0 0.0
    %425 = vmatpush1.msra.mxu0 %v76
    %426 = vmatprep.subr.mxu0 0.0
    %427 = vmatpush1.msra.mxu0 %v75
    %428 = vmatprep.subr.mxu0 0.0
    %429 = vmatpush2.msra.mxu0 %v106
    %430 = vmatprep.subr.mxu0 0.0
    %431 = vmatpush2.msra.mxu0 %v105
    %432 = vmatprep.subr.mxu0 0.0
    %433 = vmatpush2.msra.mxu0 %v104
    %434 = vmatprep.subr.mxu0 0.0
    %435 = vmatpush2.msra.mxu0 %v103
    %436 = vmatprep.subr.mxu0 0.0
    %437 = vmatpush2.msra.mxu0 %v102
    %438 = vmatprep.subr.mxu0 0.0
    %439 = vmatpush2.msra.mxu0 %v101
    %440 = vmatprep.subr.mxu0 0.0
    %441 = vmatpush2.msra.mxu0 %v100
    %442 = vmatprep.subr.mxu0 0.0
    %443 = vmatpush2.msra.mxu0 %v99
    %444 = vmatprep.subr.mxu0 0.0
    %445 = vmatpush2.msra.mxu0 %v98
    %446 = vmatprep.subr.mxu0 0.0
    %447 = vmatpush2.msra.mxu0 %v97
    %448 = vmatprep.subr.mxu0 0.0
    %449 = vmatpush2.msra.mxu0 %v96
    %450 = vmatprep.subr.mxu0 0.0
    %451 = vmatpush2.msra.mxu0 %v95
    %452 = vmatprep.subr.mxu0 0.0
    %453 = vmatpush2.msra.mxu0 %v94
    %454 = vmatprep.subr.mxu0 0.0
    %455 = vmatpush2.msra.mxu0 %v93
    %456 = vmatprep.subr.mxu0 0.0
    %457 = vmatpush2.msra.mxu0 %v92
    %458 = vmatprep.subr.mxu0 0.0
    %459 = vmatpush2.msra.mxu0 %v91
    %460 = vmatprep.mubr.f32.mxu0 %v365
    %461 = vmatmul.mubr.f32.gmra.mxu0 %v364
    %v462 = vpop.f32.mrf.mxu0
    %v463 = vadd.f32 0.0, %v462
    %v464 = vpop.f32.mrf.mxu0
    %465 = vmatprep.mubr.f32.mxu0 %v367
    %466 = vmatmul.mubr.f32.gmra.mxu0 %v366
    %v467 = vpop.f32.mrf.mxu0
    %v468 = vadd.f32 0.0, %v467
    %v469 = vpop.f32.mrf.mxu0
    %470 = vmatprep.mubr.f32.mxu0 %v369
    %471 = vmatmul.mubr.f32.gmra.mxu0 %v368
    %v472 = vpop.f32.mrf.mxu0
    %v473 = vadd.f32 0.0, %v472
    %v474 = vpop.f32.mrf.mxu0
    %475 = vmatprep.mubr.f32.mxu0 %v371
    %476 = vmatmul.mubr.f32.gmra.mxu0 %v370
    %v477 = vpop.f32.mrf.mxu0
    %v478 = vadd.f32 0.0, %v477
    %v479 = vpop.f32.mrf.mxu0
    %480 = vmatprep.mubr.f32.mxu0 %v373
    %481 = vmatmul.mubr.f32.gmra.mxu0 %v372
    %v482 = vpop.f32.mrf.mxu0
    %v483 = vadd.f32 0.0, %v482
    %v484 = vpop.f32.mrf.mxu0
    %485 = vmatprep.mubr.f32.mxu0 %v375
    %486 = vmatmul.mubr.f32.gmra.mxu0 %v374
    %v487 = vpop.f32.mrf.mxu0
    %v488 = vadd.f32 0.0, %v487
    %v489 = vpop.f32.mrf.mxu0
    %490 = vmatprep.mubr.f32.mxu0 %v377
    %491 = vmatmul.mubr.f32.gmra.mxu0 %v376
    %v492 = vpop.f32.mrf.mxu0
    %v493 = vadd.f32 0.0, %v492
    %v494 = vpop.f32.mrf.mxu0
    %495 = vmatprep.mubr.f32.mxu0 %v379
    %496 = vmatmul.mubr.f32.gmra.mxu0 %v378
    %v497 = vpop.f32.mrf.mxu0
    %v498 = vadd.f32 0.0, %v497
    %v499 = vpop.f32.mrf.mxu0
    %500 = vmatprep.mubr.f32.mxu0 %v381
    %501 = vmatmul.mubr.f32.gmra.mxu0 %v380
    %v502 = vpop.f32.mrf.mxu0
    %v503 = vadd.f32 0.0, %v502
    %v504 = vpop.f32.mrf.mxu0
    %505 = vmatprep.mubr.f32.mxu0 %v383
    %506 = vmatmul.mubr.f32.gmra.mxu0 %v382
    %v507 = vpop.f32.mrf.mxu0
    %v508 = vadd.f32 0.0, %v507
    %v509 = vpop.f32.mrf.mxu0
    %510 = vmatprep.mubr.f32.mxu0 %v385
    %511 = vmatmul.mubr.f32.gmra.mxu0 %v384
    %v512 = vpop.f32.mrf.mxu0
    %v513 = vadd.f32 0.0, %v512
    %v514 = vpop.f32.mrf.mxu0
    %515 = vmatprep.mubr.f32.mxu0 %v387
    %516 = vmatmul.mubr.f32.gmra.mxu0 %v386
    %v517 = vpop.f32.mrf.mxu0
    %v518 = vadd.f32 0.0, %v517
    %v519 = vpop.f32.mrf.mxu0
    %520 = vmatprep.mubr.f32.mxu0 %v389
    %521 = vmatmul.mubr.f32.gmra.mxu0 %v388
    %v522 = vpop.f32.mrf.mxu0
    %v523 = vadd.f32 0.0, %v522
    %v524 = vpop.f32.mrf.mxu0
    %525 = vmatprep.mubr.f32.mxu0 %v391
    %526 = vmatmul.mubr.f32.gmra.mxu0 %v390
    %v527 = vpop.f32.mrf.mxu0
    %v528 = vadd.f32 0.0, %v527
    %v529 = vpop.f32.mrf.mxu0
    %530 = vmatprep.mubr.f32.mxu0 %v393
    %531 = vmatmul.mubr.f32.gmra.mxu0 %v392
    %v532 = vpop.f32.mrf.mxu0
    %v533 = vadd.f32 0.0, %v532
    %v534 = vpop.f32.mrf.mxu0
    %535 = vmatprep.mubr.f32.mxu0 %v395
    %536 = vmatmul.mubr.f32.gmra.mxu0 %v394
    %v537 = vpop.f32.mrf.mxu0
    %v538 = vadd.f32 0.0, %v537
    %v539 = vpop.f32.mrf.mxu0
    %540 = vdwg.mxu0
    %v541 = vsub.f32 %v59, %v463
    %v542 = vsub.f32 %v60, %v468
    %v543 = vsub.f32 %v61, %v473
    %v544 = vsub.f32 %v62, %v478
    %v545 = vsub.f32 %v63, %v483
    %v546 = vsub.f32 %v64, %v488
    %v547 = vsub.f32 %v65, %v493
    %v548 = vsub.f32 %v66, %v498
    %v549 = vsub.f32 %v67, %v503
    %v550 = vsub.f32 %v68, %v508
    %v551 = vsub.f32 %v69, %v513
    %v552 = vsub.f32 %v70, %v518
    %v553 = vsub.f32 %v71, %v523
    %v554 = vsub.f32 %v72, %v528
    %v555 = vsub.f32 %v73, %v533
    %v556 = vsub.f32 %v74, %v538
    %557 = vmatprep.subr.mxu0 %v138
    %558 = vmatpush1.msra.mxu0 %v137
    %559 = vmatprep.subr.mxu0 %v136
    %560 = vmatpush1.msra.mxu0 %v135
    %561 = vmatprep.subr.mxu0 %v134
    %562 = vmatpush1.msra.mxu0 %v133
    %563 = vmatprep.subr.mxu0 %v132
    %564 = vmatpush1.msra.mxu0 %v131
    %565 = vmatprep.subr.mxu0 %v130
    %566 = vmatpush1.msra.mxu0 %v129
    %567 = vmatprep.subr.mxu0 %v128
    %568 = vmatpush1.msra.mxu0 %v127
    %569 = vmatprep.subr.mxu0 %v126
    %570 = vmatpush1.msra.mxu0 %v125
    %571 = vmatprep.subr.mxu0 %v124
    %572 = vmatpush1.msra.mxu0 %v123
    %573 = vmatprep.subr.mxu0 %v122
    %574 = vmatpush1.msra.mxu0 %v121
    %575 = vmatprep.subr.mxu0 %v120
    %576 = vmatpush1.msra.mxu0 %v119
    %577 = vmatprep.subr.mxu0 %v118
    %578 = vmatpush1.msra.mxu0 %v117
    %579 = vmatprep.subr.mxu0 %v116
    %580 = vmatpush1.msra.mxu0 %v115
    %581 = vmatprep.subr.mxu0 %v114
    %582 = vmatpush1.msra.mxu0 %v113
    %583 = vmatprep.subr.mxu0 %v112
    %584 = vmatpush1.msra.mxu0 %v111
    %585 = vmatprep.subr.mxu0 %v110
    %586 = vmatpush1.msra.mxu0 %v109
    %587 = vmatprep.subr.mxu0 %v108
    %588 = vmatpush1.msra.mxu0 %v107
    %589 = vmatprep.subr.mxu0 0.0
    %590 = vmatpush2.msra.mxu0 0.0
    %591 = vmatprep.subr.mxu0 0.0
    %592 = vmatpush2.msra.mxu0 0.0
    %593 = vmatprep.subr.mxu0 0.0
    %594 = vmatpush2.msra.mxu0 0.0
    %595 = vmatprep.subr.mxu0 0.0
    %596 = vmatpush2.msra.mxu0 0.0
    %597 = vmatprep.subr.mxu0 0.0
    %598 = vmatpush2.msra.mxu0 0.0
    %599 = vmatprep.subr.mxu0 0.0
    %600 = vmatpush2.msra.mxu0 0.0
    %601 = vmatprep.subr.mxu0 0.0
    %602 = vmatpush2.msra.mxu0 0.0
    %603 = vmatprep.subr.mxu0 0.0
    %604 = vmatpush2.msra.mxu0 0.0
    %605 = vmatprep.subr.mxu0 0.0
    %606 = vmatpush2.msra.mxu0 0.0
    %607 = vmatprep.subr.mxu0 0.0
    %608 = vmatpush2.msra.mxu0 0.0
    %609 = vmatprep.subr.mxu0 0.0
    %610 = vmatpush2.msra.mxu0 0.0
    %611 = vmatprep.subr.mxu0 0.0
    %612 = vmatpush2.msra.mxu0 0.0
    %613 = vmatprep.subr.mxu0 0.0
    %614 = vmatpush2.msra.mxu0 0.0
    %615 = vmatprep.subr.mxu0 0.0
    %616 = vmatpush2.msra.mxu0 0.0
    %617 = vmatprep.subr.mxu0 0.0
    %618 = vmatpush2.msra.mxu0 0.0
    %619 = vmatprep.subr.mxu0 0.0
    %620 = vmatpush2.msra.mxu0 0.0
    %621 = vmatprep.mubr.f32.mxu0 0.0
    %622 = vmatmul.mubr.f32.gmra.mxu0 %v541
    %v623 = vpop.f32.mrf.mxu0
    %v624 = vadd.f32 0.0, %v623
    %v625 = vpop.f32.mrf.mxu0
    %v626 = vadd.f32 0.0, %v625
    %627 = vmatprep.mubr.f32.mxu0 0.0
    %628 = vmatmul.mubr.f32.gmra.mxu0 %v542
    %v629 = vpop.f32.mrf.mxu0
    %v630 = vadd.f32 0.0, %v629
    %v631 = vpop.f32.mrf.mxu0
    %v632 = vadd.f32 0.0, %v631
    %633 = vmatprep.mubr.f32.mxu0 0.0
    %634 = vmatmul.mubr.f32.gmra.mxu0 %v543
    %v635 = vpop.f32.mrf.mxu0
    %v636 = vadd.f32 0.0, %v635
    %v637 = vpop.f32.mrf.mxu0
    %v638 = vadd.f32 0.0, %v637
    %639 = vmatprep.mubr.f32.mxu0 0.0
    %640 = vmatmul.mubr.f32.gmra.mxu0 %v544
    %v641 = vpop.f32.mrf.mxu0
    %v642 = vadd.f32 0.0, %v641
    %v643 = vpop.f32.mrf.mxu0
    %v644 = vadd.f32 0.0, %v643
    %645 = vmatprep.mubr.f32.mxu0 0.0
    %646 = vmatmul.mubr.f32.gmra.mxu0 %v545
    %v647 = vpop.f32.mrf.mxu0
    %v648 = vadd.f32 0.0, %v647
    %v649 = vpop.f32.mrf.mxu0
    %v650 = vadd.f32 0.0, %v649
    %651 = vmatprep.mubr.f32.mxu0 0.0
    %652 = vmatmul.mubr.f32.gmra.mxu0 %v546
    %v653 = vpop.f32.mrf.mxu0
    %v654 = vadd.f32 0.0, %v653
    %v655 = vpop.f32.mrf.mxu0
    %v656 = vadd.f32 0.0, %v655
    %657 = vmatprep.mubr.f32.mxu0 0.0
    %658 = vmatmul.mubr.f32.gmra.mxu0 %v547
    %v659 = vpop.f32.mrf.mxu0
    %v660 = vadd.f32 0.0, %v659
    %v661 = vpop.f32.mrf.mxu0
    %v662 = vadd.f32 0.0, %v661
    %663 = vmatprep.mubr.f32.mxu0 0.0
    %664 = vmatmul.mubr.f32.gmra.mxu0 %v548
    %v665 = vpop.f32.mrf.mxu0
    %v666 = vadd.f32 0.0, %v665
    %v667 = vpop.f32.mrf.mxu0
    %v668 = vadd.f32 0.0, %v667
    %669 = vmatprep.mubr.f32.mxu0 0.0
    %670 = vmatmul.mubr.f32.gmra.mxu0 %v549
    %v671 = vpop.f32.mrf.mxu0
    %v672 = vadd.f32 0.0, %v671
    %v673 = vpop.f32.mrf.mxu0
    %v674 = vadd.f32 0.0, %v673
    %675 = vmatprep.mubr.f32.mxu0 0.0
    %676 = vmatmul.mubr.f32.gmra.mxu0 %v550
    %v677 = vpop.f32.mrf.mxu0
    %v678 = vadd.f32 0.0, %v677
    %v679 = vpop.f32.mrf.mxu0
    %v680 = vadd.f32 0.0, %v679
    %681 = vmatprep.mubr.f32.mxu0 0.0
    %682 = vmatmul.mubr.f32.gmra.mxu0 %v551
    %v683 = vpop.f32.mrf.mxu0
    %v684 = vadd.f32 0.0, %v683
    %v685 = vpop.f32.mrf.mxu0
    %v686 = vadd.f32 0.0, %v685
    %687 = vmatprep.mubr.f32.mxu0 0.0
    %688 = vmatmul.mubr.f32.gmra.mxu0 %v552
    %v689 = vpop.f32.mrf.mxu0
    %v690 = vadd.f32 0.0, %v689
    %v691 = vpop.f32.mrf.mxu0
    %v692 = vadd.f32 0.0, %v691
    %693 = vmatprep.mubr.f32.mxu0 0.0
    %694 = vmatmul.mubr.f32.gmra.mxu0 %v553
    %v695 = vpop.f32.mrf.mxu0
    %v696 = vadd.f32 0.0, %v695
    %v697 = vpop.f32.mrf.mxu0
    %v698 = vadd.f32 0.0, %v697
    %699 = vmatprep.mubr.f32.mxu0 0.0
    %700 = vmatmul.mubr.f32.gmra.mxu0 %v554
    %v701 = vpop.f32.mrf.mxu0
    %v702 = vadd.f32 0.0, %v701
    %v703 = vpop.f32.mrf.mxu0
    %v704 = vadd.f32 0.0, %v703
    %705 = vmatprep.mubr.f32.mxu0 0.0
    %706 = vmatmul.mubr.f32.gmra.mxu0 %v555
    %v707 = vpop.f32.mrf.mxu0
    %v708 = vadd.f32 0.0, %v707
    %v709 = vpop.f32.mrf.mxu0
    %v710 = vadd.f32 0.0, %v709
    %711 = vmatprep.mubr.f32.mxu0 0.0
    %712 = vmatmul.mubr.f32.gmra.mxu0 %v556
    %v713 = vpop.f32.mrf.mxu0
    %v714 = vadd.f32 0.0, %v713
    %v715 = vpop.f32.mrf.mxu0
    %v716 = vadd.f32 0.0, %v715
    %717 = vdwg.mxu0
    %v718 = vmul.f32 %v624, 0.1
    %v719 = vmul.f32 %v626, 0.1
    %v720 = vmul.f32 %v630, 0.1
    %v721 = vmul.f32 %v632, 0.1
    %v722 = vmul.f32 %v636, 0.1
    %v723 = vmul.f32 %v638, 0.1
    %v724 = vmul.f32 %v642, 0.1
    %v725 = vmul.f32 %v644, 0.1
    %v726 = vmul.f32 %v648, 0.1
    %v727 = vmul.f32 %v650, 0.1
    %v728 = vmul.f32 %v654, 0.1
    %v729 = vmul.f32 %v656, 0.1
    %v730 = vmul.f32 %v660, 0.1
    %v731 = vmul.f32 %v662, 0.1
    %v732 = vmul.f32 %v666, 0.1
    %v733 = vmul.f32 %v668, 0.1
    %v734 = vmul.f32 %v672, 0.1
    %v735 = vmul.f32 %v674, 0.1
    %v736 = vmul.f32 %v678, 0.1
    %v737 = vmul.f32 %v680, 0.1
    %v738 = vmul.f32 %v684, 0.1
    %v739 = vmul.f32 %v686, 0.1
    %v740 = vmul.f32 %v690, 0.1
    %v741 = vmul.f32 %v692, 0.1
    %v742 = vmul.f32 %v696, 0.1
    %v743 = vmul.f32 %v698, 0.1
    %v744 = vmul.f32 %v702, 0.1
    %v745 = vmul.f32 %v704, 0.1
    %v746 = vmul.f32 %v708, 0.1
    %v747 = vmul.f32 %v710, 0.1
    %v748 = vmul.f32 %v714, 0.1
    %v749 = vmul.f32 %v716, 0.1
    %v750 = vadd.f32 %v364, %v718
    %v751 = vadd.f32 %v365, %v719
    %v752 = vadd.f32 %v366, %v720
    %v753 = vadd.f32 %v367, %v721
    %v754 = vadd.f32 %v368, %v722
    %v755 = vadd.f32 %v369, %v723
    %v756 = vadd.f32 %v370, %v724
    %v757 = vadd.f32 %v371, %v725
    %v758 = vadd.f32 %v372, %v726
    %v759 = vadd.f32 %v373, %v727
    %v760 = vadd.f32 %v374, %v728
    %v761 = vadd.f32 %v375, %v729
    %v762 = vadd.f32 %v376, %v730
    %v763 = vadd.f32 %v377, %v731
    %v764 = vadd.f32 %v378, %v732
    %v765 = vadd.f32 %v379, %v733
    %v766 = vadd.f32 %v380, %v734
    %v767 = vadd.f32 %v381, %v735
    %v768 = vadd.f32 %v382, %v736
    %v769 = vadd.f32 %v383, %v737
    %v770 = vadd.f32 %v384, %v738
    %v771 = vadd.f32 %v385, %v739
    %v772 = vadd.f32 %v386, %v740
    %v773 = vadd.f32 %v387, %v741
    %v774 = vadd.f32 %v388, %v742
    %v775 = vadd.f32 %v389, %v743
    %v776 = vadd.f32 %v390, %v744
    %v777 = vadd.f32 %v391, %v745
    %v778 = vadd.f32 %v392, %v746
    %v779 = vadd.f32 %v393, %v747
    %v780 = vadd.f32 %v394, %v748
    %v781 = vadd.f32 %v395, %v749
    %v782 = vsub.f32 %v750, 0.01
    %v783 = vsub.f32 %v751, 0.01
    %v784 = vsub.f32 %v752, 0.01
    %v785 = vsub.f32 %v753, 0.01
    %v786 = vsub.f32 %v754, 0.01
    %v787 = vsub.f32 %v755, 0.01
    %v788 = vsub.f32 %v756, 0.01
    %v789 = vsub.f32 %v757, 0.01
    %v790 = vsub.f32 %v758, 0.01
    %v791 = vsub.f32 %v759, 0.01
    %v792 = vsub.f32 %v760, 0.01
    %v793 = vsub.f32 %v761, 0.01
    %v794 = vsub.f32 %v762, 0.01
    %v795 = vsub.f32 %v763, 0.01
    %v796 = vsub.f32 %v764, 0.01
    %v797 = vsub.f32 %v765, 0.01
    %v798 = vsub.f32 %v766, 0.01
    %v799 = vsub.f32 %v767, 0.01
    %v800 = vsub.f32 %v768, 0.01
    %v801 = vsub.f32 %v769, 0.01
    %v802 = vsub.f32 %v770, 0.01
    %v803 = vsub.f32 %v771, 0.01
    %v804 = vsub.f32 %v772, 0.01
    %v805 = vsub.f32 %v773, 0.01
    %v806 = vsub.f32 %v774, 0.01
    %v807 = vsub.f32 %v775, 0.01
    %v808 = vsub.f32 %v776, 0.01
    %v809 = vsub.f32 %v777, 0.01
    %v810 = vsub.f32 %v778, 0.01
    %v811 = vsub.f32 %v779, 0.01
    %v812 = vsub.f32 %v780, 0.01
    %v813 = vsub.f32 %v781, 0.01
    %v814 = vmax.f32 %v782, 0.0
    %v815 = vmax.f32 %v783, 0.0
    %v816 = vmax.f32 %v784, 0.0
    %v817 = vmax.f32 %v785, 0.0
    %v818 = vmax.f32 %v786, 0.0
    %v819 = vmax.f32 %v787, 0.0
    %v820 = vmax.f32 %v788, 0.0
    %v821 = vmax.f32 %v789, 0.0
    %v822 = vmax.f32 %v790, 0.0
    %v823 = vmax.f32 %v791, 0.0
    %v824 = vmax.f32 %v792, 0.0
    %v825 = vmax.f32 %v793, 0.0
    %v826 = vmax.f32 %v794, 0.0
    %v827 = vmax.f32 %v795, 0.0
    %v828 = vmax.f32 %v796, 0.0
    %v829 = vmax.f32 %v797, 0.0
    %v830 = vmax.f32 %v798, 0.0
    %v831 = vmax.f32 %v799, 0.0
    %v832 = vmax.f32 %v800, 0.0
    %v833 = vmax.f32 %v801, 0.0
    %v834 = vmax.f32 %v802, 0.0
    %v835 = vmax.f32 %v803, 0.0
    %v836 = vmax.f32 %v804, 0.0
    %v837 = vmax.f32 %v805, 0.0
    %v838 = vmax.f32 %v806, 0.0
    %v839 = vmax.f32 %v807, 0.0
    %v840 = vmax.f32 %v808, 0.0
    %v841 = vmax.f32 %v809, 0.0
    %v842 = vmax.f32 %v810, 0.0
    %v843 = vmax.f32 %v811, 0.0
    %v844 = vmax.f32 %v812, 0.0
    %v845 = vmax.f32 %v813, 0.0
    %846 = vmatprep.subr.mxu0 0.0
    %847 = vmatpush1.msra.mxu0 %v90
    %848 = vmatprep.subr.mxu0 0.0
    %849 = vmatpush1.msra.mxu0 %v89
    %850 = vmatprep.subr.mxu0 0.0
    %851 = vmatpush1.msra.mxu0 %v88
    %852 = vmatprep.subr.mxu0 0.0
    %853 = vmatpush1.msra.mxu0 %v87
    %854 = vmatprep.subr.mxu0 0.0
    %855 = vmatpush1.msra.mxu0 %v86
    %856 = vmatprep.subr.mxu0 0.0
    %857 = vmatpush1.msra.mxu0 %v85
    %858 = vmatprep.subr.mxu0 0.0
    %859 = vmatpush1.msra.mxu0 %v84
    %860 = vmatprep.subr.mxu0 0.0
    %861 = vmatpush1.msra.mxu0 %v83
    %862 = vmatprep.subr.mxu0 0.0
    %863 = vmatpush1.msra.mxu0 %v82
    %864 = vmatprep.subr.mxu0 0.0
    %865 = vmatpush1.msra.mxu0 %v81
    %866 = vmatprep.subr.mxu0 0.0
    %867 = vmatpush1.msra.mxu0 %v80
    %868 = vmatprep.subr.mxu0 0.0
    %869 = vmatpush1.msra.mxu0 %v79
    %870 = vmatprep.subr.mxu0 0.0
    %871 = vmatpush1.msra.mxu0 %v78
    %872 = vmatprep.subr.mxu0 0.0
    %873 = vmatpush1.msra.mxu0 %v77
    %874 = vmatprep.subr.mxu0 0.0
    %875 = vmatpush1.msra.mxu0 %v76
    %876 = vmatprep.subr.mxu0 0.0
    %877 = vmatpush1.msra.mxu0 %v75
    %878 = vmatprep.subr.mxu0 0.0
    %879 = vmatpush2.msra.mxu0 %v106
    %880 = vmatprep.subr.mxu0 0.0
    %881 = vmatpush2.msra.mxu0 %v105
    %882 = vmatprep.subr.mxu0 0.0
    %883 = vmatpush2.msra.mxu0 %v104
    %884 = vmatprep.subr.mxu0 0.0
    %885 = vmatpush2.msra.mxu0 %v103
    %886 = vmatprep.subr.mxu0 0.0
    %887 = vmatpush2.msra.mxu0 %v102
    %888 = vmatprep.subr.mxu0 0.0
    %889 = vmatpush2.msra.mxu0 %v101
    %890 = vmatprep.subr.mxu0 0.0
    %891 = vmatpush2.msra.mxu0 %v100
    %892 = vmatprep.subr.mxu0 0.0
    %893 = vmatpush2.msra.mxu0 %v99
    %894 = vmatprep.subr.mxu0 0.0
    %895 = vmatpush2.msra.mxu0 %v98
    %896 = vmatprep.subr.mxu0 0.0
    %897 = vmatpush2.msra.mxu0 %v97
    %898 = vmatprep.subr.mxu0 0.0
    %899 = vmatpush2.msra.mxu0 %v96
    %900 = vmatprep.subr.mxu0 0.0
    %901 = vmatpush2.msra.mxu0 %v95
    %902 = vmatprep.subr.mxu0 0.0
    %903 = vmatpush2.msra.mxu0 %v94
    %904 = vmatprep.subr.mxu0 0.0
    %905 = vmatpush2.msra.mxu0 %v93
    %906 = vmatprep.subr.mxu0 0.0
    %907 = vmatpush2.msra.mxu0 %v92
    %908 = vmatprep.subr.mxu0 0.0
    %909 = vmatpush2.msra.mxu0 %v91
    %910 = vmatprep.mubr.f32.mxu0 %v815
    %911 = vmatmul.mubr.f32.gmra.mxu0 %v814
    %v912 = vpop.f32.mrf.mxu0
    %v913 = vadd.f32 0.0, %v912
    %v914 = vpop.f32.mrf.mxu0
    %915 = vmatprep.mubr.f32.mxu0 %v817
    %916 = vmatmul.mubr.f32.gmra.mxu0 %v816
    %v917 = vpop.f32.mrf.mxu0
    %v918 = vadd.f32 0.0, %v917
    %v919 = vpop.f32.mrf.mxu0
    %920 = vmatprep.mubr.f32.mxu0 %v819
    %921 = vmatmul.mubr.f32.gmra.mxu0 %v818
    %v922 = vpop.f32.mrf.mxu0
    %v923 = vadd.f32 0.0, %v922
    %v924 = vpop.f32.mrf.mxu0
    %925 = vmatprep.mubr.f32.mxu0 %v821
    %926 = vmatmul.mubr.f32.gmra.mxu0 %v820
    %v927 = vpop.f32.mrf.mxu0
    %v928 = vadd.f32 0.0, %v927
    %v929 = vpop.f32.mrf.mxu0
    %930 = vmatprep.mubr.f32.mxu0 %v823
    %931 = vmatmul.mubr.f32.gmra.mxu0 %v822
    %v932 = vpop.f32.mrf.mxu0
    %v933 = vadd.f32 0.0, %v932
    %v934 = vpop.f32.mrf.mxu0
    %935 = vmatprep.mubr.f32.mxu0 %v825
    %936 = vmatmul.mubr.f32.gmra.mxu0 %v824
    %v937 = vpop.f32.mrf.mxu0
    %v938 = vadd.f32 0.0, %v937
    %v939 = vpop.f32.mrf.mxu0
    %940 = vmatprep.mubr.f32.mxu0 %v827
    %941 = vmatmul.mubr.f32.gmra.mxu0 %v826
    %v942 = vpop.f32.mrf.mxu0
    %v943 = vadd.f32 0.0, %v942
    %v944 = vpop.f32.mrf.mxu0
    %945 = vmatprep.mubr.f32.mxu0 %v829
    %946 = vmatmul.mubr.f32.gmra.mxu0 %v828
    %v947 = vpop.f32.mrf.mxu0
    %v948 = vadd.f32 0.0, %v947
    %v949 = vpop.f32.mrf.mxu0
    %950 = vmatprep.mubr.f32.mxu0 %v831
    %951 = vmatmul.mubr.f32.gmra.mxu0 %v830
    %v952 = vpop.f32.mrf.mxu0
    %v953 = vadd.f32 0.0, %v952
    %v954 = vpop.f32.mrf.mxu0
    %955 = vmatprep.mubr.f32.mxu0 %v833
    %956 = vmatmul.mubr.f32.gmra.mxu0 %v832
    %v957 = vpop.f32.mrf.mxu0
    %v958 = vadd.f32 0.0, %v957
    %v959 = vpop.f32.mrf.mxu0
    %960 = vmatprep.mubr.f32.mxu0 %v835
    %961 = vmatmul.mubr.f32.gmra.mxu0 %v834
    %v962 = vpop.f32.mrf.mxu0
    %v963 = vadd.f32 0.0, %v962
    %v964 = vpop.f32.mrf.mxu0
    %965 = vmatprep.mubr.f32.mxu0 %v837
    %966 = vmatmul.mubr.f32.gmra.mxu0 %v836
    %v967 = vpop.f32.mrf.mxu0
    %v968 = vadd.f32 0.0, %v967
    %v969 = vpop.f32.mrf.mxu0
    %970 = vmatprep.mubr.f32.mxu0 %v839
    %971 = vmatmul.mubr.f32.gmra.mxu0 %v838
    %v972 = vpop.f32.mrf.mxu0
    %v973 = vadd.f32 0.0, %v972
    %v974 = vpop.f32.mrf.mxu0
    %975 = vmatprep.mubr.f32.mxu0 %v841
    %976 = vmatmul.mubr.f32.gmra.mxu0 %v840
    %v977 = vpop.f32.mrf.mxu0
    %v978 = vadd.f32 0.0, %v977
    %v979 = vpop.f32.mrf.mxu0
    %980 = vmatprep.mubr.f32.mxu0 %v843
    %981 = vmatmul.mubr.f32.gmra.mxu0 %v842
    %v982 = vpop.f32.mrf.mxu0
    %v983 = vadd.f32 0.0, %v982
    %v984 = vpop.f32.mrf.mxu0
    %985 = vmatprep.mubr.f32.mxu0 %v845
    %986 = vmatmul.mubr.f32.gmra.mxu0 %v844
    %v987 = vpop.f32.mrf.mxu0
    %v988 = vadd.f32 0.0, %v987
    %v989 = vpop.f32.mrf.mxu0
    %990 = vdwg.mxu0
    %v991 = vsub.f32 %v814, %v364
    %v992 = vsub.f32 %v815, %v365
    %v993 = vsub.f32 %v816, %v366
    %v994 = vsub.f32 %v817, %v367
    %v995 = vsub.f32 %v818, %v368
    %v996 = vsub.f32 %v819, %v369
    %v997 = vsub.f32 %v820, %v370
    %v998 = vsub.f32 %v821, %v371
    %v999 = vsub.f32 %v822, %v372
    %v1000 = vsub.f32 %v823, %v373
    %v1001 = vsub.f32 %v824, %v374
    %v1002 = vsub.f32 %v825, %v375
    %v1003 = vsub.f32 %v826, %v376
    %v1004 = vsub.f32 %v827, %v377
    %v1005 = vsub.f32 %v828, %v378
    %v1006 = vsub.f32 %v829, %v379
    %v1007 = vsub.f32 %v830, %v380
    %v1008 = vsub.f32 %v831, %v381
    %v1009 = vsub.f32 %v832, %v382
    %v1010 = vsub.f32 %v833, %v383
    %v1011 = vsub.f32 %v834, %v384
    %v1012 = vsub.f32 %v835, %v385
    %v1013 = vsub.f32 %v836, %v386
    %v1014 = vsub.f32 %v837, %v387
    %v1015 = vsub.f32 %v838, %v388
    %v1016 = vsub.f32 %v839, %v389
    %v1017 = vsub.f32 %v840, %v390
    %v1018 = vsub.f32 %v841, %v391
    %v1019 = vsub.f32 %v842, %v392
    %v1020 = vsub.f32 %v843, %v393
    %v1021 = vsub.f32 %v844, %v394
    %v1022 = vsub.f32 %v845, %v395
    %v1023 = vmul.f32 %v991, 0.2817535
    %v1024 = vmul.f32 %v992, 0.2817535
    %v1025 = vmul.f32 %v993, 0.2817535
    %v1026 = vmul.f32 %v994, 0.2817535
    %v1027 = vmul.f32 %v995, 0.2817535
    %v1028 = vmul.f32 %v996, 0.2817535
    %v1029 = vmul.f32 %v997, 0.2817535
    %v1030 = vmul.f32 %v998, 0.2817535
    %v1031 = vmul.f32 %v999, 0.2817535
    %v1032 = vmul.f32 %v1000, 0.2817535
    %v1033 = vmul.f32 %v1001, 0.2817535
    %v1034 = vmul.f32 %v1002, 0.2817535
    %v1035 = vmul.f32 %v1003, 0.2817535
    %v1036 = vmul.f32 %v1004, 0.2817535
    %v1037 = vmul.f32 %v1005, 0.2817535
    %v1038 = vmul.f32 %v1006, 0.2817535
    %v1039 = vmul.f32 %v1007, 0.2817535
    %v1040 = vmul.f32 %v1008, 0.2817535
    %v1041 = vmul.f32 %v1009, 0.2817535
    %v1042 = vmul.f32 %v1010, 0.2817535
    %v1043 = vmul.f32 %v1011, 0.2817535
    %v1044 = vmul.f32 %v1012, 0.2817535
    %v1045 = vmul.f32 %v1013, 0.2817535
    %v1046 = vmul.f32 %v1014, 0.2817535
    %v1047 = vmul.f32 %v1015, 0.2817535
    %v1048 = vmul.f32 %v1016, 0.2817535
    %v1049 = vmul.f32 %v1017, 0.2817535
    %v1050 = vmul.f32 %v1018, 0.2817535
    %v1051 = vmul.f32 %v1019, 0.2817535
    %v1052 = vmul.f32 %v1020, 0.2817535
    %v1053 = vmul.f32 %v1021, 0.2817535
    %v1054 = vmul.f32 %v1022, 0.2817535
    %v1055 = vadd.f32 %v814, %v1023
    %v1056 = vadd.f32 %v815, %v1024
    %v1057 = vadd.f32 %v816, %v1025
    %v1058 = vadd.f32 %v817, %v1026
    %v1059 = vadd.f32 %v818, %v1027
    %v1060 = vadd.f32 %v819, %v1028
    %v1061 = vadd.f32 %v820, %v1029
    %v1062 = vadd.f32 %v821, %v1030
    %v1063 = vadd.f32 %v822, %v1031
    %v1064 = vadd.f32 %v823, %v1032
    %v1065 = vadd.f32 %v824, %v1033
    %v1066 = vadd.f32 %v825, %v1034
    %v1067 = vadd.f32 %v826, %v1035
    %v1068 = vadd.f32 %v827, %v1036
    %v1069 = vadd.f32 %v828, %v1037
    %v1070 = vadd.f32 %v829, %v1038
    %v1071 = vadd.f32 %v830, %v1039
    %v1072 = vadd.f32 %v831, %v1040
    %v1073 = vadd.f32 %v832, %v1041
    %v1074 = vadd.f32 %v833, %v1042
    %v1075 = vadd.f32 %v834, %v1043
    %v1076 = vadd.f32 %v835, %v1044
    %v1077 = vadd.f32 %v836, %v1045
    %v1078 = vadd.f32 %v837, %v1046
    %v1079 = vadd.f32 %v838, %v1047
    %v1080 = vadd.f32 %v839, %v1048
    %v1081 = vadd.f32 %v840, %v1049
    %v1082 = vadd.f32 %v841, %v1050
    %v1083 = vadd.f32 %v842, %v1051
    %v1084 = vadd.f32 %v843, %v1052
    %v1085 = vadd.f32 %v844, %v1053
    %v1086 = vadd.f32 %v845, %v1054
    %v1087 = vsub.f32 %v913, %v463
    %v1088 = vsub.f32 %v918, %v468
    %v1089 = vsub.f32 %v923, %v473
    %v1090 = vsub.f32 %v928, %v478
    %v1091 = vsub.f32 %v933, %v483
    %v1092 = vsub.f32 %v938, %v488
    %v1093 = vsub.f32 %v943, %v493
    %v1094 = vsub.f32 %v948, %v498
    %v1095 = vsub.f32 %v953, %v503
    %v1096 = vsub.f32 %v958, %v508
    %v1097 = vsub.f32 %v963, %v513
    %v1098 = vsub.f32 %v968, %v518
    %v1099 = vsub.f32 %v973, %v523
    %v1100 = vsub.f32 %v978, %v528
    %v1101 = vsub.f32 %v983, %v533
    %v1102 = vsub.f32 %v988, %v538
    %v1103 = vmul.f32 %v1087, 0.2817535
    %v1104 = vmul.f32 %v1088, 0.2817535
    %v1105 = vmul.f32 %v1089, 0.2817535
    %v1106 = vmul.f32 %v1090, 0.2817535
    %v1107 = vmul.f32 %v1091, 0.2817535
    %v1108 = vmul.f32 %v1092, 0.2817535
    %v1109 = vmul.f32 %v1093, 0.2817535
    %v1110 = vmul.f32 %v1094, 0.2817535
    %v1111 = vmul.f32 %v1095, 0.2817535
    %v1112 = vmul.f32 %v1096, 0.2817535
    %v1113 = vmul.f32 %v1097, 0.2817535
    %v1114 = vmul.f32 %v1098, 0.2817535
    %v1115 = vmul.f32 %v1099, 0.2817535
    %v1116 = vmul.f32 %v1100, 0.2817535
    %v1117 = vmul.f32 %v1101, 0.2817535
    %v1118 = vmul.f32 %v1102, 0.2817535
    %v1119 = vadd.f32 %v913, %v1103
    %v1120 = vadd.f32 %v918, %v1104
    %v1121 = vadd.f32 %v923, %v1105
    %v1122 = vadd.f32 %v928, %v1106
    %v1123 = vadd.f32 %v933, %v1107
    %v1124 = vadd.f32 %v938, %v1108
    %v1125 = vadd.f32 %v943, %v1109
    %v1126 = vadd.f32 %v948, %v1110
    %v1127 = vadd.f32 %v953, %v1111
    %v1128 = vadd.f32 %v958, %v1112
    %v1129 = vadd.f32 %v963, %v1113
    %v1130 = vadd.f32 %v968, %v1114
    %v1131 = vadd.f32 %v973, %v1115
    %v1132 = vadd.f32 %v978, %v1116
    %v1133 = vadd.f32 %v983, %v1117
    %v1134 = vadd.f32 %v988, %v1118
    %v1135 = vsub.f32 %v59, %v1119
    %v1136 = vsub.f32 %v60, %v1120
    %v1137 = vsub.f32 %v61, %v1121
    %v1138 = vsub.f32 %v62, %v1122
    %v1139 = vsub.f32 %v63, %v1123
    %v1140 = vsub.f32 %v64, %v1124
    %v1141 = vsub.f32 %v65, %v1125
    %v1142 = vsub.f32 %v66, %v1126
    %v1143 = vsub.f32 %v67, %v1127
    %v1144 = vsub.f32 %v68, %v1128
    %v1145 = vsub.f32 %v69, %v1129
    %v1146 = vsub.f32 %v70, %v1130
    %v1147 = vsub.f32 %v71, %v1131
    %v1148 = vsub.f32 %v72, %v1132
    %v1149 = vsub.f32 %v73, %v1133
    %v1150 = vsub.f32 %v74, %v1134
    %1151 = vmatprep.subr.mxu0 %v138
    %1152 = vmatpush1.msra.mxu0 %v137
    %1153 = vmatprep.subr.mxu0 %v136
    %1154 = vmatpush1.msra.mxu0 %v135
    %1155 = vmatprep.subr.mxu0 %v134
    %1156 = vmatpush1.msra.mxu0 %v133
    %1157 = vmatprep.subr.mxu0 %v132
    %1158 = vmatpush1.msra.mxu0 %v131
    %1159 = vmatprep.subr.mxu0 %v130
    %1160 = vmatpush1.msra.mxu0 %v129
    %1161 = vmatprep.subr.mxu0 %v128
    %1162 = vmatpush1.msra.mxu0 %v127
    %1163 = vmatprep.subr.mxu0 %v126
    %1164 = vmatpush1.msra.mxu0 %v125
    %1165 = vmatprep.subr.mxu0 %v124
    %1166 = vmatpush1.msra.mxu0 %v123
    %1167 = vmatprep.subr.mxu0 %v122
    %1168 = vmatpush1.msra.mxu0 %v121
    %1169 = vmatprep.subr.mxu0 %v120
    %1170 = vmatpush1.msra.mxu0 %v119
    %1171 = vmatprep.subr.mxu0 %v118
    %1172 = vmatpush1.msra.mxu0 %v117
    %1173 = vmatprep.subr.mxu0 %v116
    %1174 = vmatpush1.msra.mxu0 %v115
    %1175 = vmatprep.subr.mxu0 %v114
    %1176 = vmatpush1.msra.mxu0 %v113
    %1177 = vmatprep.subr.mxu0 %v112
    %1178 = vmatpush1.msra.mxu0 %v111
    %1179 = vmatprep.subr.mxu0 %v110
    %1180 = vmatpush1.msra.mxu0 %v109
    %1181 = vmatprep.subr.mxu0 %v108
    %1182 = vmatpush1.msra.mxu0 %v107
    %1183 = vmatprep.subr.mxu0 0.0
    %1184 = vmatpush2.msra.mxu0 0.0
    %1185 = vmatprep.subr.mxu0 0.0
    %1186 = vmatpush2.msra.mxu0 0.0
    %1187 = vmatprep.subr.mxu0 0.0
    %1188 = vmatpush2.msra.mxu0 0.0
    %1189 = vmatprep.subr.mxu0 0.0
    %1190 = vmatpush2.msra.mxu0 0.0
    %1191 = vmatprep.subr.mxu0 0.0
    %1192 = vmatpush2.msra.mxu0 0.0
    %1193 = vmatprep.subr.mxu0 0.0
    %1194 = vmatpush2.msra.mxu0 0.0
    %1195 = vmatprep.subr.mxu0 0.0
    %1196 = vmatpush2.msra.mxu0 0.0
    %1197 = vmatprep.subr.mxu0 0.0
    %1198 = vmatpush2.msra.mxu0 0.0
    %1199 = vmatprep.subr.mxu0 0.0
    %1200 = vmatpush2.msra.mxu0 0.0
    %1201 = vmatprep.subr.mxu0 0.0
    %1202 = vmatpush2.msra.mxu0 0.0
    %1203 = vmatprep.subr.mxu0 0.0
    %1204 = vmatpush2.msra.mxu0 0.0
    %1205 = vmatprep.subr.mxu0 0.0
    %1206 = vmatpush2.msra.mxu0 0.0
    %1207 = vmatprep.subr.mxu0 0.0
    %1208 = vmatpush2.msra.mxu0 0.0
    %1209 = vmatprep.subr.mxu0 0.0
    %1210 = vmatpush2.msra.mxu0 0.0
    %1211 = vmatprep.subr.mxu0 0.0
    %1212 = vmatpush2.msra.mxu0 0.0
    %1213 = vmatprep.subr.mxu0 0.0
    %1214 = vmatpush2.msra.mxu0 0.0
    %1215 = vmatprep.mubr.f32.mxu0 0.0
    %1216 = vmatmul.mubr.f32.gmra.mxu0 %v1135
    %v1217 = vpop.f32.mrf.mxu0
    %v1218 = vadd.f32 0.0, %v1217
    %v1219 = vpop.f32.mrf.mxu0
    %v1220 = vadd.f32 0.0, %v1219
    %1221 = vmatprep.mubr.f32.mxu0 0.0
    %1222 = vmatmul.mubr.f32.gmra.mxu0 %v1136
    %v1223 = vpop.f32.mrf.mxu0
    %v1224 = vadd.f32 0.0, %v1223
    %v1225 = vpop.f32.mrf.mxu0
    %v1226 = vadd.f32 0.0, %v1225
    %1227 = vmatprep.mubr.f32.mxu0 0.0
    %1228 = vmatmul.mubr.f32.gmra.mxu0 %v1137
    %v1229 = vpop.f32.mrf.mxu0
    %v1230 = vadd.f32 0.0, %v1229
    %v1231 = vpop.f32.mrf.mxu0
    %v1232 = vadd.f32 0.0, %v1231
    %1233 = vmatprep.mubr.f32.mxu0 0.0
    %1234 = vmatmul.mubr.f32.gmra.mxu0 %v1138
    %v1235 = vpop.f32.mrf.mxu0
    %v1236 = vadd.f32 0.0, %v1235
    %v1237 = vpop.f32.mrf.mxu0
    %v1238 = vadd.f32 0.0, %v1237
    %1239 = vmatprep.mubr.f32.mxu0 0.0
    %1240 = vmatmul.mubr.f32.gmra.mxu0 %v1139
    %v1241 = vpop.f32.mrf.mxu0
    %v1242 = vadd.f32 0.0, %v1241
    %v1243 = vpop.f32.mrf.mxu0
    %v1244 = vadd.f32 0.0, %v1243
    %1245 = vmatprep.mubr.f32.mxu0 0.0
    %1246 = vmatmul.mubr.f32.gmra.mxu0 %v1140
    %v1247 = vpop.f32.mrf.mxu0
    %v1248 = vadd.f32 0.0, %v1247
    %v1249 = vpop.f32.mrf.mxu0
    %v1250 = vadd.f32 0.0, %v1249
    %1251 = vmatprep.mubr.f32.mxu0 0.0
    %1252 = vmatmul.mubr.f32.gmra.mxu0 %v1141
    %v1253 = vpop.f32.mrf.mxu0
    %v1254 = vadd.f32 0.0, %v1253
    %v1255 = vpop.f32.mrf.mxu0
    %v1256 = vadd.f32 0.0, %v1255
    %1257 = vmatprep.mubr.f32.mxu0 0.0
    %1258 = vmatmul.mubr.f32.gmra.mxu0 %v1142
    %v1259 = vpop.f32.mrf.mxu0
    %v1260 = vadd.f32 0.0, %v1259
    %v1261 = vpop.f32.mrf.mxu0
    %v1262 = vadd.f32 0.0, %v1261
    %1263 = vmatprep.mubr.f32.mxu0 0.0
    %1264 = vmatmul.mubr.f32.gmra.mxu0 %v1143
    %v1265 = vpop.f32.mrf.mxu0
    %v1266 = vadd.f32 0.0, %v1265
    %v1267 = vpop.f32.mrf.mxu0
    %v1268 = vadd.f32 0.0, %v1267
    %1269 = vmatprep.mubr.f32.mxu0 0.0
    %1270 = vmatmul.mubr.f32.gmra.mxu0 %v1144
    %v1271 = vpop.f32.mrf.mxu0
    %v1272 = vadd.f32 0.0, %v1271
    %v1273 = vpop.f32.mrf.mxu0
    %v1274 = vadd.f32 0.0, %v1273
    %1275 = vmatprep.mubr.f32.mxu0 0.0
    %1276 = vmatmul.mubr.f32.gmra.mxu0 %v1145
    %v1277 = vpop.f32.mrf.mxu0
    %v1278 = vadd.f32 0.0, %v1277
    %v1279 = vpop.f32.mrf.mxu0
    %v1280 = vadd.f32 0.0, %v1279
    %1281 = vmatprep.mubr.f32.mxu0 0.0
    %1282 = vmatmul.mubr.f32.gmra.mxu0 %v1146
    %v1283 = vpop.f32.mrf.mxu0
    %v1284 = vadd.f32 0.0, %v1283
    %v1285 = vpop.f32.mrf.mxu0
    %v1286 = vadd.f32 0.0, %v1285
    %1287 = vmatprep.mubr.f32.mxu0 0.0
    %1288 = vmatmul.mubr.f32.gmra.mxu0 %v1147
    %v1289 = vpop.f32.mrf.mxu0
    %v1290 = vadd.f32 0.0, %v1289
    %v1291 = vpop.f32.mrf.mxu0
    %v1292 = vadd.f32 0.0, %v1291
    %1293 = vmatprep.mubr.f32.mxu0 0.0
    %1294 = vmatmul.mubr.f32.gmra.mxu0 %v1148
    %v1295 = vpop.f32.mrf.mxu0
    %v1296 = vadd.f32 0.0, %v1295
    %v1297 = vpop.f32.mrf.mxu0
    %v1298 = vadd.f32 0.0, %v1297
    %1299 = vmatprep.mubr.f32.mxu0 0.0
    %1300 = vmatmul.mubr.f32.gmra.mxu0 %v1149
    %v1301 = vpop.f32.mrf.mxu0
    %v1302 = vadd.f32 0.0, %v1301
    %v1303 = vpop.f32.mrf.mxu0
    %v1304 = vadd.f32 0.0, %v1303
    %1305 = vmatprep.mubr.f32.mxu0 0.0
    %1306 = vmatmul.mubr.f32.gmra.mxu0 %v1150
    %v1307 = vpop.f32.mrf.mxu0
    %v1308 = vadd.f32 0.0, %v1307
    %v1309 = vpop.f32.mrf.mxu0
    %v1310 = vadd.f32 0.0, %v1309
    %1311 = vdwg.mxu0
    %v1312 = vmul.f32 %v1218, 0.1
    %v1313 = vmul.f32 %v1220, 0.1
    %v1314 = vmul.f32 %v1224, 0.1
    %v1315 = vmul.f32 %v1226, 0.1
    %v1316 = vmul.f32 %v1230, 0.1
    %v1317 = vmul.f32 %v1232, 0.1
    %v1318 = vmul.f32 %v1236, 0.1
    %v1319 = vmul.f32 %v1238, 0.1
    %v1320 = vmul.f32 %v1242, 0.1
    %v1321 = vmul.f32 %v1244, 0.1
    %v1322 = vmul.f32 %v1248, 0.1
    %v1323 = vmul.f32 %v1250, 0.1
    %v1324 = vmul.f32 %v1254, 0.1
    %v1325 = vmul.f32 %v1256, 0.1
    %v1326 = vmul.f32 %v1260, 0.1
    %v1327 = vmul.f32 %v1262, 0.1
    %v1328 = vmul.f32 %v1266, 0.1
    %v1329 = vmul.f32 %v1268, 0.1
    %v1330 = vmul.f32 %v1272, 0.1
    %v1331 = vmul.f32 %v1274, 0.1
    %v1332 = vmul.f32 %v1278, 0.1
    %v1333 = vmul.f32 %v1280, 0.1
    %v1334 = vmul.f32 %v1284, 0.1
    %v1335 = vmul.f32 %v1286, 0.1
    %v1336 = vmul.f32 %v1290, 0.1
    %v1337 = vmul.f32 %v1292, 0.1
    %v1338 = vmul.f32 %v1296, 0.1
    %v1339 = vmul.f32 %v1298, 0.1
    %v1340 = vmul.f32 %v1302, 0.1
    %v1341 = vmul.f32 %v1304, 0.1
    %v1342 = vmul.f32 %v1308, 0.1
    %v1343 = vmul.f32 %v1310, 0.1
    %v1344 = vadd.f32 %v1055, %v1312
    %v1345 = vadd.f32 %v1056, %v1313
    %v1346 = vadd.f32 %v1057, %v1314
    %v1347 = vadd.f32 %v1058, %v1315
    %v1348 = vadd.f32 %v1059, %v1316
    %v1349 = vadd.f32 %v1060, %v1317
    %v1350 = vadd.f32 %v1061, %v1318
    %v1351 = vadd.f32 %v1062, %v1319
    %v1352 = vadd.f32 %v1063, %v1320
    %v1353 = vadd.f32 %v1064, %v1321
    %v1354 = vadd.f32 %v1065, %v1322
    %v1355 = vadd.f32 %v1066, %v1323
    %v1356 = vadd.f32 %v1067, %v1324
    %v1357 = vadd.f32 %v1068, %v1325
    %v1358 = vadd.f32 %v1069, %v1326
    %v1359 = vadd.f32 %v1070, %v1327
    %v1360 = vadd.f32 %v1071, %v1328
    %v1361 = vadd.f32 %v1072, %v1329
    %v1362 = vadd.f32 %v1073, %v1330
    %v1363 = vadd.f32 %v1074, %v1331
    %v1364 = vadd.f32 %v1075, %v1332
    %v1365 = vadd.f32 %v1076, %v1333
    %v1366 = vadd.f32 %v1077, %v1334
    %v1367 = vadd.f32 %v1078, %v1335
    %v1368 = vadd.f32 %v1079, %v1336
    %v1369 = vadd.f32 %v1080, %v1337
    %v1370 = vadd.f32 %v1081, %v1338
    %v1371 = vadd.f32 %v1082, %v1339
    %v1372 = vadd.f32 %v1083, %v1340
    %v1373 = vadd.f32 %v1084, %v1341
    %v1374 = vadd.f32 %v1085, %v1342
    %v1375 = vadd.f32 %v1086, %v1343
    %v1376 = vsub.f32 %v1344, 0.01
    %v1377 = vsub.f32 %v1345, 0.01
    %v1378 = vsub.f32 %v1346, 0.01
    %v1379 = vsub.f32 %v1347, 0.01
    %v1380 = vsub.f32 %v1348, 0.01
    %v1381 = vsub.f32 %v1349, 0.01
    %v1382 = vsub.f32 %v1350, 0.01
    %v1383 = vsub.f32 %v1351, 0.01
    %v1384 = vsub.f32 %v1352, 0.01
    %v1385 = vsub.f32 %v1353, 0.01
    %v1386 = vsub.f32 %v1354, 0.01
    %v1387 = vsub.f32 %v1355, 0.01
    %v1388 = vsub.f32 %v1356, 0.01
    %v1389 = vsub.f32 %v1357, 0.01
    %v1390 = vsub.f32 %v1358, 0.01
    %v1391 = vsub.f32 %v1359, 0.01
    %v1392 = vsub.f32 %v1360, 0.01
    %v1393 = vsub.f32 %v1361, 0.01
    %v1394 = vsub.f32 %v1362, 0.01
    %v1395 = vsub.f32 %v1363, 0.01
    %v1396 = vsub.f32 %v1364, 0.01
    %v1397 = vsub.f32 %v1365, 0.01
    %v1398 = vsub.f32 %v1366, 0.01
    %v1399 = vsub.f32 %v1367, 0.01
    %v1400 = vsub.f32 %v1368, 0.01
    %v1401 = vsub.f32 %v1369, 0.01
    %v1402 = vsub.f32 %v1370, 0.01
    %v1403 = vsub.f32 %v1371, 0.01
    %v1404 = vsub.f32 %v1372, 0.01
    %v1405 = vsub.f32 %v1373, 0.01
    %v1406 = vsub.f32 %v1374, 0.01
    %v1407 = vsub.f32 %v1375, 0.01
    %v1408 = vmax.f32 %v1376, 0.0
    %v1409 = vmax.f32 %v1377, 0.0
    %v1410 = vmax.f32 %v1378, 0.0
    %v1411 = vmax.f32 %v1379, 0.0
    %v1412 = vmax.f32 %v1380, 0.0
    %v1413 = vmax.f32 %v1381, 0.0
    %v1414 = vmax.f32 %v1382, 0.0
    %v1415 = vmax.f32 %v1383, 0.0
    %v1416 = vmax.f32 %v1384, 0.0
    %v1417 = vmax.f32 %v1385, 0.0
    %v1418 = vmax.f32 %v1386, 0.0
    %v1419 = vmax.f32 %v1387, 0.0
    %v1420 = vmax.f32 %v1388, 0.0
    %v1421 = vmax.f32 %v1389, 0.0
    %v1422 = vmax.f32 %v1390, 0.0
    %v1423 = vmax.f32 %v1391, 0.0
    %v1424 = vmax.f32 %v1392, 0.0
    %v1425 = vmax.f32 %v1393, 0.0
    %v1426 = vmax.f32 %v1394, 0.0
    %v1427 = vmax.f32 %v1395, 0.0
    %v1428 = vmax.f32 %v1396, 0.0
    %v1429 = vmax.f32 %v1397, 0.0
    %v1430 = vmax.f32 %v1398, 0.0
    %v1431 = vmax.f32 %v1399, 0.0
    %v1432 = vmax.f32 %v1400, 0.0
    %v1433 = vmax.f32 %v1401, 0.0
    %v1434 = vmax.f32 %v1402, 0.0
    %v1435 = vmax.f32 %v1403, 0.0
    %v1436 = vmax.f32 %v1404, 0.0
    %v1437 = vmax.f32 %v1405, 0.0
    %v1438 = vmax.f32 %v1406, 0.0
    %v1439 = vmax.f32 %v1407, 0.0
    %1440 = vmatprep.subr.mxu0 0.0
    %1441 = vmatpush1.msra.mxu0 %v90
    %1442 = vmatprep.subr.mxu0 0.0
    %1443 = vmatpush1.msra.mxu0 %v89
    %1444 = vmatprep.subr.mxu0 0.0
    %1445 = vmatpush1.msra.mxu0 %v88
    %1446 = vmatprep.subr.mxu0 0.0
    %1447 = vmatpush1.msra.mxu0 %v87
    %1448 = vmatprep.subr.mxu0 0.0
    %1449 = vmatpush1.msra.mxu0 %v86
    %1450 = vmatprep.subr.mxu0 0.0
    %1451 = vmatpush1.msra.mxu0 %v85
    %1452 = vmatprep.subr.mxu0 0.0
    %1453 = vmatpush1.msra.mxu0 %v84
    %1454 = vmatprep.subr.mxu0 0.0
    %1455 = vmatpush1.msra.mxu0 %v83
    %1456 = vmatprep.subr.mxu0 0.0
    %1457 = vmatpush1.msra.mxu0 %v82
    %1458 = vmatprep.subr.mxu0 0.0
    %1459 = vmatpush1.msra.mxu0 %v81
    %1460 = vmatprep.subr.mxu0 0.0
    %1461 = vmatpush1.msra.mxu0 %v80
    %1462 = vmatprep.subr.mxu0 0.0
    %1463 = vmatpush1.msra.mxu0 %v79
    %1464 = vmatprep.subr.mxu0 0.0
    %1465 = vmatpush1.msra.mxu0 %v78
    %1466 = vmatprep.subr.mxu0 0.0
    %1467 = vmatpush1.msra.mxu0 %v77
    %1468 = vmatprep.subr.mxu0 0.0
    %1469 = vmatpush1.msra.mxu0 %v76
    %1470 = vmatprep.subr.mxu0 0.0
    %1471 = vmatpush1.msra.mxu0 %v75
    %1472 = vmatprep.subr.mxu0 0.0
    %1473 = vmatpush2.msra.mxu0 %v106
    %1474 = vmatprep.subr.mxu0 0.0
    %1475 = vmatpush2.msra.mxu0 %v105
    %1476 = vmatprep.subr.mxu0 0.0
    %1477 = vmatpush2.msra.mxu0 %v104
    %1478 = vmatprep.subr.mxu0 0.0
    %1479 = vmatpush2.msra.mxu0 %v103
    %1480 = vmatprep.subr.mxu0 0.0
    %1481 = vmatpush2.msra.mxu0 %v102
    %1482 = vmatprep.subr.mxu0 0.0
    %1483 = vmatpush2.msra.mxu0 %v101
    %1484 = vmatprep.subr.mxu0 0.0
    %1485 = vmatpush2.msra.mxu0 %v100
    %1486 = vmatprep.subr.mxu0 0.0
    %1487 = vmatpush2.msra.mxu0 %v99
    %1488 = vmatprep.subr.mxu0 0.0
    %1489 = vmatpush2.msra.mxu0 %v98
    %1490 = vmatprep.subr.mxu0 0.0
    %1491 = vmatpush2.msra.mxu0 %v97
    %1492 = vmatprep.subr.mxu0 0.0
    %1493 = vmatpush2.msra.mxu0 %v96
    %1494 = vmatprep.subr.mxu0 0.0
    %1495 = vmatpush2.msra.mxu0 %v95
    %1496 = vmatprep.subr.mxu0 0.0
    %1497 = vmatpush2.msra.mxu0 %v94
    %1498 = vmatprep.subr.mxu0 0.0
    %1499 = vmatpush2.msra.mxu0 %v93
    %1500 = vmatprep.subr.mxu0 0.0
    %1501 = vmatpush2.msra.mxu0 %v92
    %1502 = vmatprep.subr.mxu0 0.0
    %1503 = vmatpush2.msra.mxu0 %v91
    %1504 = vmatprep.mubr.f32.mxu0 %v1409
    %1505 = vmatmul.mubr.f32.gmra.mxu0 %v1408
    %v1506 = vpop.f32.mrf.mxu0
    %v1507 = vadd.f32 0.0, %v1506
    %v1508 = vpop.f32.mrf.mxu0
    %1509 = vmatprep.mubr.f32.mxu0 %v1411
    %1510 = vmatmul.mubr.f32.gmra.mxu0 %v1410
    %v1511 = vpop.f32.mrf.mxu0
    %v1512 = vadd.f32 0.0, %v1511
    %v1513 = vpop.f32.mrf.mxu0
    %1514 = vmatprep.mubr.f32.mxu0 %v1413
    %1515 = vmatmul.mubr.f32.gmra.mxu0 %v1412
    %v1516 = vpop.f32.mrf.mxu0
    %v1517 = vadd.f32 0.0, %v1516
    %v1518 = vpop.f32.mrf.mxu0
    %1519 = vmatprep.mubr.f32.mxu0 %v1415
    %1520 = vmatmul.mubr.f32.gmra.mxu0 %v1414
    %v1521 = vpop.f32.mrf.mxu0
    %v1522 = vadd.f32 0.0, %v1521
    %v1523 = vpop.f32.mrf.mxu0
    %1524 = vmatprep.mubr.f32.mxu0 %v1417
    %1525 = vmatmul.mubr.f32.gmra.mxu0 %v1416
    %v1526 = vpop.f32.mrf.mxu0
    %v1527 = vadd.f32 0.0, %v1526
    %v1528 = vpop.f32.mrf.mxu0
    %1529 = vmatprep.mubr.f32.mxu0 %v1419
    %1530 = vmatmul.mubr.f32.gmra.mxu0 %v1418
    %v1531 = vpop.f32.mrf.mxu0
    %v1532 = vadd.f32 0.0, %v1531
    %v1533 = vpop.f32.mrf.mxu0
    %1534 = vmatprep.mubr.f32.mxu0 %v1421
    %1535 = vmatmul.mubr.f32.gmra.mxu0 %v1420
    %v1536 = vpop.f32.mrf.mxu0
    %v1537 = vadd.f32 0.0, %v1536
    %v1538 = vpop.f32.mrf.mxu0
    %1539 = vmatprep.mubr.f32.mxu0 %v1423
    %1540 = vmatmul.mubr.f32.gmra.mxu0 %v1422
    %v1541 = vpop.f32.mrf.mxu0
    %v1542 = vadd.f32 0.0, %v1541
    %v1543 = vpop.f32.mrf.mxu0
    %1544 = vmatprep.mubr.f32.mxu0 %v1425
    %1545 = vmatmul.mubr.f32.gmra.mxu0 %v1424
    %v1546 = vpop.f32.mrf.mxu0
    %v1547 = vadd.f32 0.0, %v1546
    %v1548 = vpop.f32.mrf.mxu0
    %1549 = vmatprep.mubr.f32.mxu0 %v1427
    %1550 = vmatmul.mubr.f32.gmra.mxu0 %v1426
    %v1551 = vpop.f32.mrf.mxu0
    %v1552 = vadd.f32 0.0, %v1551
    %v1553 = vpop.f32.mrf.mxu0
    %1554 = vmatprep.mubr.f32.mxu0 %v1429
    %1555 = vmatmul.mubr.f32.gmra.mxu0 %v1428
    %v1556 = vpop.f32.mrf.mxu0
    %v1557 = vadd.f32 0.0, %v1556
    %v1558 = vpop.f32.mrf.mxu0
    %1559 = vmatprep.mubr.f32.mxu0 %v1431
    %1560 = vmatmul.mubr.f32.gmra.mxu0 %v1430
    %v1561 = vpop.f32.mrf.mxu0
    %v1562 = vadd.f32 0.0, %v1561
    %v1563 = vpop.f32.mrf.mxu0
    %1564 = vmatprep.mubr.f32.mxu0 %v1433
    %1565 = vmatmul.mubr.f32.gmra.mxu0 %v1432
    %v1566 = vpop.f32.mrf.mxu0
    %v1567 = vadd.f32 0.0, %v1566
    %v1568 = vpop.f32.mrf.mxu0
    %1569 = vmatprep.mubr.f32.mxu0 %v1435
    %1570 = vmatmul.mubr.f32.gmra.mxu0 %v1434
    %v1571 = vpop.f32.mrf.mxu0
    %v1572 = vadd.f32 0.0, %v1571
    %v1573 = vpop.f32.mrf.mxu0
    %1574 = vmatprep.mubr.f32.mxu0 %v1437
    %1575 = vmatmul.mubr.f32.gmra.mxu0 %v1436
    %v1576 = vpop.f32.mrf.mxu0
    %v1577 = vadd.f32 0.0, %v1576
    %v1578 = vpop.f32.mrf.mxu0
    %1579 = vmatprep.mubr.f32.mxu0 %v1439
    %1580 = vmatmul.mubr.f32.gmra.mxu0 %v1438
    %v1581 = vpop.f32.mrf.mxu0
    %v1582 = vadd.f32 0.0, %v1581
    %v1583 = vpop.f32.mrf.mxu0
    %1584 = vdwg.mxu0
    %v1585 = vsub.f32 %v1408, %v814
    %v1586 = vsub.f32 %v1409, %v815
    %v1587 = vsub.f32 %v1410, %v816
    %v1588 = vsub.f32 %v1411, %v817
    %v1589 = vsub.f32 %v1412, %v818
    %v1590 = vsub.f32 %v1413, %v819
    %v1591 = vsub.f32 %v1414, %v820
    %v1592 = vsub.f32 %v1415, %v821
    %v1593 = vsub.f32 %v1416, %v822
    %v1594 = vsub.f32 %v1417, %v823
    %v1595 = vsub.f32 %v1418, %v824
    %v1596 = vsub.f32 %v1419, %v825
    %v1597 = vsub.f32 %v1420, %v826
    %v1598 = vsub.f32 %v1421, %v827
    %v1599 = vsub.f32 %v1422, %v828
    %v1600 = vsub.f32 %v1423, %v829
    %v1601 = vsub.f32 %v1424, %v830
    %v1602 = vsub.f32 %v1425, %v831
    %v1603 = vsub.f32 %v1426, %v832
    %v1604 = vsub.f32 %v1427, %v833
    %v1605 = vsub.f32 %v1428, %v834
    %v1606 = vsub.f32 %v1429, %v835
    %v1607 = vsub.f32 %v1430, %v836
    %v1608 = vsub.f32 %v1431, %v837
    %v1609 = vsub.f32 %v1432, %v838
    %v1610 = vsub.f32 %v1433, %v839
    %v1611 = vsub.f32 %v1434, %v840
    %v1612 = vsub.f32 %v1435, %v841
    %v1613 = vsub.f32 %v1436, %v842
    %v1614 = vsub.f32 %v1437, %v843
    %v1615 = vsub.f32 %v1438, %v844
    %v1616 = vsub.f32 %v1439, %v845
    %v1617 = vmul.f32 %v1585, 0.43404278
    %v1618 = vmul.f32 %v1586, 0.43404278
    %v1619 = vmul.f32 %v1587, 0.43404278
    %v1620 = vmul.f32 %v1588, 0.43404278
    %v1621 = vmul.f32 %v1589, 0.43404278
    %v1622 = vmul.f32 %v1590, 0.43404278
    %v1623 = vmul.f32 %v1591, 0.43404278
    %v1624 = vmul.f32 %v1592, 0.43404278
    %v1625 = vmul.f32 %v1593, 0.43404278
    %v1626 = vmul.f32 %v1594, 0.43404278
    %v1627 = vmul.f32 %v1595, 0.43404278
    %v1628 = vmul.f32 %v1596, 0.43404278
    %v1629 = vmul.f32 %v1597, 0.43404278
    %v1630 = vmul.f32 %v1598, 0.43404278
    %v1631 = vmul.f32 %v1599, 0.43404278
    %v1632 = vmul.f32 %v1600, 0.43404278
    %v1633 = vmul.f32 %v1601, 0.43404278
    %v1634 = vmul.f32 %v1602, 0.43404278
    %v1635 = vmul.f32 %v1603, 0.43404278
    %v1636 = vmul.f32 %v1604, 0.43404278
    %v1637 = vmul.f32 %v1605, 0.43404278
    %v1638 = vmul.f32 %v1606, 0.43404278
    %v1639 = vmul.f32 %v1607, 0.43404278
    %v1640 = vmul.f32 %v1608, 0.43404278
    %v1641 = vmul.f32 %v1609, 0.43404278
    %v1642 = vmul.f32 %v1610, 0.43404278
    %v1643 = vmul.f32 %v1611, 0.43404278
    %v1644 = vmul.f32 %v1612, 0.43404278
    %v1645 = vmul.f32 %v1613, 0.43404278
    %v1646 = vmul.f32 %v1614, 0.43404278
    %v1647 = vmul.f32 %v1615, 0.43404278
    %v1648 = vmul.f32 %v1616, 0.43404278
    %v1649 = vadd.f32 %v1408, %v1617
    %v1650 = vadd.f32 %v1409, %v1618
    %v1651 = vadd.f32 %v1410, %v1619
    %v1652 = vadd.f32 %v1411, %v1620
    %v1653 = vadd.f32 %v1412, %v1621
    %v1654 = vadd.f32 %v1413, %v1622
    %v1655 = vadd.f32 %v1414, %v1623
    %v1656 = vadd.f32 %v1415, %v1624
    %v1657 = vadd.f32 %v1416, %v1625
    %v1658 = vadd.f32 %v1417, %v1626
    %v1659 = vadd.f32 %v1418, %v1627
    %v1660 = vadd.f32 %v1419, %v1628
    %v1661 = vadd.f32 %v1420, %v1629
    %v1662 = vadd.f32 %v1421, %v1630
    %v1663 = vadd.f32 %v1422, %v1631
    %v1664 = vadd.f32 %v1423, %v1632
    %v1665 = vadd.f32 %v1424, %v1633
    %v1666 = vadd.f32 %v1425, %v1634
    %v1667 = vadd.f32 %v1426, %v1635
    %v1668 = vadd.f32 %v1427, %v1636
    %v1669 = vadd.f32 %v1428, %v1637
    %v1670 = vadd.f32 %v1429, %v1638
    %v1671 = vadd.f32 %v1430, %v1639
    %v1672 = vadd.f32 %v1431, %v1640
    %v1673 = vadd.f32 %v1432, %v1641
    %v1674 = vadd.f32 %v1433, %v1642
    %v1675 = vadd.f32 %v1434, %v1643
    %v1676 = vadd.f32 %v1435, %v1644
    %v1677 = vadd.f32 %v1436, %v1645
    %v1678 = vadd.f32 %v1437, %v1646
    %v1679 = vadd.f32 %v1438, %v1647
    %v1680 = vadd.f32 %v1439, %v1648
    %v1681 = vsub.f32 %v1507, %v913
    %v1682 = vsub.f32 %v1512, %v918
    %v1683 = vsub.f32 %v1517, %v923
    %v1684 = vsub.f32 %v1522, %v928
    %v1685 = vsub.f32 %v1527, %v933
    %v1686 = vsub.f32 %v1532, %v938
    %v1687 = vsub.f32 %v1537, %v943
    %v1688 = vsub.f32 %v1542, %v948
    %v1689 = vsub.f32 %v1547, %v953
    %v1690 = vsub.f32 %v1552, %v958
    %v1691 = vsub.f32 %v1557, %v963
    %v1692 = vsub.f32 %v1562, %v968
    %v1693 = vsub.f32 %v1567, %v973
    %v1694 = vsub.f32 %v1572, %v978
    %v1695 = vsub.f32 %v1577, %v983
    %v1696 = vsub.f32 %v1582, %v988
    %v1697 = vmul.f32 %v1681, 0.43404278
    %v1698 = vmul.f32 %v1682, 0.43404278
    %v1699 = vmul.f32 %v1683, 0.43404278
    %v1700 = vmul.f32 %v1684, 0.43404278
    %v1701 = vmul.f32 %v1685, 0.43404278
    %v1702 = vmul.f32 %v1686, 0.43404278
    %v1703 = vmul.f32 %v1687, 0.43404278
    %v1704 = vmul.f32 %v1688, 0.43404278
    %v1705 = vmul.f32 %v1689, 0.43404278
    %v1706 = vmul.f32 %v1690, 0.43404278
    %v1707 = vmul.f32 %v1691, 0.43404278
    %v1708 = vmul.f32 %v1692, 0.43404278
    %v1709 = vmul.f32 %v1693, 0.43404278
    %v1710 = vmul.f32 %v1694, 0.43404278
    %v1711 = vmul.f32 %v1695, 0.43404278
    %v1712 = vmul.f32 %v1696, 0.43404278
    %v1713 = vadd.f32 %v1507, %v1697
    %v1714 = vadd.f32 %v1512, %v1698
    %v1715 = vadd.f32 %v1517, %v1699
    %v1716 = vadd.f32 %v1522, %v1700
    %v1717 = vadd.f32 %v1527, %v1701
    %v1718 = vadd.f32 %v1532, %v1702
    %v1719 = vadd.f32 %v1537, %v1703
    %v1720 = vadd.f32 %v1542, %v1704
    %v1721 = vadd.f32 %v1547, %v1705
    %v1722 = vadd.f32 %v1552, %v1706
    %v1723 = vadd.f32 %v1557, %v1707
    %v1724 = vadd.f32 %v1562, %v1708
    %v1725 = vadd.f32 %v1567, %v1709
    %v1726 = vadd.f32 %v1572, %v1710
    %v1727 = vadd.f32 %v1577, %v1711
    %v1728 = vadd.f32 %v1582, %v1712
    %v1729 = vsub.f32 %v59, %v1713
    %v1730 = vsub.f32 %v60, %v1714
    %v1731 = vsub.f32 %v61, %v1715
    %v1732 = vsub.f32 %v62, %v1716
    %v1733 = vsub.f32 %v63, %v1717
    %v1734 = vsub.f32 %v64, %v1718
    %v1735 = vsub.f32 %v65, %v1719
    %v1736 = vsub.f32 %v66, %v1720
    %v1737 = vsub.f32 %v67, %v1721
    %v1738 = vsub.f32 %v68, %v1722
    %v1739 = vsub.f32 %v69, %v1723
    %v1740 = vsub.f32 %v70, %v1724
    %v1741 = vsub.f32 %v71, %v1725
    %v1742 = vsub.f32 %v72, %v1726
    %v1743 = vsub.f32 %v73, %v1727
    %v1744 = vsub.f32 %v74, %v1728
    %1745 = vmatprep.subr.mxu0 %v138
    %1746 = vmatpush1.msra.mxu0 %v137
    %1747 = vmatprep.subr.mxu0 %v136
    %1748 = vmatpush1.msra.mxu0 %v135
    %1749 = vmatprep.subr.mxu0 %v134
    %1750 = vmatpush1.msra.mxu0 %v133
    %1751 = vmatprep.subr.mxu0 %v132
    %1752 = vmatpush1.msra.mxu0 %v131
    %1753 = vmatprep.subr.mxu0 %v130
    %1754 = vmatpush1.msra.mxu0 %v129
    %1755 = vmatprep.subr.mxu0 %v128
    %1756 = vmatpush1.msra.mxu0 %v127
    %1757 = vmatprep.subr.mxu0 %v126
    %1758 = vmatpush1.msra.mxu0 %v125
    %1759 = vmatprep.subr.mxu0 %v124
    %1760 = vmatpush1.msra.mxu0 %v123
    %1761 = vmatprep.subr.mxu0 %v122
    %1762 = vmatpush1.msra.mxu0 %v121
    %1763 = vmatprep.subr.mxu0 %v120
    %1764 = vmatpush1.msra.mxu0 %v119
    %1765 = vmatprep.subr.mxu0 %v118
    %1766 = vmatpush1.msra.mxu0 %v117
    %1767 = vmatprep.subr.mxu0 %v116
    %1768 = vmatpush1.msra.mxu0 %v115
    %1769 = vmatprep.subr.mxu0 %v114
    %1770 = vmatpush1.msra.mxu0 %v113
    %1771 = vmatprep.subr.mxu0 %v112
    %1772 = vmatpush1.msra.mxu0 %v111
    %1773 = vmatprep.subr.mxu0 %v110
    %1774 = vmatpush1.msra.mxu0 %v109
    %1775 = vmatprep.subr.mxu0 %v108
    %1776 = vmatpush1.msra.mxu0 %v107
    %1777 = vmatprep.subr.mxu0 0.0
    %1778 = vmatpush2.msra.mxu0 0.0
    %1779 = vmatprep.subr.mxu0 0.0
    %1780 = vmatpush2.msra.mxu0 0.0
    %1781 = vmatprep.subr.mxu0 0.0
    %1782 = vmatpush2.msra.mxu0 0.0
    %1783 = vmatprep.subr.mxu0 0.0
    %1784 = vmatpush2.msra.mxu0 0.0
    %1785 = vmatprep.subr.mxu0 0.0
    %1786 = vmatpush2.msra.mxu0 0.0
    %1787 = vmatprep.subr.mxu0 0.0
    %1788 = vmatpush2.msra.mxu0 0.0
    %1789 = vmatprep.subr.mxu0 0.0
    %1790 = vmatpush2.msra.mxu0 0.0
    %1791 = vmatprep.subr.mxu0 0.0
    %1792 = vmatpush2.msra.mxu0 0.0
    %1793 = vmatprep.subr.mxu0 0.0
    %1794 = vmatpush2.msra.mxu0 0.0
    %1795 = vmatprep.subr.mxu0 0.0
    %1796 = vmatpush2.msra.mxu0 0.0
    %1797 = vmatprep.subr.mxu0 0.0
    %1798 = vmatpush2.msra.mxu0 0.0
    %1799 = vmatprep.subr.mxu0 0.0
    %1800 = vmatpush2.msra.mxu0 0.0
    %1801 = vmatprep.subr.mxu0 0.0
    %1802 = vmatpush2.msra.mxu0 0.0
    %1803 = vmatprep.subr.mxu0 0.0
    %1804 = vmatpush2.msra.mxu0 0.0
    %1805 = vmatprep.subr.mxu0 0.0
    %1806 = vmatpush2.msra.mxu0 0.0
    %1807 = vmatprep.subr.mxu0 0.0
    %1808 = vmatpush2.msra.mxu0 0.0
    %1809 = vmatprep.mubr.f32.mxu0 0.0
    %1810 = vmatmul.mubr.f32.gmra.mxu0 %v1729
    %v1811 = vpop.f32.mrf.mxu0
    %v1812 = vadd.f32 0.0, %v1811
    %v1813 = vpop.f32.mrf.mxu0
    %v1814 = vadd.f32 0.0, %v1813
    %1815 = vmatprep.mubr.f32.mxu0 0.0
    %1816 = vmatmul.mubr.f32.gmra.mxu0 %v1730
    %v1817 = vpop.f32.mrf.mxu0
    %v1818 = vadd.f32 0.0, %v1817
    %v1819 = vpop.f32.mrf.mxu0
    %v1820 = vadd.f32 0.0, %v1819
    %1821 = vmatprep.mubr.f32.mxu0 0.0
    %1822 = vmatmul.mubr.f32.gmra.mxu0 %v1731
    %v1823 = vpop.f32.mrf.mxu0
    %v1824 = vadd.f32 0.0, %v1823
    %v1825 = vpop.f32.mrf.mxu0
    %v1826 = vadd.f32 0.0, %v1825
    %1827 = vmatprep.mubr.f32.mxu0 0.0
    %1828 = vmatmul.mubr.f32.gmra.mxu0 %v1732
    %v1829 = vpop.f32.mrf.mxu0
    %v1830 = vadd.f32 0.0, %v1829
    %v1831 = vpop.f32.mrf.mxu0
    %v1832 = vadd.f32 0.0, %v1831
    %1833 = vmatprep.mubr.f32.mxu0 0.0
    %1834 = vmatmul.mubr.f32.gmra.mxu0 %v1733
    %v1835 = vpop.f32.mrf.mxu0
    %v1836 = vadd.f32 0.0, %v1835
    %v1837 = vpop.f32.mrf.mxu0
    %v1838 = vadd.f32 0.0, %v1837
    %1839 = vmatprep.mubr.f32.mxu0 0.0
    %1840 = vmatmul.mubr.f32.gmra.mxu0 %v1734
    %v1841 = vpop.f32.mrf.mxu0
    %v1842 = vadd.f32 0.0, %v1841
    %v1843 = vpop.f32.mrf.mxu0
    %v1844 = vadd.f32 0.0, %v1843
    %1845 = vmatprep.mubr.f32.mxu0 0.0
    %1846 = vmatmul.mubr.f32.gmra.mxu0 %v1735
    %v1847 = vpop.f32.mrf.mxu0
    %v1848 = vadd.f32 0.0, %v1847
    %v1849 = vpop.f32.mrf.mxu0
    %v1850 = vadd.f32 0.0, %v1849
    %1851 = vmatprep.mubr.f32.mxu0 0.0
    %1852 = vmatmul.mubr.f32.gmra.mxu0 %v1736
    %v1853 = vpop.f32.mrf.mxu0
    %v1854 = vadd.f32 0.0, %v1853
    %v1855 = vpop.f32.mrf.mxu0
    %v1856 = vadd.f32 0.0, %v1855
    %1857 = vmatprep.mubr.f32.mxu0 0.0
    %1858 = vmatmul.mubr.f32.gmra.mxu0 %v1737
    %v1859 = vpop.f32.mrf.mxu0
    %v1860 = vadd.f32 0.0, %v1859
    %v1861 = vpop.f32.mrf.mxu0
    %v1862 = vadd.f32 0.0, %v1861
    %1863 = vmatprep.mubr.f32.mxu0 0.0
    %1864 = vmatmul.mubr.f32.gmra.mxu0 %v1738
    %v1865 = vpop.f32.mrf.mxu0
    %v1866 = vadd.f32 0.0, %v1865
    %v1867 = vpop.f32.mrf.mxu0
    %v1868 = vadd.f32 0.0, %v1867
    %1869 = vmatprep.mubr.f32.mxu0 0.0
    %1870 = vmatmul.mubr.f32.gmra.mxu0 %v1739
    %v1871 = vpop.f32.mrf.mxu0
    %v1872 = vadd.f32 0.0, %v1871
    %v1873 = vpop.f32.mrf.mxu0
    %v1874 = vadd.f32 0.0, %v1873
    %1875 = vmatprep.mubr.f32.mxu0 0.0
    %1876 = vmatmul.mubr.f32.gmra.mxu0 %v1740
    %v1877 = vpop.f32.mrf.mxu0
    %v1878 = vadd.f32 0.0, %v1877
    %v1879 = vpop.f32.mrf.mxu0
    %v1880 = vadd.f32 0.0, %v1879
    %1881 = vmatprep.mubr.f32.mxu0 0.0
    %1882 = vmatmul.mubr.f32.gmra.mxu0 %v1741
    %v1883 = vpop.f32.mrf.mxu0
    %v1884 = vadd.f32 0.0, %v1883
    %v1885 = vpop.f32.mrf.mxu0
    %v1886 = vadd.f32 0.0, %v1885
    %1887 = vmatprep.mubr.f32.mxu0 0.0
    %1888 = vmatmul.mubr.f32.gmra.mxu0 %v1742
    %v1889 = vpop.f32.mrf.mxu0
    %v1890 = vadd.f32 0.0, %v1889
    %v1891 = vpop.f32.mrf.mxu0
    %v1892 = vadd.f32 0.0, %v1891
    %1893 = vmatprep.mubr.f32.mxu0 0.0
    %1894 = vmatmul.mubr.f32.gmra.mxu0 %v1743
    %v1895 = vpop.f32.mrf.mxu0
    %v1896 = vadd.f32 0.0, %v1895
    %v1897 = vpop.f32.mrf.mxu0
    %v1898 = vadd.f32 0.0, %v1897
    %1899 = vmatprep.mubr.f32.mxu0 0.0
    %1900 = vmatmul.mubr.f32.gmra.mxu0 %v1744
    %v1901 = vpop.f32.mrf.mxu0
    %v1902 = vadd.f32 0.0, %v1901
    %v1903 = vpop.f32.mrf.mxu0
    %v1904 = vadd.f32 0.0, %v1903
    %1905 = vdwg.mxu0
    %v1906 = vmul.f32 %v1812, 0.1
    %v1907 = vmul.f32 %v1814, 0.1
    %v1908 = vmul.f32 %v1818, 0.1
    %v1909 = vmul.f32 %v1820, 0.1
    %v1910 = vmul.f32 %v1824, 0.1
    %v1911 = vmul.f32 %v1826, 0.1
    %v1912 = vmul.f32 %v1830, 0.1
    %v1913 = vmul.f32 %v1832, 0.1
    %v1914 = vmul.f32 %v1836, 0.1
    %v1915 = vmul.f32 %v1838, 0.1
    %v1916 = vmul.f32 %v1842, 0.1
    %v1917 = vmul.f32 %v1844, 0.1
    %v1918 = vmul.f32 %v1848, 0.1
    %v1919 = vmul.f32 %v1850, 0.1
    %v1920 = vmul.f32 %v1854, 0.1
    %v1921 = vmul.f32 %v1856, 0.1
    %v1922 = vmul.f32 %v1860, 0.1
    %v1923 = vmul.f32 %v1862, 0.1
    %v1924 = vmul.f32 %v1866, 0.1
    %v1925 = vmul.f32 %v1868, 0.1
    %v1926 = vmul.f32 %v1872, 0.1
    %v1927 = vmul.f32 %v1874, 0.1
    %v1928 = vmul.f32 %v1878, 0.1
    %v1929 = vmul.f32 %v1880, 0.1
    %v1930 = vmul.f32 %v1884, 0.1
    %v1931 = vmul.f32 %v1886, 0.1
    %v1932 = vmul.f32 %v1890, 0.1
    %v1933 = vmul.f32 %v1892, 0.1
    %v1934 = vmul.f32 %v1896, 0.1
    %v1935 = vmul.f32 %v1898, 0.1
    %v1936 = vmul.f32 %v1902, 0.1
    %v1937 = vmul.f32 %v1904, 0.1
    %v1938 = vadd.f32 %v1649, %v1906
    %v1939 = vadd.f32 %v1650, %v1907
    %v1940 = vadd.f32 %v1651, %v1908
    %v1941 = vadd.f32 %v1652, %v1909
    %v1942 = vadd.f32 %v1653, %v1910
    %v1943 = vadd.f32 %v1654, %v1911
    %v1944 = vadd.f32 %v1655, %v1912
    %v1945 = vadd.f32 %v1656, %v1913
    %v1946 = vadd.f32 %v1657, %v1914
    %v1947 = vadd.f32 %v1658, %v1915
    %v1948 = vadd.f32 %v1659, %v1916
    %v1949 = vadd.f32 %v1660, %v1917
    %v1950 = vadd.f32 %v1661, %v1918
    %v1951 = vadd.f32 %v1662, %v1919
    %v1952 = vadd.f32 %v1663, %v1920
    %v1953 = vadd.f32 %v1664, %v1921
    %v1954 = vadd.f32 %v1665, %v1922
    %v1955 = vadd.f32 %v1666, %v1923
    %v1956 = vadd.f32 %v1667, %v1924
    %v1957 = vadd.f32 %v1668, %v1925
    %v1958 = vadd.f32 %v1669, %v1926
    %v1959 = vadd.f32 %v1670, %v1927
    %v1960 = vadd.f32 %v1671, %v1928
    %v1961 = vadd.f32 %v1672, %v1929
    %v1962 = vadd.f32 %v1673, %v1930
    %v1963 = vadd.f32 %v1674, %v1931
    %v1964 = vadd.f32 %v1675, %v1932
    %v1965 = vadd.f32 %v1676, %v1933
    %v1966 = vadd.f32 %v1677, %v1934
    %v1967 = vadd.f32 %v1678, %v1935
    %v1968 = vadd.f32 %v1679, %v1936
    %v1969 = vadd.f32 %v1680, %v1937
    %v1970 = vsub.f32 %v1938, 0.01
    %v1971 = vsub.f32 %v1939, 0.01
    %v1972 = vsub.f32 %v1940, 0.01
    %v1973 = vsub.f32 %v1941, 0.01
    %v1974 = vsub.f32 %v1942, 0.01
    %v1975 = vsub.f32 %v1943, 0.01
    %v1976 = vsub.f32 %v1944, 0.01
    %v1977 = vsub.f32 %v1945, 0.01
    %v1978 = vsub.f32 %v1946, 0.01
    %v1979 = vsub.f32 %v1947, 0.01
    %v1980 = vsub.f32 %v1948, 0.01
    %v1981 = vsub.f32 %v1949, 0.01
    %v1982 = vsub.f32 %v1950, 0.01
    %v1983 = vsub.f32 %v1951, 0.01
    %v1984 = vsub.f32 %v1952, 0.01
    %v1985 = vsub.f32 %v1953, 0.01
    %v1986 = vsub.f32 %v1954, 0.01
    %v1987 = vsub.f32 %v1955, 0.01
    %v1988 = vsub.f32 %v1956, 0.01
    %v1989 = vsub.f32 %v1957, 0.01
    %v1990 = vsub.f32 %v1958, 0.01
    %v1991 = vsub.f32 %v1959, 0.01
    %v1992 = vsub.f32 %v1960, 0.01
    %v1993 = vsub.f32 %v1961, 0.01
    %v1994 = vsub.f32 %v1962, 0.01
    %v1995 = vsub.f32 %v1963, 0.01
    %v1996 = vsub.f32 %v1964, 0.01
    %v1997 = vsub.f32 %v1965, 0.01
    %v1998 = vsub.f32 %v1966, 0.01
    %v1999 = vsub.f32 %v1967, 0.01
    %v2000 = vsub.f32 %v1968, 0.01
    %v2001 = vsub.f32 %v1969, 0.01
    %v2002 = vmax.f32 %v1970, 0.0
    %v2003 = vmax.f32 %v1971, 0.0
    %v2004 = vmax.f32 %v1972, 0.0
    %v2005 = vmax.f32 %v1973, 0.0
    %v2006 = vmax.f32 %v1974, 0.0
    %v2007 = vmax.f32 %v1975, 0.0
    %v2008 = vmax.f32 %v1976, 0.0
    %v2009 = vmax.f32 %v1977, 0.0
    %v2010 = vmax.f32 %v1978, 0.0
    %v2011 = vmax.f32 %v1979, 0.0
    %v2012 = vmax.f32 %v1980, 0.0
    %v2013 = vmax.f32 %v1981, 0.0
    %v2014 = vmax.f32 %v1982, 0.0
    %v2015 = vmax.f32 %v1983, 0.0
    %v2016 = vmax.f32 %v1984, 0.0
    %v2017 = vmax.f32 %v1985, 0.0
    %v2018 = vmax.f32 %v1986, 0.0
    %v2019 = vmax.f32 %v1987, 0.0
    %v2020 = vmax.f32 %v1988, 0.0
    %v2021 = vmax.f32 %v1989, 0.0
    %v2022 = vmax.f32 %v1990, 0.0
    %v2023 = vmax.f32 %v1991, 0.0
    %v2024 = vmax.f32 %v1992, 0.0
    %v2025 = vmax.f32 %v1993, 0.0
    %v2026 = vmax.f32 %v1994, 0.0
    %v2027 = vmax.f32 %v1995, 0.0
    %v2028 = vmax.f32 %v1996, 0.0
    %v2029 = vmax.f32 %v1997, 0.0
    %v2030 = vmax.f32 %v1998, 0.0
    %v2031 = vmax.f32 %v1999, 0.0
    %v2032 = vmax.f32 %v2000, 0.0
    %v2033 = vmax.f32 %v2001, 0.0
    %2034 = vmatprep.subr.mxu0 0.0
    %2035 = vmatpush1.msra.mxu0 %v90
    %2036 = vmatprep.subr.mxu0 0.0
    %2037 = vmatpush1.msra.mxu0 %v89
    %2038 = vmatprep.subr.mxu0 0.0
    %2039 = vmatpush1.msra.mxu0 %v88
    %2040 = vmatprep.subr.mxu0 0.0
    %2041 = vmatpush1.msra.mxu0 %v87
    %2042 = vmatprep.subr.mxu0 0.0
    %2043 = vmatpush1.msra.mxu0 %v86
    %2044 = vmatprep.subr.mxu0 0.0
    %2045 = vmatpush1.msra.mxu0 %v85
    %2046 = vmatprep.subr.mxu0 0.0
    %2047 = vmatpush1.msra.mxu0 %v84
    %2048 = vmatprep.subr.mxu0 0.0
    %2049 = vmatpush1.msra.mxu0 %v83
    %2050 = vmatprep.subr.mxu0 0.0
    %2051 = vmatpush1.msra.mxu0 %v82
    %2052 = vmatprep.subr.mxu0 0.0
    %2053 = vmatpush1.msra.mxu0 %v81
    %2054 = vmatprep.subr.mxu0 0.0
    %2055 = vmatpush1.msra.mxu0 %v80
    %2056 = vmatprep.subr.mxu0 0.0
    %2057 = vmatpush1.msra.mxu0 %v79
    %2058 = vmatprep.subr.mxu0 0.0
    %2059 = vmatpush1.msra.mxu0 %v78
    %2060 = vmatprep.subr.mxu0 0.0
    %2061 = vmatpush1.msra.mxu0 %v77
    %2062 = vmatprep.subr.mxu0 0.0
    %2063 = vmatpush1.msra.mxu0 %v76
    %2064 = vmatprep.subr.mxu0 0.0
    %2065 = vmatpush1.msra.mxu0 %v75
    %2066 = vmatprep.subr.mxu0 0.0
    %2067 = vmatpush2.msra.mxu0 %v106
    %2068 = vmatprep.subr.mxu0 0.0
    %2069 = vmatpush2.msra.mxu0 %v105
    %2070 = vmatprep.subr.mxu0 0.0
    %2071 = vmatpush2.msra.mxu0 %v104
    %2072 = vmatprep.subr.mxu0 0.0
    %2073 = vmatpush2.msra.mxu0 %v103
    %2074 = vmatprep.subr.mxu0 0.0
    %2075 = vmatpush2.msra.mxu0 %v102
    %2076 = vmatprep.subr.mxu0 0.0
    %2077 = vmatpush2.msra.mxu0 %v101
    %2078 = vmatprep.subr.mxu0 0.0
    %2079 = vmatpush2.msra.mxu0 %v100
    %2080 = vmatprep.subr.mxu0 0.0
    %2081 = vmatpush2.msra.mxu0 %v99
    %2082 = vmatprep.subr.mxu0 0.0
    %2083 = vmatpush2.msra.mxu0 %v98
    %2084 = vmatprep.subr.mxu0 0.0
    %2085 = vmatpush2.msra.mxu0 %v97
    %2086 = vmatprep.subr.mxu0 0.0
    %2087 = vmatpush2.msra.mxu0 %v96
    %2088 = vmatprep.subr.mxu0 0.0
    %2089 = vmatpush2.msra.mxu0 %v95
    %2090 = vmatprep.subr.mxu0 0.0
    %2091 = vmatpush2.msra.mxu0 %v94
    %2092 = vmatprep.subr.mxu0 0.0
    %2093 = vmatpush2.msra.mxu0 %v93
    %2094 = vmatprep.subr.mxu0 0.0
    %2095 = vmatpush2.msra.mxu0 %v92
    %2096 = vmatprep.subr.mxu0 0.0
    %2097 = vmatpush2.msra.mxu0 %v91
    %2098 = vmatprep.mubr.f32.mxu0 %v2003
    %2099 = vmatmul.mubr.f32.gmra.mxu0 %v2002
    %v2100 = vpop.f32.mrf.mxu0
    %v2101 = vadd.f32 0.0, %v2100
    %v2102 = vpop.f32.mrf.mxu0
    %2103 = vmatprep.mubr.f32.mxu0 %v2005
    %2104 = vmatmul.mubr.f32.gmra.mxu0 %v2004
    %v2105 = vpop.f32.mrf.mxu0
    %v2106 = vadd.f32 0.0, %v2105
    %v2107 = vpop.f32.mrf.mxu0
    %2108 = vmatprep.mubr.f32.mxu0 %v2007
    %2109 = vmatmul.mubr.f32.gmra.mxu0 %v2006
    %v2110 = vpop.f32.mrf.mxu0
    %v2111 = vadd.f32 0.0, %v2110
    %v2112 = vpop.f32.mrf.mxu0
    %2113 = vmatprep.mubr.f32.mxu0 %v2009
    %2114 = vmatmul.mubr.f32.gmra.mxu0 %v2008
    %v2115 = vpop.f32.mrf.mxu0
    %v2116 = vadd.f32 0.0, %v2115
    %v2117 = vpop.f32.mrf.mxu0
    %2118 = vmatprep.mubr.f32.mxu0 %v2011
    %2119 = vmatmul.mubr.f32.gmra.mxu0 %v2010
    %v2120 = vpop.f32.mrf.mxu0
    %v2121 = vadd.f32 0.0, %v2120
    %v2122 = vpop.f32.mrf.mxu0
    %2123 = vmatprep.mubr.f32.mxu0 %v2013
    %2124 = vmatmul.mubr.f32.gmra.mxu0 %v2012
    %v2125 = vpop.f32.mrf.mxu0
    %v2126 = vadd.f32 0.0, %v2125
    %v2127 = vpop.f32.mrf.mxu0
    %2128 = vmatprep.mubr.f32.mxu0 %v2015
    %2129 = vmatmul.mubr.f32.gmra.mxu0 %v2014
    %v2130 = vpop.f32.mrf.mxu0
    %v2131 = vadd.f32 0.0, %v2130
    %v2132 = vpop.f32.mrf.mxu0
    %2133 = vmatprep.mubr.f32.mxu0 %v2017
    %2134 = vmatmul.mubr.f32.gmra.mxu0 %v2016
    %v2135 = vpop.f32.mrf.mxu0
    %v2136 = vadd.f32 0.0, %v2135
    %v2137 = vpop.f32.mrf.mxu0
    %2138 = vmatprep.mubr.f32.mxu0 %v2019
    %2139 = vmatmul.mubr.f32.gmra.mxu0 %v2018
    %v2140 = vpop.f32.mrf.mxu0
    %v2141 = vadd.f32 0.0, %v2140
    %v2142 = vpop.f32.mrf.mxu0
    %2143 = vmatprep.mubr.f32.mxu0 %v2021
    %2144 = vmatmul.mubr.f32.gmra.mxu0 %v2020
    %v2145 = vpop.f32.mrf.mxu0
    %v2146 = vadd.f32 0.0, %v2145
    %v2147 = vpop.f32.mrf.mxu0
    %2148 = vmatprep.mubr.f32.mxu0 %v2023
    %2149 = vmatmul.mubr.f32.gmra.mxu0 %v2022
    %v2150 = vpop.f32.mrf.mxu0
    %v2151 = vadd.f32 0.0, %v2150
    %v2152 = vpop.f32.mrf.mxu0
    %2153 = vmatprep.mubr.f32.mxu0 %v2025
    %2154 = vmatmul.mubr.f32.gmra.mxu0 %v2024
    %v2155 = vpop.f32.mrf.mxu0
    %v2156 = vadd.f32 0.0, %v2155
    %v2157 = vpop.f32.mrf.mxu0
    %2158 = vmatprep.mubr.f32.mxu0 %v2027
    %2159 = vmatmul.mubr.f32.gmra.mxu0 %v2026
    %v2160 = vpop.f32.mrf.mxu0
    %v2161 = vadd.f32 0.0, %v2160
    %v2162 = vpop.f32.mrf.mxu0
    %2163 = vmatprep.mubr.f32.mxu0 %v2029
    %2164 = vmatmul.mubr.f32.gmra.mxu0 %v2028
    %v2165 = vpop.f32.mrf.mxu0
    %v2166 = vadd.f32 0.0, %v2165
    %v2167 = vpop.f32.mrf.mxu0
    %2168 = vmatprep.mubr.f32.mxu0 %v2031
    %2169 = vmatmul.mubr.f32.gmra.mxu0 %v2030
    %v2170 = vpop.f32.mrf.mxu0
    %v2171 = vadd.f32 0.0, %v2170
    %v2172 = vpop.f32.mrf.mxu0
    %2173 = vmatprep.mubr.f32.mxu0 %v2033
    %2174 = vmatmul.mubr.f32.gmra.mxu0 %v2032
    %v2175 = vpop.f32.mrf.mxu0
    %v2176 = vadd.f32 0.0, %v2175
    %v2177 = vpop.f32.mrf.mxu0
    %2178 = vdwg.mxu0
    %v2179 = vsub.f32 %v2002, %v1408
    %v2180 = vsub.f32 %v2003, %v1409
    %v2181 = vsub.f32 %v2004, %v1410
    %v2182 = vsub.f32 %v2005, %v1411
    %v2183 = vsub.f32 %v2006, %v1412
    %v2184 = vsub.f32 %v2007, %v1413
    %v2185 = vsub.f32 %v2008, %v1414
    %v2186 = vsub.f32 %v2009, %v1415
    %v2187 = vsub.f32 %v2010, %v1416
    %v2188 = vsub.f32 %v2011, %v1417
    %v2189 = vsub.f32 %v2012, %v1418
    %v2190 = vsub.f32 %v2013, %v1419
    %v2191 = vsub.f32 %v2014, %v1420
    %v2192 = vsub.f32 %v2015, %v1421
    %v2193 = vsub.f32 %v2016, %v1422
    %v2194 = vsub.f32 %v2017, %v1423
    %v2195 = vsub.f32 %v2018, %v1424
    %v2196 = vsub.f32 %v2019, %v1425
    %v2197 = vsub.f32 %v2020, %v1426
    %v2198 = vsub.f32 %v2021, %v1427
    %v2199 = vsub.f32 %v2022, %v1428
    %v2200 = vsub.f32 %v2023, %v1429
    %v2201 = vsub.f32 %v2024, %v1430
    %v2202 = vsub.f32 %v2025, %v1431
    %v2203 = vsub.f32 %v2026, %v1432
    %v2204 = vsub.f32 %v2027, %v1433
    %v2205 = vsub.f32 %v2028, %v1434
    %v2206 = vsub.f32 %v2029, %v1435
    %v2207 = vsub.f32 %v2030, %v1436
    %v2208 = vsub.f32 %v2031, %v1437
    %v2209 = vsub.f32 %v2032, %v1438
    %v2210 = vsub.f32 %v2033, %v1439
    %v2211 = vmul.f32 %v2179, 0.5310638
    %v2212 = vmul.f32 %v2180, 0.5310638
    %v2213 = vmul.f32 %v2181, 0.5310638
    %v2214 = vmul.f32 %v2182, 0.5310638
    %v2215 = vmul.f32 %v2183, 0.5310638
    %v2216 = vmul.f32 %v2184, 0.5310638
    %v2217 = vmul.f32 %v2185, 0.5310638
    %v2218 = vmul.f32 %v2186, 0.5310638
    %v2219 = vmul.f32 %v2187, 0.5310638
    %v2220 = vmul.f32 %v2188, 0.5310638
    %v2221 = vmul.f32 %v2189, 0.5310638
    %v2222 = vmul.f32 %v2190, 0.5310638
    %v2223 = vmul.f32 %v2191, 0.5310638
    %v2224 = vmul.f32 %v2192, 0.5310638
    %v2225 = vmul.f32 %v2193, 0.5310638
    %v2226 = vmul.f32 %v2194, 0.5310638
    %v2227 = vmul.f32 %v2195, 0.5310638
    %v2228 = vmul.f32 %v2196, 0.5310638
    %v2229 = vmul.f32 %v2197, 0.5310638
    %v2230 = vmul.f32 %v2198, 0.5310638
    %v2231 = vmul.f32 %v2199, 0.5310638
    %v2232 = vmul.f32 %v2200, 0.5310638
    %v2233 = vmul.f32 %v2201, 0.5310638
    %v2234 = vmul.f32 %v2202, 0.5310638
    %v2235 = vmul.f32 %v2203, 0.5310638
    %v2236 = vmul.f32 %v2204, 0.5310638
    %v2237 = vmul.f32 %v2205, 0.5310638
    %v2238 = vmul.f32 %v2206, 0.5310638
    %v2239 = vmul.f32 %v2207, 0.5310638
    %v2240 = vmul.f32 %v2208, 0.5310638
    %v2241 = vmul.f32 %v2209, 0.5310638
    %v2242 = vmul.f32 %v2210, 0.5310638
    %v2243 = vadd.f32 %v2002, %v2211
    %v2244 = vadd.f32 %v2003, %v2212
    %v2245 = vadd.f32 %v2004, %v2213
    %v2246 = vadd.f32 %v2005, %v2214
    %v2247 = vadd.f32 %v2006, %v2215
    %v2248 = vadd.f32 %v2007, %v2216
    %v2249 = vadd.f32 %v2008, %v2217
    %v2250 = vadd.f32 %v2009, %v2218
    %v2251 = vadd.f32 %v2010, %v2219
    %v2252 = vadd.f32 %v2011, %v2220
    %v2253 = vadd.f32 %v2012, %v2221
    %v2254 = vadd.f32 %v2013, %v2222
    %v2255 = vadd.f32 %v2014, %v2223
    %v2256 = vadd.f32 %v2015, %v2224
    %v2257 = vadd.f32 %v2016, %v2225
    %v2258 = vadd.f32 %v2017, %v2226
    %v2259 = vadd.f32 %v2018, %v2227
    %v2260 = vadd.f32 %v2019, %v2228
    %v2261 = vadd.f32 %v2020, %v2229
    %v2262 = vadd.f32 %v2021, %v2230
    %v2263 = vadd.f32 %v2022, %v2231
    %v2264 = vadd.f32 %v2023, %v2232
    %v2265 = vadd.f32 %v2024, %v2233
    %v2266 = vadd.f32 %v2025, %v2234
    %v2267 = vadd.f32 %v2026, %v2235
    %v2268 = vadd.f32 %v2027, %v2236
    %v2269 = vadd.f32 %v2028, %v2237
    %v2270 = vadd.f32 %v2029, %v2238
    %v2271 = vadd.f32 %v2030, %v2239
    %v2272 = vadd.f32 %v2031, %v2240
    %v2273 = vadd.f32 %v2032, %v2241
    %v2274 = vadd.f32 %v2033, %v2242
    %v2275 = vsub.f32 %v2101, %v1507
    %v2276 = vsub.f32 %v2106, %v1512
    %v2277 = vsub.f32 %v2111, %v1517
    %v2278 = vsub.f32 %v2116, %v1522
    %v2279 = vsub.f32 %v2121, %v1527
    %v2280 = vsub.f32 %v2126, %v1532
    %v2281 = vsub.f32 %v2131, %v1537
    %v2282 = vsub.f32 %v2136, %v1542
    %v2283 = vsub.f32 %v2141, %v1547
    %v2284 = vsub.f32 %v2146, %v1552
    %v2285 = vsub.f32 %v2151, %v1557
    %v2286 = vsub.f32 %v2156, %v1562
    %v2287 = vsub.f32 %v2161, %v1567
    %v2288 = vsub.f32 %v2166, %v1572
    %v2289 = vsub.f32 %v2171, %v1577
    %v2290 = vsub.f32 %v2176, %v1582
    %v2291 = vmul.f32 %v2275, 0.5310638
    %v2292 = vmul.f32 %v2276, 0.5310638
    %v2293 = vmul.f32 %v2277, 0.5310638
    %v2294 = vmul.f32 %v2278, 0.5310638
    %v2295 = vmul.f32 %v2279, 0.5310638
    %v2296 = vmul.f32 %v2280, 0.5310638
    %v2297 = vmul.f32 %v2281, 0.5310638
    %v2298 = vmul.f32 %v2282, 0.5310638
    %v2299 = vmul.f32 %v2283, 0.5310638
    %v2300 = vmul.f32 %v2284, 0.5310638
    %v2301 = vmul.f32 %v2285, 0.5310638
    %v2302 = vmul.f32 %v2286, 0.5310638
    %v2303 = vmul.f32 %v2287, 0.5310638
    %v2304 = vmul.f32 %v2288, 0.5310638
    %v2305 = vmul.f32 %v2289, 0.5310638
    %v2306 = vmul.f32 %v2290, 0.5310638
    %v2307 = vadd.f32 %v2101, %v2291
    %v2308 = vadd.f32 %v2106, %v2292
    %v2309 = vadd.f32 %v2111, %v2293
    %v2310 = vadd.f32 %v2116, %v2294
    %v2311 = vadd.f32 %v2121, %v2295
    %v2312 = vadd.f32 %v2126, %v2296
    %v2313 = vadd.f32 %v2131, %v2297
    %v2314 = vadd.f32 %v2136, %v2298
    %v2315 = vadd.f32 %v2141, %v2299
    %v2316 = vadd.f32 %v2146, %v2300
    %v2317 = vadd.f32 %v2151, %v2301
    %v2318 = vadd.f32 %v2156, %v2302
    %v2319 = vadd.f32 %v2161, %v2303
    %v2320 = vadd.f32 %v2166, %v2304
    %v2321 = vadd.f32 %v2171, %v2305
    %v2322 = vadd.f32 %v2176, %v2306
    %v2323 = vsub.f32 %v59, %v2307
    %v2324 = vsub.f32 %v60, %v2308
    %v2325 = vsub.f32 %v61, %v2309
    %v2326 = vsub.f32 %v62, %v2310
    %v2327 = vsub.f32 %v63, %v2311
    %v2328 = vsub.f32 %v64, %v2312
    %v2329 = vsub.f32 %v65, %v2313
    %v2330 = vsub.f32 %v66, %v2314
    %v2331 = vsub.f32 %v67, %v2315
    %v2332 = vsub.f32 %v68, %v2316
    %v2333 = vsub.f32 %v69, %v2317
    %v2334 = vsub.f32 %v70, %v2318
    %v2335 = vsub.f32 %v71, %v2319
    %v2336 = vsub.f32 %v72, %v2320
    %v2337 = vsub.f32 %v73, %v2321
    %v2338 = vsub.f32 %v74, %v2322
    %2339 = vmatprep.subr.mxu0 %v138
    %2340 = vmatpush1.msra.mxu0 %v137
    %2341 = vmatprep.subr.mxu0 %v136
    %2342 = vmatpush1.msra.mxu0 %v135
    %2343 = vmatprep.subr.mxu0 %v134
    %2344 = vmatpush1.msra.mxu0 %v133
    %2345 = vmatprep.subr.mxu0 %v132
    %2346 = vmatpush1.msra.mxu0 %v131
    %2347 = vmatprep.subr.mxu0 %v130
    %2348 = vmatpush1.msra.mxu0 %v129
    %2349 = vmatprep.subr.mxu0 %v128
    %2350 = vmatpush1.msra.mxu0 %v127
    %2351 = vmatprep.subr.mxu0 %v126
    %2352 = vmatpush1.msra.mxu0 %v125
    %2353 = vmatprep.subr.mxu0 %v124
    %2354 = vmatpush1.msra.mxu0 %v123
    %2355 = vmatprep.subr.mxu0 %v122
    %2356 = vmatpush1.msra.mxu0 %v121
    %2357 = vmatprep.subr.mxu0 %v120
    %2358 = vmatpush1.msra.mxu0 %v119
    %2359 = vmatprep.subr.mxu0 %v118
    %2360 = vmatpush1.msra.mxu0 %v117
    %2361 = vmatprep.subr.mxu0 %v116
    %2362 = vmatpush1.msra.mxu0 %v115
    %2363 = vmatprep.subr.mxu0 %v114
    %2364 = vmatpush1.msra.mxu0 %v113
    %2365 = vmatprep.subr.mxu0 %v112
    %2366 = vmatpush1.msra.mxu0 %v111
    %2367 = vmatprep.subr.mxu0 %v110
    %2368 = vmatpush1.msra.mxu0 %v109
    %2369 = vmatprep.subr.mxu0 %v108
    %2370 = vmatpush1.msra.mxu0 %v107
    %2371 = vmatprep.subr.mxu0 0.0
    %2372 = vmatpush2.msra.mxu0 0.0
    %2373 = vmatprep.subr.mxu0 0.0
    %2374 = vmatpush2.msra.mxu0 0.0
    %2375 = vmatprep.subr.mxu0 0.0
    %2376 = vmatpush2.msra.mxu0 0.0
    %2377 = vmatprep.subr.mxu0 0.0
    %2378 = vmatpush2.msra.mxu0 0.0
    %2379 = vmatprep.subr.mxu0 0.0
    %2380 = vmatpush2.msra.mxu0 0.0
    %2381 = vmatprep.subr.mxu0 0.0
    %2382 = vmatpush2.msra.mxu0 0.0
    %2383 = vmatprep.subr.mxu0 0.0
    %2384 = vmatpush2.msra.mxu0 0.0
    %2385 = vmatprep.subr.mxu0 0.0
    %2386 = vmatpush2.msra.mxu0 0.0
    %2387 = vmatprep.subr.mxu0 0.0
    %2388 = vmatpush2.msra.mxu0 0.0
    %2389 = vmatprep.subr.mxu0 0.0
    %2390 = vmatpush2.msra.mxu0 0.0
    %2391 = vmatprep.subr.mxu0 0.0
    %2392 = vmatpush2.msra.mxu0 0.0
    %2393 = vmatprep.subr.mxu0 0.0
    %2394 = vmatpush2.msra.mxu0 0.0
    %2395 = vmatprep.subr.mxu0 0.0
    %2396 = vmatpush2.msra.mxu0 0.0
    %2397 = vmatprep.subr.mxu0 0.0
    %2398 = vmatpush2.msra.mxu0 0.0
    %2399 = vmatprep.subr.mxu0 0.0
    %2400 = vmatpush2.msra.mxu0 0.0
    %2401 = vmatprep.subr.mxu0 0.0
    %2402 = vmatpush2.msra.mxu0 0.0
    %2403 = vmatprep.mubr.f32.mxu0 0.0
    %2404 = vmatmul.mubr.f32.gmra.mxu0 %v2323
    %v2405 = vpop.f32.mrf.mxu0
    %v2406 = vadd.f32 0.0, %v2405
    %v2407 = vpop.f32.mrf.mxu0
    %v2408 = vadd.f32 0.0, %v2407
    %2409 = vmatprep.mubr.f32.mxu0 0.0
    %2410 = vmatmul.mubr.f32.gmra.mxu0 %v2324
    %v2411 = vpop.f32.mrf.mxu0
    %v2412 = vadd.f32 0.0, %v2411
    %v2413 = vpop.f32.mrf.mxu0
    %v2414 = vadd.f32 0.0, %v2413
    %2415 = vmatprep.mubr.f32.mxu0 0.0
    %2416 = vmatmul.mubr.f32.gmra.mxu0 %v2325
    %v2417 = vpop.f32.mrf.mxu0
    %v2418 = vadd.f32 0.0, %v2417
    %v2419 = vpop.f32.mrf.mxu0
    %v2420 = vadd.f32 0.0, %v2419
    %2421 = vmatprep.mubr.f32.mxu0 0.0
    %2422 = vmatmul.mubr.f32.gmra.mxu0 %v2326
    %v2423 = vpop.f32.mrf.mxu0
    %v2424 = vadd.f32 0.0, %v2423
    %v2425 = vpop.f32.mrf.mxu0
    %v2426 = vadd.f32 0.0, %v2425
    %2427 = vmatprep.mubr.f32.mxu0 0.0
    %2428 = vmatmul.mubr.f32.gmra.mxu0 %v2327
    %v2429 = vpop.f32.mrf.mxu0
    %v2430 = vadd.f32 0.0, %v2429
    %v2431 = vpop.f32.mrf.mxu0
    %v2432 = vadd.f32 0.0, %v2431
    %2433 = vmatprep.mubr.f32.mxu0 0.0
    %2434 = vmatmul.mubr.f32.gmra.mxu0 %v2328
    %v2435 = vpop.f32.mrf.mxu0
    %v2436 = vadd.f32 0.0, %v2435
    %v2437 = vpop.f32.mrf.mxu0
    %v2438 = vadd.f32 0.0, %v2437
    %2439 = vmatprep.mubr.f32.mxu0 0.0
    %2440 = vmatmul.mubr.f32.gmra.mxu0 %v2329
    %v2441 = vpop.f32.mrf.mxu0
    %v2442 = vadd.f32 0.0, %v2441
    %v2443 = vpop.f32.mrf.mxu0
    %v2444 = vadd.f32 0.0, %v2443
    %2445 = vmatprep.mubr.f32.mxu0 0.0
    %2446 = vmatmul.mubr.f32.gmra.mxu0 %v2330
    %v2447 = vpop.f32.mrf.mxu0
    %v2448 = vadd.f32 0.0, %v2447
    %v2449 = vpop.f32.mrf.mxu0
    %v2450 = vadd.f32 0.0, %v2449
    %2451 = vmatprep.mubr.f32.mxu0 0.0
    %2452 = vmatmul.mubr.f32.gmra.mxu0 %v2331
    %v2453 = vpop.f32.mrf.mxu0
    %v2454 = vadd.f32 0.0, %v2453
    %v2455 = vpop.f32.mrf.mxu0
    %v2456 = vadd.f32 0.0, %v2455
    %2457 = vmatprep.mubr.f32.mxu0 0.0
    %2458 = vmatmul.mubr.f32.gmra.mxu0 %v2332
    %v2459 = vpop.f32.mrf.mxu0
    %v2460 = vadd.f32 0.0, %v2459
    %v2461 = vpop.f32.mrf.mxu0
    %v2462 = vadd.f32 0.0, %v2461
    %2463 = vmatprep.mubr.f32.mxu0 0.0
    %2464 = vmatmul.mubr.f32.gmra.mxu0 %v2333
    %v2465 = vpop.f32.mrf.mxu0
    %v2466 = vadd.f32 0.0, %v2465
    %v2467 = vpop.f32.mrf.mxu0
    %v2468 = vadd.f32 0.0, %v2467
    %2469 = vmatprep.mubr.f32.mxu0 0.0
    %2470 = vmatmul.mubr.f32.gmra.mxu0 %v2334
    %v2471 = vpop.f32.mrf.mxu0
    %v2472 = vadd.f32 0.0, %v2471
    %v2473 = vpop.f32.mrf.mxu0
    %v2474 = vadd.f32 0.0, %v2473
    %2475 = vmatprep.mubr.f32.mxu0 0.0
    %2476 = vmatmul.mubr.f32.gmra.mxu0 %v2335
    %v2477 = vpop.f32.mrf.mxu0
    %v2478 = vadd.f32 0.0, %v2477
    %v2479 = vpop.f32.mrf.mxu0
    %v2480 = vadd.f32 0.0, %v2479
    %2481 = vmatprep.mubr.f32.mxu0 0.0
    %2482 = vmatmul.mubr.f32.gmra.mxu0 %v2336
    %v2483 = vpop.f32.mrf.mxu0
    %v2484 = vadd.f32 0.0, %v2483
    %v2485 = vpop.f32.mrf.mxu0
    %v2486 = vadd.f32 0.0, %v2485
    %2487 = vmatprep.mubr.f32.mxu0 0.0
    %2488 = vmatmul.mubr.f32.gmra.mxu0 %v2337
    %v2489 = vpop.f32.mrf.mxu0
    %v2490 = vadd.f32 0.0, %v2489
    %v2491 = vpop.f32.mrf.mxu0
    %v2492 = vadd.f32 0.0, %v2491
    %2493 = vmatprep.mubr.f32.mxu0 0.0
    %2494 = vmatmul.mubr.f32.gmra.mxu0 %v2338
    %v2495 = vpop.f32.mrf.mxu0
    %v2496 = vadd.f32 0.0, %v2495
    %v2497 = vpop.f32.mrf.mxu0
    %v2498 = vadd.f32 0.0, %v2497
    %2499 = vdwg.mxu0
    %v2500 = vmul.f32 %v2406, 0.1
    %v2501 = vmul.f32 %v2408, 0.1
    %v2502 = vmul.f32 %v2412, 0.1
    %v2503 = vmul.f32 %v2414, 0.1
    %v2504 = vmul.f32 %v2418, 0.1
    %v2505 = vmul.f32 %v2420, 0.1
    %v2506 = vmul.f32 %v2424, 0.1
    %v2507 = vmul.f32 %v2426, 0.1
    %v2508 = vmul.f32 %v2430, 0.1
    %v2509 = vmul.f32 %v2432, 0.1
    %v2510 = vmul.f32 %v2436, 0.1
    %v2511 = vmul.f32 %v2438, 0.1
    %v2512 = vmul.f32 %v2442, 0.1
    %v2513 = vmul.f32 %v2444, 0.1
    %v2514 = vmul.f32 %v2448, 0.1
    %v2515 = vmul.f32 %v2450, 0.1
    %v2516 = vmul.f32 %v2454, 0.1
    %v2517 = vmul.f32 %v2456, 0.1
    %v2518 = vmul.f32 %v2460, 0.1
    %v2519 = vmul.f32 %v2462, 0.1
    %v2520 = vmul.f32 %v2466, 0.1
    %v2521 = vmul.f32 %v2468, 0.1
    %v2522 = vmul.f32 %v2472, 0.1
    %v2523 = vmul.f32 %v2474, 0.1
    %v2524 = vmul.f32 %v2478, 0.1
    %v2525 = vmul.f32 %v2480, 0.1
    %v2526 = vmul.f32 %v2484, 0.1
    %v2527 = vmul.f32 %v2486, 0.1
    %v2528 = vmul.f32 %v2490, 0.1
    %v2529 = vmul.f32 %v2492, 0.1
    %v2530 = vmul.f32 %v2496, 0.1
    %v2531 = vmul.f32 %v2498, 0.1
    %v2532 = vadd.f32 %v2243, %v2500
    %v2533 = vadd.f32 %v2244, %v2501
    %v2534 = vadd.f32 %v2245, %v2502
    %v2535 = vadd.f32 %v2246, %v2503
    %v2536 = vadd.f32 %v2247, %v2504
    %v2537 = vadd.f32 %v2248, %v2505
    %v2538 = vadd.f32 %v2249, %v2506
    %v2539 = vadd.f32 %v2250, %v2507
    %v2540 = vadd.f32 %v2251, %v2508
    %v2541 = vadd.f32 %v2252, %v2509
    %v2542 = vadd.f32 %v2253, %v2510
    %v2543 = vadd.f32 %v2254, %v2511
    %v2544 = vadd.f32 %v2255, %v2512
    %v2545 = vadd.f32 %v2256, %v2513
    %v2546 = vadd.f32 %v2257, %v2514
    %v2547 = vadd.f32 %v2258, %v2515
    %v2548 = vadd.f32 %v2259, %v2516
    %v2549 = vadd.f32 %v2260, %v2517
    %v2550 = vadd.f32 %v2261, %v2518
    %v2551 = vadd.f32 %v2262, %v2519
    %v2552 = vadd.f32 %v2263, %v2520
    %v2553 = vadd.f32 %v2264, %v2521
    %v2554 = vadd.f32 %v2265, %v2522
    %v2555 = vadd.f32 %v2266, %v2523
    %v2556 = vadd.f32 %v2267, %v2524
    %v2557 = vadd.f32 %v2268, %v2525
    %v2558 = vadd.f32 %v2269, %v2526
    %v2559 = vadd.f32 %v2270, %v2527
    %v2560 = vadd.f32 %v2271, %v2528
    %v2561 = vadd.f32 %v2272, %v2529
    %v2562 = vadd.f32 %v2273, %v2530
    %v2563 = vadd.f32 %v2274, %v2531
    %v2564 = vsub.f32 %v2532, 0.01
    %v2565 = vsub.f32 %v2533, 0.01
    %v2566 = vsub.f32 %v2534, 0.01
    %v2567 = vsub.f32 %v2535, 0.01
    %v2568 = vsub.f32 %v2536, 0.01
    %v2569 = vsub.f32 %v2537, 0.01
    %v2570 = vsub.f32 %v2538, 0.01
    %v2571 = vsub.f32 %v2539, 0.01
    %v2572 = vsub.f32 %v2540, 0.01
    %v2573 = vsub.f32 %v2541, 0.01
    %v2574 = vsub.f32 %v2542, 0.01
    %v2575 = vsub.f32 %v2543, 0.01
    %v2576 = vsub.f32 %v2544, 0.01
    %v2577 = vsub.f32 %v2545, 0.01
    %v2578 = vsub.f32 %v2546, 0.01
    %v2579 = vsub.f32 %v2547, 0.01
    %v2580 = vsub.f32 %v2548, 0.01
    %v2581 = vsub.f32 %v2549, 0.01
    %v2582 = vsub.f32 %v2550, 0.01
    %v2583 = vsub.f32 %v2551, 0.01
    %v2584 = vsub.f32 %v2552, 0.01
    %v2585 = vsub.f32 %v2553, 0.01
    %v2586 = vsub.f32 %v2554, 0.01
    %v2587 = vsub.f32 %v2555, 0.01
    %v2588 = vsub.f32 %v2556, 0.01
    %v2589 = vsub.f32 %v2557, 0.01
    %v2590 = vsub.f32 %v2558, 0.01
    %v2591 = vsub.f32 %v2559, 0.01
    %v2592 = vsub.f32 %v2560, 0.01
    %v2593 = vsub.f32 %v2561, 0.01
    %v2594 = vsub.f32 %v2562, 0.01
    %v2595 = vsub.f32 %v2563, 0.01
    %v2596 = vmax.f32 %v2564, 0.0
    %v2597 = vmax.f32 %v2565, 0.0
    %v2598 = vmax.f32 %v2566, 0.0
    %v2599 = vmax.f32 %v2567, 0.0
    %v2600 = vmax.f32 %v2568, 0.0
    %v2601 = vmax.f32 %v2569, 0.0
    %v2602 = vmax.f32 %v2570, 0.0
    %v2603 = vmax.f32 %v2571, 0.0
    %v2604 = vmax.f32 %v2572, 0.0
    %v2605 = vmax.f32 %v2573, 0.0
    %v2606 = vmax.f32 %v2574, 0.0
    %v2607 = vmax.f32 %v2575, 0.0
    %v2608 = vmax.f32 %v2576, 0.0
    %v2609 = vmax.f32 %v2577, 0.0
    %v2610 = vmax.f32 %v2578, 0.0
    %v2611 = vmax.f32 %v2579, 0.0
    %v2612 = vmax.f32 %v2580, 0.0
    %v2613 = vmax.f32 %v2581, 0.0
    %v2614 = vmax.f32 %v2582, 0.0
    %v2615 = vmax.f32 %v2583, 0.0
    %v2616 = vmax.f32 %v2584, 0.0
    %v2617 = vmax.f32 %v2585, 0.0
    %v2618 = vmax.f32 %v2586, 0.0
    %v2619 = vmax.f32 %v2587, 0.0
    %v2620 = vmax.f32 %v2588, 0.0
    %v2621 = vmax.f32 %v2589, 0.0
    %v2622 = vmax.f32 %v2590, 0.0
    %v2623 = vmax.f32 %v2591, 0.0
    %v2624 = vmax.f32 %v2592, 0.0
    %v2625 = vmax.f32 %v2593, 0.0
    %v2626 = vmax.f32 %v2594, 0.0
    %v2627 = vmax.f32 %v2595, 0.0
    %2628 = vmatprep.subr.mxu0 0.0
    %2629 = vmatpush1.msra.mxu0 %v90
    %2630 = vmatprep.subr.mxu0 0.0
    %2631 = vmatpush1.msra.mxu0 %v89
    %2632 = vmatprep.subr.mxu0 0.0
    %2633 = vmatpush1.msra.mxu0 %v88
    %2634 = vmatprep.subr.mxu0 0.0
    %2635 = vmatpush1.msra.mxu0 %v87
    %2636 = vmatprep.subr.mxu0 0.0
    %2637 = vmatpush1.msra.mxu0 %v86
    %2638 = vmatprep.subr.mxu0 0.0
    %2639 = vmatpush1.msra.mxu0 %v85
    %2640 = vmatprep.subr.mxu0 0.0
    %2641 = vmatpush1.msra.mxu0 %v84
    %2642 = vmatprep.subr.mxu0 0.0
    %2643 = vmatpush1.msra.mxu0 %v83
    %2644 = vmatprep.subr.mxu0 0.0
    %2645 = vmatpush1.msra.mxu0 %v82
    %2646 = vmatprep.subr.mxu0 0.0
    %2647 = vmatpush1.msra.mxu0 %v81
    %2648 = vmatprep.subr.mxu0 0.0
    %2649 = vmatpush1.msra.mxu0 %v80
    %2650 = vmatprep.subr.mxu0 0.0
    %2651 = vmatpush1.msra.mxu0 %v79
    %2652 = vmatprep.subr.mxu0 0.0
    %2653 = vmatpush1.msra.mxu0 %v78
    %2654 = vmatprep.subr.mxu0 0.0
    %2655 = vmatpush1.msra.mxu0 %v77
    %2656 = vmatprep.subr.mxu0 0.0
    %2657 = vmatpush1.msra.mxu0 %v76
    %2658 = vmatprep.subr.mxu0 0.0
    %2659 = vmatpush1.msra.mxu0 %v75
    %2660 = vmatprep.subr.mxu0 0.0
    %2661 = vmatpush2.msra.mxu0 %v106
    %2662 = vmatprep.subr.mxu0 0.0
    %2663 = vmatpush2.msra.mxu0 %v105
    %2664 = vmatprep.subr.mxu0 0.0
    %2665 = vmatpush2.msra.mxu0 %v104
    %2666 = vmatprep.subr.mxu0 0.0
    %2667 = vmatpush2.msra.mxu0 %v103
    %2668 = vmatprep.subr.mxu0 0.0
    %2669 = vmatpush2.msra.mxu0 %v102
    %2670 = vmatprep.subr.mxu0 0.0
    %2671 = vmatpush2.msra.mxu0 %v101
    %2672 = vmatprep.subr.mxu0 0.0
    %2673 = vmatpush2.msra.mxu0 %v100
    %2674 = vmatprep.subr.mxu0 0.0
    %2675 = vmatpush2.msra.mxu0 %v99
    %2676 = vmatprep.subr.mxu0 0.0
    %2677 = vmatpush2.msra.mxu0 %v98
    %2678 = vmatprep.subr.mxu0 0.0
    %2679 = vmatpush2.msra.mxu0 %v97
    %2680 = vmatprep.subr.mxu0 0.0
    %2681 = vmatpush2.msra.mxu0 %v96
    %2682 = vmatprep.subr.mxu0 0.0
    %2683 = vmatpush2.msra.mxu0 %v95
    %2684 = vmatprep.subr.mxu0 0.0
    %2685 = vmatpush2.msra.mxu0 %v94
    %2686 = vmatprep.subr.mxu0 0.0
    %2687 = vmatpush2.msra.mxu0 %v93
    %2688 = vmatprep.subr.mxu0 0.0
    %2689 = vmatpush2.msra.mxu0 %v92
    %2690 = vmatprep.subr.mxu0 0.0
    %2691 = vmatpush2.msra.mxu0 %v91
    %2692 = vmatprep.mubr.f32.mxu0 %v2597
    %2693 = vmatmul.mubr.f32.gmra.mxu0 %v2596
    %v2694 = vpop.f32.mrf.mxu0
    %v2695 = vadd.f32 0.0, %v2694
    %v2696 = vpop.f32.mrf.mxu0
    %2697 = vmatprep.mubr.f32.mxu0 %v2599
    %2698 = vmatmul.mubr.f32.gmra.mxu0 %v2598
    %v2699 = vpop.f32.mrf.mxu0
    %v2700 = vadd.f32 0.0, %v2699
    %v2701 = vpop.f32.mrf.mxu0
    %2702 = vmatprep.mubr.f32.mxu0 %v2601
    %2703 = vmatmul.mubr.f32.gmra.mxu0 %v2600
    %v2704 = vpop.f32.mrf.mxu0
    %v2705 = vadd.f32 0.0, %v2704
    %v2706 = vpop.f32.mrf.mxu0
    %2707 = vmatprep.mubr.f32.mxu0 %v2603
    %2708 = vmatmul.mubr.f32.gmra.mxu0 %v2602
    %v2709 = vpop.f32.mrf.mxu0
    %v2710 = vadd.f32 0.0, %v2709
    %v2711 = vpop.f32.mrf.mxu0
    %2712 = vmatprep.mubr.f32.mxu0 %v2605
    %2713 = vmatmul.mubr.f32.gmra.mxu0 %v2604
    %v2714 = vpop.f32.mrf.mxu0
    %v2715 = vadd.f32 0.0, %v2714
    %v2716 = vpop.f32.mrf.mxu0
    %2717 = vmatprep.mubr.f32.mxu0 %v2607
    %2718 = vmatmul.mubr.f32.gmra.mxu0 %v2606
    %v2719 = vpop.f32.mrf.mxu0
    %v2720 = vadd.f32 0.0, %v2719
    %v2721 = vpop.f32.mrf.mxu0
    %2722 = vmatprep.mubr.f32.mxu0 %v2609
    %2723 = vmatmul.mubr.f32.gmra.mxu0 %v2608
    %v2724 = vpop.f32.mrf.mxu0
    %v2725 = vadd.f32 0.0, %v2724
    %v2726 = vpop.f32.mrf.mxu0
    %2727 = vmatprep.mubr.f32.mxu0 %v2611
    %2728 = vmatmul.mubr.f32.gmra.mxu0 %v2610
    %v2729 = vpop.f32.mrf.mxu0
    %v2730 = vadd.f32 0.0, %v2729
    %v2731 = vpop.f32.mrf.mxu0
    %2732 = vmatprep.mubr.f32.mxu0 %v2613
    %2733 = vmatmul.mubr.f32.gmra.mxu0 %v2612
    %v2734 = vpop.f32.mrf.mxu0
    %v2735 = vadd.f32 0.0, %v2734
    %v2736 = vpop.f32.mrf.mxu0
    %2737 = vmatprep.mubr.f32.mxu0 %v2615
    %2738 = vmatmul.mubr.f32.gmra.mxu0 %v2614
    %v2739 = vpop.f32.mrf.mxu0
    %v2740 = vadd.f32 0.0, %v2739
    %v2741 = vpop.f32.mrf.mxu0
    %2742 = vmatprep.mubr.f32.mxu0 %v2617
    %2743 = vmatmul.mubr.f32.gmra.mxu0 %v2616
    %v2744 = vpop.f32.mrf.mxu0
    %v2745 = vadd.f32 0.0, %v2744
    %v2746 = vpop.f32.mrf.mxu0
    %2747 = vmatprep.mubr.f32.mxu0 %v2619
    %2748 = vmatmul.mubr.f32.gmra.mxu0 %v2618
    %v2749 = vpop.f32.mrf.mxu0
    %v2750 = vadd.f32 0.0, %v2749
    %v2751 = vpop.f32.mrf.mxu0
    %2752 = vmatprep.mubr.f32.mxu0 %v2621
    %2753 = vmatmul.mubr.f32.gmra.mxu0 %v2620
    %v2754 = vpop.f32.mrf.mxu0
    %v2755 = vadd.f32 0.0, %v2754
    %v2756 = vpop.f32.mrf.mxu0
    %2757 = vmatprep.mubr.f32.mxu0 %v2623
    %2758 = vmatmul.mubr.f32.gmra.mxu0 %v2622
    %v2759 = vpop.f32.mrf.mxu0
    %v2760 = vadd.f32 0.0, %v2759
    %v2761 = vpop.f32.mrf.mxu0
    %2762 = vmatprep.mubr.f32.mxu0 %v2625
    %2763 = vmatmul.mubr.f32.gmra.mxu0 %v2624
    %v2764 = vpop.f32.mrf.mxu0
    %v2765 = vadd.f32 0.0, %v2764
    %v2766 = vpop.f32.mrf.mxu0
    %2767 = vmatprep.mubr.f32.mxu0 %v2627
    %2768 = vmatmul.mubr.f32.gmra.mxu0 %v2626
    %v2769 = vpop.f32.mrf.mxu0
    %v2770 = vadd.f32 0.0, %v2769
    %v2771 = vpop.f32.mrf.mxu0
    %2772 = vdwg.mxu0
    %2773 = vst [vmem:[#allocation9] sm:$0xff] %v2596
    %2774 = vst [vmem:[#allocation9 + $0x8] sm:$0xff] %v2597
    %2775 = vst [vmem:[#allocation9 + $0x10] sm:$0xff] %v2598
    %2776 = vst [vmem:[#allocation9 + $0x18] sm:$0xff] %v2599
    %2777 = vst [vmem:[#allocation9 + $0x20] sm:$0xff] %v2600
    %2778 = vst [vmem:[#allocation9 + $0x28] sm:$0xff] %v2601
    %2779 = vst [vmem:[#allocation9 + $0x30] sm:$0xff] %v2602
    %2780 = vst [vmem:[#allocation9 + $0x38] sm:$0xff] %v2603
    %2781 = vst [vmem:[#allocation9 + $0x40] sm:$0xff] %v2604
    %2782 = vst [vmem:[#allocation9 + $0x48] sm:$0xff] %v2605
    %2783 = vst [vmem:[#allocation9 + $0x50] sm:$0xff] %v2606
    %2784 = vst [vmem:[#allocation9 + $0x58] sm:$0xff] %v2607
    %2785 = vst [vmem:[#allocation9 + $0x60] sm:$0xff] %v2608
    %2786 = vst [vmem:[#allocation9 + $0x68] sm:$0xff] %v2609
    %2787 = vst [vmem:[#allocation9 + $0x70] sm:$0xff] %v2610
    %2788 = vst [vmem:[#allocation9 + $0x78] sm:$0xff] %v2611
    %2789 = vst [vmem:[#allocation9 + $0x80] sm:$0xff] %v2612
    %2790 = vst [vmem:[#allocation9 + $0x88] sm:$0xff] %v2613
    %2791 = vst [vmem:[#allocation9 + $0x90] sm:$0xff] %v2614
    %2792 = vst [vmem:[#allocation9 + $0x98] sm:$0xff] %v2615
    %2793 = vst [vmem:[#allocation9 + $0xa0] sm:$0xff] %v2616
    %2794 = vst [vmem:[#allocation9 + $0xa8] sm:$0xff] %v2617
    %2795 = vst [vmem:[#allocation9 + $0xb0] sm:$0xff] %v2618
    %2796 = vst [vmem:[#allocation9 + $0xb8] sm:$0xff] %v2619
    %2797 = vst [vmem:[#allocation9 + $0xc0] sm:$0xff] %v2620
    %2798 = vst [vmem:[#allocation9 + $0xc8] sm:$0xff] %v2621
    %2799 = vst [vmem:[#allocation9 + $0xd0] sm:$0xff] %v2622
    %2800 = vst [vmem:[#allocation9 + $0xd8] sm:$0xff] %v2623
    %2801 = vst [vmem:[#allocation9 + $0xe0] sm:$0xff] %v2624
    %2802 = vst [vmem:[#allocation9 + $0xe8] sm:$0xff] %v2625
    %2803 = vst [vmem:[#allocation9 + $0xf0] sm:$0xff] %v2626
    %2804 = vst [vmem:[#allocation9 + $0xf8] sm:$0xff] %v2627
    %2805 = vst [vmem:[#allocation8] sm:$0xff] %v2695
    %2806 = vst [vmem:[#allocation8 + $0x8] sm:$0xff] %v2700
    %2807 = vst [vmem:[#allocation8 + $0x10] sm:$0xff] %v2705
    %2808 = vst [vmem:[#allocation8 + $0x18] sm:$0xff] %v2710
    %2809 = vst [vmem:[#allocation8 + $0x20] sm:$0xff] %v2715
    %2810 = vst [vmem:[#allocation8 + $0x28] sm:$0xff] %v2720
    %2811 = vst [vmem:[#allocation8 + $0x30] sm:$0xff] %v2725
    %2812 = vst [vmem:[#allocation8 + $0x38] sm:$0xff] %v2730
    %2813 = vst [vmem:[#allocation8 + $0x40] sm:$0xff] %v2735
    %2814 = vst [vmem:[#allocation8 + $0x48] sm:$0xff] %v2740
    %2815 = vst [vmem:[#allocation8 + $0x50] sm:$0xff] %v2745
    %2816 = vst [vmem:[#allocation8 + $0x58] sm:$0xff] %v2750
    %2817 = vst [vmem:[#allocation8 + $0x60] sm:$0xff] %v2755
    %2818 = vst [vmem:[#allocation8 + $0x68] sm:$0xff] %v2760
    %2819 = vst [vmem:[#allocation8 + $0x70] sm:$0xff] %v2765
    %2820 = vst [vmem:[#allocation8 + $0x78] sm:$0xff] %v2770
    // Predicated region
    $region26: #{tpu_custom_call.1} parent=1 // pred_check
      _
    $region27: #{tpu_custom_call.1} parent=1 // pred_check_branch
      %2822 = sbr.rel (0) target = $region29
    $region28: #{tpu_custom_call.1} parent=1 // pred_region
      %s2824 = ssub.s32 2048, 2048
      %2825 = vsyncadd [#allocation4], %s2824
      %s2826 = sshll.u32 [#allocation8], 4
      %s2827 = int_to_ptr.vmem [resolvable:$true] %s2826
      %2832 = dma.vmem_to_hbm [thread:$0]  %s2827, 2048, %s3, [#allocation4], 128, 128, 8
    $region29: #{tpu_custom_call.1} parent=1 // pred_fallthru
      _
    // Predicated region
    $region30: #{tpu_custom_call.1} parent=1 // pred_check
      _
    $region31: #{tpu_custom_call.1} parent=1 // pred_check_branch
      %2834 = sbr.rel (0) target = $region33
    $region32: #{tpu_custom_call.1} parent=1 // pred_region
      %s2836 = ssub.s32 4096, 4096
      %2837 = vsyncadd [#allocation10], %s2836
      %s2838 = sshll.u32 [#allocation9], 4
      %s2839 = int_to_ptr.vmem [resolvable:$true] %s2838
      %2844 = dma.vmem_to_hbm [thread:$0]  %s2839, 4096, %s4, [#allocation10], 256, 256, 16
    $region33: #{tpu_custom_call.1} parent=1 // pred_fallthru
      _
    // Predicated region
    $region34: #{tpu_custom_call.1} parent=1 // pred_check
      _
    $region35: #{tpu_custom_call.1} parent=1 // pred_check_branch
      %2846 = sbr.rel (0) target = $region37
    $region36: #{tpu_custom_call.1} parent=1 // pred_region
      %2847 = dma.done [#allocation4], 2048
    $region37: #{tpu_custom_call.1} parent=1 // pred_fallthru
      _
    // Predicated region
    $region38: #{tpu_custom_call.1} parent=1 // pred_check
      _
    $region39: #{tpu_custom_call.1} parent=1 // pred_check_branch
      %2849 = sbr.rel (0) target = $region41
    $region40: #{tpu_custom_call.1} parent=1 // pred_region
      %2850 = dma.done [#allocation10], 4096
    $region41: #{tpu_custom_call.1} parent=1 // pred_fallthru
      _
    %2851 = vsyncpa [#allocation3], 1
    %2852 = vsyncpa [#allocation6], 1
    %2853 = vsyncpa [#allocation4], 1
    %2854 = vsyncpa [#allocation10], 1

</llo_original>
